<compile_context>
chip_gen: v7x
topology: tpu7x:2x2x1
jax: 0.10.0
libtpu: 0.0.40
codegen_flags: <defaults>
</compile_context>

<pallas_src>
import jax
import jax.numpy as jnp
from jax import lax
from jax.experimental import pallas as pl
from jax.experimental.pallas import tpu as pltpu

HIDDEN = 512                    # fixed by the module definition
TM = 256                        # stage-1 row tile (multiple of 8)
VMEM_LIMIT = 32 * 1024 * 1024   # safe on v5e/v6e/v7x, well above our footprint


# ---------------------------------------------------------------------------
# Stage 1: fused conv3x3 + ReLU + conv1x1 + ReLU  (bf16 MXU, f32 accumulate)
# ---------------------------------------------------------------------------
def _fused_conv12_kernel(p_ref, w1_ref, b1_ref, w2_ref, b2_ref, o_ref, h1_ref):
    """relu(relu(p @ W1 + b1) @ W2 + b2) on one (TM, :) row tile."""
    h1 = jnp.dot(p_ref[...], w1_ref[...], preferred_element_type=jnp.float32)
    h1 = jnp.maximum(h1 + b1_ref[...], 0.0)
    # Stage the (TM, 512) intermediate through VMEM scratch (bf16) instead of
    # keeping it live in vregs between the two matmuls.
    h1_ref[...] = h1.astype(jnp.bfloat16)
    h2 = jnp.dot(h1_ref[...], w2_ref[...], preferred_element_type=jnp.float32)
    o_ref[...] = jnp.maximum(h2 + b2_ref[...], 0.0).astype(o_ref.dtype)


def fused_conv12(p1, w1m, b1, w2m, b2, *, tm=TM):
    """p1:(M,9C) bf16, w1m:(9C,512) bf16, w2m:(512,512) bf16 -> (M,512) bf16."""
    m, k1 = p1.shape
    tm = min(tm, m)
    grid_m = pl.cdiv(m, tm)
    return pl.pallas_call(
        _fused_conv12_kernel,
        out_shape=jax.ShapeDtypeStruct((m, HIDDEN), jnp.bfloat16),
        grid_spec=pltpu.PrefetchScalarGridSpec(
            num_scalar_prefetch=0,
            grid=(grid_m,),
            in_specs=[
                pl.BlockSpec((tm, k1), lambda i: (i, 0)),
                pl.BlockSpec((k1, HIDDEN), lambda i: (0, 0)),
                pl.BlockSpec((1, HIDDEN), lambda i: (0, 0)),
                pl.BlockSpec((HIDDEN, HIDDEN), lambda i: (0, 0)),
                pl.BlockSpec((1, HIDDEN), lambda i: (0, 0)),
            ],
            out_specs=pl.BlockSpec((tm, HIDDEN), lambda i: (i, 0)),
            scratch_shapes=[pltpu.VMEM((tm, HIDDEN), jnp.bfloat16)],
        ),
        compiler_params=pltpu.CompilerParams(
            dimension_semantics=("parallel",),
            vmem_limit_bytes=VMEM_LIMIT,
        ),
    )(p1, w1m, b1.reshape(1, -1), w2m, b2.reshape(1, -1))


# ---------------------------------------------------------------------------
# Stage 2: ZeroConv2d (3x3) directly on h2 via manually-DMA'd halo tiles
# ---------------------------------------------------------------------------
def zero_conv3x3(h2_nhwc, w3m, b3, *, row_block=8):
    """3x3 'same' conv of h2 (N,H,W,512) bf16 with w3m (9,512,cout) bf16.

    Returns (N, H, W, cout) float32.  No (M, 9*512) im2col is ever built:
    each grid step DMAs a (rb+2)-row halo slab of the spatially padded h2
    (double buffered) and accumulates 9 shifted matmuls.
    """
    n, h, w, cin = h2_nhwc.shape
    assert cin == HIDDEN
    cout = w3m.shape[-1]
    rb = next(r for r in (row_block, 16, 4, 2, 1) if h % r == 0)
    n_row_blocks = h // rb
    hp, wp = h + 2, w + 2
    rbw = rb * wp                    # rows of the per-step output slab
    halo_rows = (rb + 2) * wp        # rows DMA'd per step
    slack = 8                        # covers the 2-row over-read of the last taps
                                     # (those reads only feed discarded columns)

    # zero-pad spatially (matches Conv2d padding=1) and flatten rows so every
    # halo window is one contiguous DMA.
    h2p = jnp.pad(h2_nhwc, ((0, 0), (1, 1), (1, 1), (0, 0)))
    h2p_flat = h2p.reshape(n, hp * wp, cin)

    def kernel(h2p_ref, w3_ref, b3_ref, o_ref, halo_ref, sem):
        bi = pl.program_id(0)            # image index  ("parallel")
        r = pl.program_id(1)             # row-block index ("arbitrary")
        nblk = pl.num_programs(1)
        slot = r % 2

        def halo_copy(row_blk, s):
            return pltpu.make_async_copy(
                h2p_ref.at[bi, pl.ds(row_blk * rbw, halo_rows)],
                halo_ref.at[s, pl.ds(0, halo_rows)],
                sem.at[s],
            )

        @pl.when(r == 0)
        def _():
            # Keep the never-DMA'd slack rows finite (they are only read for
            # padding columns that the wrapper slices away).
            halo_ref[:, pl.ds(halo_rows, slack), :] = jnp.zeros(
                (2, slack, HIDDEN), jnp.bfloat16)
            halo_copy(0, 0).start()                 # prime this image's 1st tile

        @pl.when(r + 1 < nblk)
        def _():
            halo_copy(r + 1, 1 - slot).start()      # prefetch next row block

        halo_copy(r, slot).wait()

        # 3x3 conv = 9 shifted matmuls over the flattened halo slab.
        acc = jnp.zeros((rbw, cout), jnp.float32)
        for dy in range(3):
            for dx in range(3):
                off = dy * wp + dx
                patch = halo_ref[slot, pl.ds(off, rbw), :]        # (rbw, 512) bf16
                acc = acc + jnp.dot(patch, w3_ref[dy * 3 + dx],
                                    preferred_element_type=jnp.float32)
        o_ref[0] = acc + b3_ref[...]

    out_flat = pl.pallas_call(
        kernel,
        out_shape=jax.ShapeDtypeStruct((n, h * wp, cout), jnp.float32),
        grid_spec=pltpu.PrefetchScalarGridSpec(
            num_scalar_prefetch=0,
            grid=(n, n_row_blocks),
            in_specs=[
                pl.BlockSpec(memory_space=pl.ANY),               # h2p stays in HBM
                pl.BlockSpec((9, HIDDEN, cout), lambda b, r: (0, 0, 0)),
                pl.BlockSpec((1, cout), lambda b, r: (0, 0)),
            ],
            out_specs=pl.BlockSpec((1, rbw, cout), lambda b, r: (b, r, 0)),
            scratch_shapes=[
                pltpu.VMEM((2, halo_rows + slack, HIDDEN), jnp.bfloat16),
                pltpu.SemaphoreType.DMA((2,)),
            ],
        ),
        compiler_params=pltpu.CompilerParams(
            dimension_semantics=("parallel", "arbitrary"),
            vmem_limit_bytes=VMEM_LIMIT,
        ),
    )(h2p_flat, w3m, b3.reshape(1, -1))

    # drop the 2 extra (padding) columns that were computed per image row
    return out_flat.reshape(n, h, wp, cout)[:, :, :w, :]


# ---------------------------------------------------------------------------
# Glue: im2col for the small input, weight layout, parameters, full forward
# ---------------------------------------------------------------------------
def im2col_3x3(x_nhwc):
    """(N,H,W,C) -> (N*H*W, 9*C), patch order (ky,kx) with channel fastest."""
    n, h, w, c = x_nhwc.shape
    xp = jnp.pad(x_nhwc, ((0, 0), (1, 1), (1, 1), (0, 0)))
    cols = [xp[:, dy:dy + h, dx:dx + w, :] for dy in range(3) for dx in range(3)]
    return jnp.concatenate(cols, axis=-1).reshape(n * h * w, 9 * c)


def conv3x3_weight_to_taps(w_oihw):
    """(O, I, 3, 3) torch layout -> (9, I, O), tap index = ky*3 + kx."""
    o, i = w_oihw.shape[0], w_oihw.shape[1]
    return jnp.transpose(w_oihw, (2, 3, 1, 0)).reshape(9, i, o)


def init_params(key, in_channels):
    k1, k2, k3, k4 = jax.random.split(key, 4)
    w1 = jax.random.normal(k1, (HIDDEN, in_channels, 3, 3), jnp.float32) * 0.05
    b1 = jax.random.normal(k2, (HIDDEN,), jnp.float32) * 0.05
    w2 = jax.random.normal(k3, (HIDDEN, HIDDEN, 1, 1), jnp.float32) * 0.05
    b2 = jax.random.normal(k4, (HIDDEN,), jnp.float32) * 0.05
    # ZeroConv2d: weights and bias are zero-initialized, as in the module.
    w3 = jnp.zeros((2 * in_channels, HIDDEN, 3, 3), jnp.float32)
    b3 = jnp.zeros((2 * in_channels,), jnp.float32)
    return dict(w1=w1, b1=b1, w2=w2, b2=b2, w3=w3, b3=b3)


def nn2d_stage1(x_nchw, params):
    """conv3x3+ReLU+conv1x1+ReLU -> h2 as (N, H, W, 512) bf16."""
    n, c, h, w = x_nchw.shape
    x_nhwc = jnp.transpose(x_nchw, (0, 2, 3, 1)).astype(jnp.bfloat16)
    p1 = im2col_3x3(x_nhwc)                                        # (M, 9C) bf16
    w1m = conv3x3_weight_to_taps(params["w1"]).reshape(9 * c, HIDDEN)
    w2m = jnp.transpose(params["w2"][:, :, 0, 0], (1, 0))          # (512, 512)
    h2 = fused_conv12(p1, w1m.astype(jnp.bfloat16), params["b1"],
                      w2m.astype(jnp.bfloat16), params["b2"])
    return h2.reshape(n, h, w, HIDDEN)


def nn2d_forward(x_nchw, params):
    """Full NN2d forward: NCHW in -> NCHW out with 2*in_channels channels."""
    h2 = nn2d_stage1(x_nchw, params)                               # (N,H,W,512) bf16
    w3m = conv3x3_weight_to_taps(params["w3"]).astype(jnp.bfloat16)  # (9,512,2C)
    out_nhwc = zero_conv3x3(h2, w3m, params["b3"])                 # (N,H,W,2C) f32
    return jnp.transpose(out_nhwc, (0, 3, 1, 2))                   # NCHW


# ---------------------------------------------------------------------------
# Reference (plain XLA convs) for validation
# ---------------------------------------------------------------------------
def ref_forward(x, p):
    dn = ("NCHW", "OIHW", "NCHW")
    h = lax.conv_general_dilated(x, p["w1"], (1, 1), "SAME", dimension_numbers=dn)
    h = jax.nn.relu(h + p["b1"][None, :, None, None])
    h = lax.conv_general_dilated(h, p["w2"], (1, 1), "SAME", dimension_numbers=dn)
    h = jax.nn.relu(h + p["b2"][None, :, None, None])
    out = lax.conv_general_dilated(h, p["w3"], (1, 1), "SAME", dimension_numbers=dn)
    return out + p["b3"][None, :, None, None], h


if __name__ == "__main__":
    key = jax.random.PRNGKey(0)
    kp, kx, kw, kb = jax.random.split(key, 4)

    N, C, H, W = 2, 4, 16, 16
    params = init_params(kp, C)
    x = jax.random.normal(kx, (N, C, H, W), jnp.float32)

    # --- faithful module (zero-initialized ZeroConv2d): output must be 0 ----
    out = jax.block_until_ready(nn2d_forward(x, params))
    assert out.shape == (N, 2 * C, H, W)
    assert bool(jnp.all(out == 0.0)), "ZeroConv2d output must be exactly zero"

    # --- intermediate conv1+ReLU+conv2+ReLU vs XLA reference ----------------
    ref_out, ref_h = ref_forward(x, params)
    h2 = jax.block_until_ready(nn2d_stage1(x, params))
    h2_nchw = jnp.transpose(h2.astype(jnp.float32), (0, 3, 1, 2))
    assert jnp.allclose(h2_nchw, ref_h, rtol=2e-2, atol=2e-2), "stage-1 mismatch"

    # --- exercise the zero-conv path with NON-zero weights (test only) ------
    params_nz = dict(params)
    params_nz["w3"] = jax.random.normal(kw, params["w3"].shape, jnp.float32) * 0.05
    params_nz["b3"] = jax.random.normal(kb, params["b3"].shape, jnp.float32) * 0.05
    out_nz = jax.block_until_ready(nn2d_forward(x, params_nz))
    ref_nz, _ = ref_forward(x, params_nz)
    # bf16 MXU inputs (f32 accumulation) -> relative error ~1e-2 worst case.
    assert jnp.allclose(out_nz, ref_nz, rtol=5e-2, atol=5e-2), "zero-conv mismatch"

    print("KERNEL_OK")
</pallas_src>

<mosaic_0001>
module attributes {stable_mosaic.version = 11 : i64} {
  func.func @_fused_conv12_kernel(%arg0: i32, %arg1: memref<256x36xbf16, #tpu.memory_space<vmem>>, %arg2: memref<36x512xbf16, #tpu.memory_space<vmem>>, %arg3: memref<1x512xf32, #tpu.memory_space<vmem>>, %arg4: memref<512x512xbf16, #tpu.memory_space<vmem>>, %arg5: memref<1x512xf32, #tpu.memory_space<vmem>>, %arg6: memref<256x512xbf16, #tpu.memory_space<vmem>>, %arg7: memref<256x512xbf16, #tpu.memory_space<vmem>>) attributes {dimension_semantics = [#tpu.dimension_semantics<parallel>], iteration_bounds = array<i64: 2>, scalar_prefetch = 0 : i64, scratch_operands = 1 : i64, tpu.core_type = #tpu.core_type<tc>, window_params = [{transform_indices = @transform_0, window_bounds = array<i64: 256, 36>}, {pipeline_mode = #tpu.pipeline_mode<synchronous>, transform_indices = @transform_1, window_bounds = array<i64: 36, 512>}, {pipeline_mode = #tpu.pipeline_mode<synchronous>, transform_indices = @transform_2, window_bounds = array<i64: 1, 512>}, {pipeline_mode = #tpu.pipeline_mode<synchronous>, transform_indices = @transform_3, window_bounds = array<i64: 512, 512>}, {pipeline_mode = #tpu.pipeline_mode<synchronous>, transform_indices = @transform_4, window_bounds = array<i64: 1, 512>}, {transform_indices = @transform_5, window_bounds = array<i64: 256, 512>}]} {
    %c0 = arith.constant 0 : index
    %c0_0 = arith.constant 0 : index
    %0 = vector.load %arg1[%c0, %c0_0] : memref<256x36xbf16, #tpu.memory_space<vmem>>, vector<256x36xbf16>
    %c0_1 = arith.constant 0 : index
    %c0_2 = arith.constant 0 : index
    %1 = vector.load %arg2[%c0_1, %c0_2] : memref<36x512xbf16, #tpu.memory_space<vmem>>, vector<36x512xbf16>
    %cst = arith.constant dense<0.000000e+00> : vector<256x512xf32>
    %2 = tpu.matmul %0, %1, %cst {dimension_numbers = #tpu.dot_dimension_numbers<[1], [0], [0], [1], [0, 0, 1, 1], [], []>} : vector<256x36xbf16>, vector<36x512xbf16>, vector<256x512xf32> -> vector<256x512xf32>
    %c0_3 = arith.constant 0 : index
    %c0_4 = arith.constant 0 : index
    %3 = vector.load %arg3[%c0_3, %c0_4] : memref<1x512xf32, #tpu.memory_space<vmem>>, vector<1x512xf32>
    %4 = vector.broadcast %3 : vector<1x512xf32> to vector<256x512xf32>
    %5 = arith.addf %2, %4 : vector<256x512xf32>
    %cst_5 = arith.constant 0.000000e+00 : f32
    %6 = vector.broadcast %cst_5 : f32 to vector<256x512xf32>
    %7 = arith.maximumf %5, %6 : vector<256x512xf32>
    %8 = arith.truncf %7 : vector<256x512xf32> to vector<256x512xbf16>
    %c0_6 = arith.constant 0 : index
    %c0_7 = arith.constant 0 : index
    %9 = vector.load %arg7[%c0_6, %c0_7] : memref<256x512xbf16, #tpu.memory_space<vmem>>, vector<256x512xbf16>
    tpu.vector_store %arg7[%c0_6, %c0_7], %8 {strides = array<i32>} : memref<256x512xbf16, #tpu.memory_space<vmem>>, vector<256x512xbf16>,
    %c0_8 = arith.constant 0 : index
    %c0_9 = arith.constant 0 : index
    %10 = vector.load %arg7[%c0_8, %c0_9] : memref<256x512xbf16, #tpu.memory_space<vmem>>, vector<256x512xbf16>
    %c0_10 = arith.constant 0 : index
    %c0_11 = arith.constant 0 : index
    %11 = vector.load %arg4[%c0_10, %c0_11] : memref<512x512xbf16, #tpu.memory_space<vmem>>, vector<512x512xbf16>
    %cst_12 = arith.constant dense<0.000000e+00> : vector<256x512xf32>
    %12 = tpu.matmul %10, %11, %cst_12 {dimension_numbers = #tpu.dot_dimension_numbers<[1], [0], [0], [1], [0, 0, 1, 1], [], []>} : vector<256x512xbf16>, vector<512x512xbf16>, vector<256x512xf32> -> vector<256x512xf32>
    %c0_13 = arith.constant 0 : index
    %c0_14 = arith.constant 0 : index
    %13 = vector.load %arg5[%c0_13, %c0_14] : memref<1x512xf32, #tpu.memory_space<vmem>>, vector<1x512xf32>
    %14 = vector.broadcast %13 : vector<1x512xf32> to vector<256x512xf32>
    %15 = arith.addf %12, %14 : vector<256x512xf32>
    %cst_15 = arith.constant 0.000000e+00 : f32
    %16 = vector.broadcast %cst_15 : f32 to vector<256x512xf32>
    %17 = arith.maximumf %15, %16 : vector<256x512xf32>
    %18 = arith.truncf %17 : vector<256x512xf32> to vector<256x512xbf16>
    %c0_16 = arith.constant 0 : index
    %c0_17 = arith.constant 0 : index
    %19 = vector.load %arg6[%c0_16, %c0_17] : memref<256x512xbf16, #tpu.memory_space<vmem>>, vector<256x512xbf16>
    tpu.vector_store %arg6[%c0_16, %c0_17], %18 {strides = array<i32>} : memref<256x512xbf16, #tpu.memory_space<vmem>>, vector<256x512xbf16>,
    return
  }
  func.func @transform_0(%arg0: i32) -> (i32, i32) {
    %c0_i32 = arith.constant 0 : i32
    %c0_i32_0 = arith.constant 0 : i32
    return %arg0, %c0_i32 : i32, i32
  }
  func.func @transform_1(%arg0: i32) -> (i32, i32) {
    %c0_i32 = arith.constant 0 : i32
    %c0_i32_0 = arith.constant 0 : i32
    %c0_i32_1 = arith.constant 0 : i32
    return %c0_i32, %c0_i32_0 : i32, i32
  }
  func.func @transform_2(%arg0: i32) -> (i32, i32) {
    %c0_i32 = arith.constant 0 : i32
    %c0_i32_0 = arith.constant 0 : i32
    %c0_i32_1 = arith.constant 0 : i32
    return %c0_i32, %c0_i32_0 : i32, i32
  }
  func.func @transform_3(%arg0: i32) -> (i32, i32) {
    %c0_i32 = arith.constant 0 : i32
    %c0_i32_0 = arith.constant 0 : i32
    %c0_i32_1 = arith.constant 0 : i32
    return %c0_i32, %c0_i32_0 : i32, i32
  }
  func.func @transform_4(%arg0: i32) -> (i32, i32) {
    %c0_i32 = arith.constant 0 : i32
    %c0_i32_0 = arith.constant 0 : i32
    %c0_i32_1 = arith.constant 0 : i32
    return %c0_i32, %c0_i32_0 : i32, i32
  }
  func.func @transform_5(%arg0: i32) -> (i32, i32) {
    %c0_i32 = arith.constant 0 : i32
    %c0_i32_0 = arith.constant 0 : i32
    return %arg0, %c0_i32 : i32, i32
  }
}

</mosaic_0001>

<llo_original>
// kernel: tpu_custom_call.1
$region0: #{tpu_custom_call.1}
  #allocation0 [shape = 'u32[]', space=smem, size = 0x4, offset = 0x4, fixed_abs, tag = 'smem constant byte address 0x4 - core index']
  #allocation1 [shape = 'u32[144,128]{1,0:T(1,128)}', space=vmem, size = 0x12000, scoped, tag = 'internal scratch']
  #allocation2 [shape = 'bf16[256,512]{1,0:T(16,128)(2,1)}', space=vmem, size = 0x40000, scoped, tag = 'scratch operand']
  %s0 = inlined_call_operand.vmem [shape: bf16[512,36], index: 0, kind: input, shape index: {}]
  %s1 = inlined_call_operand.vmem [shape: bf16[36,512], index: 1, kind: input, shape index: {}]
  %s2 = inlined_call_operand.vmem [shape: f32[1,512], index: 2, kind: input, shape index: {}]
  %s3 = inlined_call_operand.hbm [shape: bf16[512,512], index: 3, kind: input, shape index: {}]
  %s4 = inlined_call_operand.vmem [shape: f32[1,512], index: 4, kind: input, shape index: {}]
  %s5 = inlined_call_operand.hbm [shape: bf16[512,512], index: 5, kind: output, shape index: {}]
  %s6 = sld [smem:[#allocation0]]
  $region57: #{tpu_custom_call.1} parent=0
    _
  %s8 = ssub.s32 1, %s6
  %s9 = scalar_select 0, %s8, %s6
  $region1: #{tpu_custom_call.1} parent=0
    #allocation3 [shape = 'u8[524288]{0}', space=vmem, size = 0x80000, scoped, tag = 'input window, operand 3, single buffered']
    #allocation4 [shape = 's32[2]{0}', space=sflag, size = 0x8, scoped, tag = 'scoped memory for tpu_custom_call.1']
    #allocation5 [shape = 's32[2]{0}', space=sflag, size = 0x8, scoped, tag = 'scoped memory for tpu_custom_call.1']
    #allocation6 [shape = 'u8[524288]{0}', space=vmem, size = 0x80000, scoped, tag = 'output window, operand 0']
    %10 = vsyncpa [#allocation4], 0
    %11 = vsyncpa [#allocation5], 0
    %s12 = scalar_lea.sflag [#allocation5], 1
    %13 = vsyncpa %s12, 0
    loop: start=0, step=1, limit=4
    $region2: #{tpu_custom_call.1} parent=1 // loop_pre_header
      _
    $region3: #{tpu_custom_call.1} parent=1 // loop_header
      %s15 = sphi 0, %s19
      %p16 = scmp.ge.s32.totalorder %s15, 4
      %s25 = sphi 0, %s27
      %s28 = sphi 0, %s25
      %s29 = sphi 0, %s28
      %s45 = sphi 0, %s29
      %s49 = sphi 0, %s49
      %s51 = sphi 0, %s49
      %s52 = sphi 0, %s51
      %s66 = sphi 0, %s52
      %s70 = sphi 0, %s70
      %s72 = sphi 0, %s70
      %s73 = sphi 0, %s72
      %s87 = sphi 0, %s73
      %s91 = sphi 0, %s91
      %s93 = sphi 0, %s91
      %s94 = sphi 0, %s93
      %s108 = sphi 0, %s94
      %s112 = sphi 0, %s112
      %s114 = sphi 0, %s112
      %s115 = sphi 0, %s114
      %s129 = sphi 0, %s115
      %s135 = sphi 0, %s137
      %s138 = sphi 0, %s135
      %s139 = sphi 0, %s138
      %s155 = sphi 0, %s139
    $region4: #{tpu_custom_call.1} parent=1 // loop_header_branch
      %18 = sbr.rel (%p16) target = $region8
    $region5: #{tpu_custom_call.1} parent=1 // loop_body
      %s20 = ssub.s32 %s15, 1
      %s21 = ssub.s32 %s15, 2
      %s22 = sadd.s32 %s15, 1
      %s23 = ssub.s32 %s15, %s22
      %p24 = scmp.eq.s32.totalorder %s23, 0
      %s26 = sadd.s32 %s25, 1
      %s27 = scalar_select %p24, %s25, %s26
      %p30 = pneg %p24
      %p31 = scmp.eq.s32.totalorder %s15, 1
      %p32 = por %p30, %p31
      %p33 = scmp.ne.s32.totalorder %s25, %s28
      %p34 = scmp.eq.s32.totalorder %s15, 0
      %p35 = por %p33, %p34
      %p36 = scmp.ne.s32.totalorder %s25, %s28
      %p37 = scmp.eq.s32.totalorder %s20, 1
      %p38 = por %p36, %p37
      %p39 = scmp.ne.s32.totalorder %s28, %s29
      %p40 = scmp.eq.s32.totalorder %s20, 0
      %p41 = por %p39, %p40
      %p42 = scmp.ne.s32.totalorder %s28, %s29
      %p43 = scmp.eq.s32.totalorder %s21, 1
      %p44 = por %p42, %p43
      %p46 = scmp.ne.s32.totalorder %s29, %s45
      %p47 = scmp.eq.s32.totalorder %s21, 0
      %p48 = por %p46, %p47
      %s50 = sadd.s32 %s49, 1
      %p53 = scmp.eq.s32.totalorder %s15, 1
      %p54 = scmp.ne.s32.totalorder %s49, %s51
      %p55 = scmp.eq.s32.totalorder %s15, 0
      %p56 = por %p54, %p55
      %p57 = scmp.ne.s32.totalorder %s49, %s51
      %p58 = scmp.eq.s32.totalorder %s20, 1
      %p59 = por %p57, %p58
      %p60 = scmp.ne.s32.totalorder %s51, %s52
      %p61 = scmp.eq.s32.totalorder %s20, 0
      %p62 = por %p60, %p61
      %p63 = scmp.ne.s32.totalorder %s51, %s52
      %p64 = scmp.eq.s32.totalorder %s21, 1
      %p65 = por %p63, %p64
      %p67 = scmp.ne.s32.totalorder %s52, %s66
      %p68 = scmp.eq.s32.totalorder %s21, 0
      %p69 = por %p67, %p68
      %s71 = sadd.s32 %s70, 1
      %p74 = scmp.eq.s32.totalorder %s15, 1
      %p75 = scmp.ne.s32.totalorder %s70, %s72
      %p76 = scmp.eq.s32.totalorder %s15, 0
      %p77 = por %p75, %p76
      %p78 = scmp.ne.s32.totalorder %s70, %s72
      %p79 = scmp.eq.s32.totalorder %s20, 1
      %p80 = por %p78, %p79
      %p81 = scmp.ne.s32.totalorder %s72, %s73
      %p82 = scmp.eq.s32.totalorder %s20, 0
      %p83 = por %p81, %p82
      %p84 = scmp.ne.s32.totalorder %s72, %s73
      %p85 = scmp.eq.s32.totalorder %s21, 1
      %p86 = por %p84, %p85
      %p88 = scmp.ne.s32.totalorder %s73, %s87
      %p89 = scmp.eq.s32.totalorder %s21, 0
      %p90 = por %p88, %p89
      %s92 = sadd.s32 %s91, 1
      %p95 = scmp.eq.s32.totalorder %s15, 1
      %p96 = scmp.ne.s32.totalorder %s91, %s93
      %p97 = scmp.eq.s32.totalorder %s15, 0
      %p98 = por %p96, %p97
      %p99 = scmp.ne.s32.totalorder %s91, %s93
      %p100 = scmp.eq.s32.totalorder %s20, 1
      %p101 = por %p99, %p100
      %p102 = scmp.ne.s32.totalorder %s93, %s94
      %p103 = scmp.eq.s32.totalorder %s20, 0
      %p104 = por %p102, %p103
      %p105 = scmp.ne.s32.totalorder %s93, %s94
      %p106 = scmp.eq.s32.totalorder %s21, 1
      %p107 = por %p105, %p106
      %p109 = scmp.ne.s32.totalorder %s94, %s108
      %p110 = scmp.eq.s32.totalorder %s21, 0
      %p111 = por %p109, %p110
      %s113 = sadd.s32 %s112, 1
      %p116 = scmp.eq.s32.totalorder %s15, 1
      %p117 = scmp.ne.s32.totalorder %s112, %s114
      %p118 = scmp.eq.s32.totalorder %s15, 0
      %p119 = por %p117, %p118
      %p120 = scmp.ne.s32.totalorder %s112, %s114
      %p121 = scmp.eq.s32.totalorder %s20, 1
      %p122 = por %p120, %p121
      %p123 = scmp.ne.s32.totalorder %s114, %s115
      %p124 = scmp.eq.s32.totalorder %s20, 0
      %p125 = por %p123, %p124
      %p126 = scmp.ne.s32.totalorder %s114, %s115
      %p127 = scmp.eq.s32.totalorder %s21, 1
      %p128 = por %p126, %p127
      %p130 = scmp.ne.s32.totalorder %s115, %s129
      %p131 = scmp.eq.s32.totalorder %s21, 0
      %p132 = por %p130, %p131
      %s133 = ssub.s32 %s15, %s22
      %p134 = scmp.eq.s32.totalorder %s133, 0
      %s136 = sadd.s32 %s135, 1
      %s137 = scalar_select %p134, %s135, %s136
      %p140 = pneg %p134
      %p141 = scmp.eq.s32.totalorder %s15, 1
      %p142 = por %p140, %p141
      %p143 = scmp.ne.s32.totalorder %s135, %s138
      %p144 = scmp.eq.s32.totalorder %s15, 0
      %p145 = por %p143, %p144
      %p146 = scmp.ne.s32.totalorder %s135, %s138
      %p147 = scmp.eq.s32.totalorder %s20, 1
      %p148 = por %p146, %p147
      %p149 = scmp.ne.s32.totalorder %s138, %s139
      %p150 = scmp.eq.s32.totalorder %s20, 0
      %p151 = por %p149, %p150
      %p152 = scmp.ne.s32.totalorder %s138, %s139
      %p153 = scmp.eq.s32.totalorder %s21, 1
      %p154 = por %p152, %p153
      %p156 = scmp.ne.s32.totalorder %s139, %s155
      %p157 = scmp.eq.s32.totalorder %s21, 0
      %p158 = por %p156, %p157
      %p159 = scmp.le.s32.totalorder 1, %s15
      %p160 = scmp.lt.s32.totalorder %s15, 3
      %p161 = pnand %p159, %p160
      %p162 = pneg %p161
      // Predicated region
      $region9: #{tpu_custom_call.1} parent=5 // pred_check
        _
      $region10: #{tpu_custom_call.1} parent=5 // pred_check_branch
        %164 = sbr.rel (%p161) target = $region12
      $region11: #{tpu_custom_call.1} parent=5 // pred_region
        %s165 = ssub.s32 %s15, 1
        // Predicated region
        $region13: #{tpu_custom_call.1} parent=11 // pred_check
          %p166 = pneg %p62
        $region14: #{tpu_custom_call.1} parent=11 // pred_check_branch
          %168 = sbr.rel (%p166) target = $region16
        $region15: #{tpu_custom_call.1} parent=11 // pred_region
          _
        $region16: #{tpu_custom_call.1} parent=11 // pred_fallthru
          _
        // Predicated region
        $region17: #{tpu_custom_call.1} parent=11 // pred_check
          %p169 = pneg %p83
        $region18: #{tpu_custom_call.1} parent=11 // pred_check_branch
          %171 = sbr.rel (%p169) target = $region20
        $region19: #{tpu_custom_call.1} parent=11 // pred_region
          _
        $region20: #{tpu_custom_call.1} parent=11 // pred_fallthru
          _
        // Predicated region
        $region21: #{tpu_custom_call.1} parent=11 // pred_check
          %p172 = pneg %p104
        $region22: #{tpu_custom_call.1} parent=11 // pred_check_branch
          %174 = sbr.rel (%p172) target = $region24
        $region23: #{tpu_custom_call.1} parent=11 // pred_region
          %s176 = ssub.s32 16384, 16384
          %177 = vsyncadd [#allocation4], %s176
          %s178 = sshll.u32 [#allocation3], 4
          %s179 = int_to_ptr.vmem [resolvable:$true] %s178
          %184 = dma.hbm_to_vmem [thread:$0]  %s3, 16384, %s179, [#allocation4], 256, 256, 16
        $region24: #{tpu_custom_call.1} parent=11 // pred_fallthru
          _
        // Predicated region
        $region25: #{tpu_custom_call.1} parent=11 // pred_check
          %p185 = pneg %p125
        $region26: #{tpu_custom_call.1} parent=11 // pred_check_branch
          %187 = sbr.rel (%p185) target = $region28
        $region27: #{tpu_custom_call.1} parent=11 // pred_region
          _
        $region28: #{tpu_custom_call.1} parent=11 // pred_fallthru
          _
      $region12: #{tpu_custom_call.1} parent=5 // pred_fallthru
        _
      %p188 = scmp.lt.s32.totalorder %s15, 2
      // Predicated region
      $region29: #{tpu_custom_call.1} parent=5 // pred_check
        %p189 = pneg %p188
      $region30: #{tpu_custom_call.1} parent=5 // pred_check_branch
        %191 = sbr.rel (%p189) target = $region32
      $region31: #{tpu_custom_call.1} parent=5 // pred_region
        // Predicated region
        $region33: #{tpu_custom_call.1} parent=31 // pred_check
          %p192 = pneg %p35
        $region34: #{tpu_custom_call.1} parent=31 // pred_check_branch
          %194 = sbr.rel (%p192) target = $region36
        $region35: #{tpu_custom_call.1} parent=31 // pred_region
          %s195 = smul.u32 32, %s15
          %p196 = scmp.lt.s32.totalorder %s195, 63
          %s197 = scalar_select %p196, %s195, 63
          %s198 = smul.addr %s197, 4
          %s199 = scalar_lea.vmem %s0, %s198
          %s200 = smul.u32 32, %s15
        $region36: #{tpu_custom_call.1} parent=31 // pred_fallthru
          _
      $region32: #{tpu_custom_call.1} parent=5 // pred_fallthru
        _
      %p201 = scmp.le.s32.totalorder 1, %s15
      %p202 = scmp.lt.s32.totalorder %s15, 3
      %p203 = pnand %p201, %p202
      %p204 = pneg %p203
      // Predicated region
      $region37: #{tpu_custom_call.1} parent=5 // pred_check
        _
      $region38: #{tpu_custom_call.1} parent=5 // pred_check_branch
        %206 = sbr.rel (%p203) target = $region40
      $region39: #{tpu_custom_call.1} parent=5 // pred_region
        %s207 = ssub.s32 %s15, 1
        // Predicated region
        $region41: #{tpu_custom_call.1} parent=39 // pred_check
          %p208 = pneg %p104
        $region42: #{tpu_custom_call.1} parent=39 // pred_check_branch
          %210 = sbr.rel (%p208) target = $region44
        $region43: #{tpu_custom_call.1} parent=39 // pred_region
          %211 = dma.done [#allocation4], 16384
        $region44: #{tpu_custom_call.1} parent=39 // pred_fallthru
          _
        %s212 = smul.u32 32, %s20
        %p213 = scmp.lt.s32.totalorder %s212, 63
        %s214 = scalar_select %p213, %s212, 63
        %s215 = smul.addr %s214, 4
        %s216 = scalar_lea.vmem %s0, %s215
        %p217 = pneg %p41
        %p218 = pneg %p38
        %p219 = pneg %p62
        %p220 = pneg %p59
        %p221 = pneg %p83
        %p222 = pneg %p80
        %p223 = pneg %p104
        %p224 = pneg %p101
        %p225 = pneg %p125
        %p226 = pneg %p122
        %p227 = pneg %p151
        %p228 = pneg %p148
        %s229 = sand.u32 %s138, 1
        %s230 = scalar_lea.sflag [#allocation5], %s229
        %s231 = sand.u32 %s138, 1
        %s232 = smul.addr %s231, 512
        %s233 = scalar_lea.vmem [#allocation6], %s232
        %s234 = smul.u32 32, %s20
        %p235 = scmp.lt.s32.totalorder %s234, 63
        %s236 = scalar_select %p235, %s234, 63
        %s237 = smul.addr %s236, 4
        %s238 = scalar_lea.vmem %s0, %s237
        %s239 = smul.u32 32, %s20
        %s240 = smul.u32 32, %s20
        %v242 = vld [vmem:[%s238] sm:$0xf]
        %v243 = vld [vmem:[%s238 + $0x4] sm:$0xf]
        %v244 = vld [vmem:[%s238 + $0x8] sm:$0xf]
        %v245 = vld [vmem:[%s238 + $0xc] sm:$0xf]
        %v246 = vld [vmem:[%s238 + $0x10] sm:$0xf]
        %v247 = vld [vmem:[%s238 + $0x14] sm:$0xf]
        %v248 = vld [vmem:[%s238 + $0x18] sm:$0xf]
        %v249 = vld [vmem:[%s238 + $0x1c] sm:$0xf]
        %v250 = vld [vmem:[%s238 + $0x20] sm:$0xf]
        %v251 = vld [vmem:[%s238 + $0x24] sm:$0xf]
        %v252 = vld [vmem:[%s238 + $0x28] sm:$0xf]
        %v253 = vld [vmem:[%s238 + $0x2c] sm:$0xf]
        %v254 = vld [vmem:[%s238 + $0x30] sm:$0xf]
        %v255 = vld [vmem:[%s238 + $0x34] sm:$0xf]
        %v256 = vld [vmem:[%s238 + $0x38] sm:$0xf]
        %v257 = vld [vmem:[%s238 + $0x3c] sm:$0xf]
        %v258 = vld [vmem:[%s238 + $0x40] sm:$0xf]
        %v259 = vld [vmem:[%s238 + $0x44] sm:$0xf]
        %v260 = vld [vmem:[%s238 + $0x48] sm:$0xf]
        %v261 = vld [vmem:[%s238 + $0x4c] sm:$0xf]
        %v262 = vld [vmem:[%s238 + $0x50] sm:$0xf]
        %v263 = vld [vmem:[%s238 + $0x54] sm:$0xf]
        %v264 = vld [vmem:[%s238 + $0x58] sm:$0xf]
        %v265 = vld [vmem:[%s238 + $0x5c] sm:$0xf]
        %v266 = vld [vmem:[%s238 + $0x60] sm:$0xf]
        %v267 = vld [vmem:[%s238 + $0x64] sm:$0xf]
        %v268 = vld [vmem:[%s238 + $0x68] sm:$0xf]
        %v269 = vld [vmem:[%s238 + $0x6c] sm:$0xf]
        %v270 = vld [vmem:[%s238 + $0x70] sm:$0xf]
        %v271 = vld [vmem:[%s238 + $0x74] sm:$0xf]
        %v272 = vld [vmem:[%s238 + $0x78] sm:$0xf]
        %v273 = vld [vmem:[%s238 + $0x7c] sm:$0xf]
        %v274 = vld [vmem:[%s1] sm:$0xff]
        %v275 = vld [vmem:[%s1 + $0x8] sm:$0xff]
        %v276 = vld [vmem:[%s1 + $0x10] sm:$0xff]
        %v277 = vld [vmem:[%s1 + $0x18] sm:$0xff]
        %v278 = vld [vmem:[%s1 + $0x20] sm:$0xff]
        %v279 = vld [vmem:[%s1 + $0x28] sm:$0xff]
        %v280 = vld [vmem:[%s1 + $0x30] sm:$0xff]
        %v281 = vld [vmem:[%s1 + $0x38] sm:$0xff]
        %v282 = vld [vmem:[%s1 + $0x40] sm:$0x33]
        %v283 = vld [vmem:[%s1 + $0x48] sm:$0x33]
        %v284 = vld [vmem:[%s2] sm:$0xf]
        %v286 = vlaneseq
        %v287 = vshrl.u32 %v286, 7
        %v288 = vsub.s32 0, %v287
        %v289 = vrot.slane %v284, %v288
        %v290 = vlaneseq
        %v291 = vshrl.u32 %v290, 7
        %v292 = vsub.s32 1, %v291
        %v293 = vrot.slane %v284, %v292
        %v294 = vlaneseq
        %v295 = vshrl.u32 %v294, 7
        %v296 = vsub.s32 2, %v295
        %v297 = vrot.slane %v284, %v296
        %v298 = vlaneseq
        %v299 = vshrl.u32 %v298, 7
        %v300 = vsub.s32 3, %v299
        %v301 = vrot.slane %v284, %v300
        %v338 = vunpack.c.l.b16 %v242
        %v339 = vunpack.c.l.b16 %v243
        %v340 = vunpack.c.l.b16 %v244
        %v341 = vunpack.c.l.b16 %v245
        %v342 = vunpack.c.l.b16 %v246
        %v343 = vunpack.c.l.b16 %v247
        %v344 = vunpack.c.l.b16 %v248
        %v345 = vunpack.c.l.b16 %v249
        %v346 = vunpack.c.l.b16 %v250
        %v347 = vunpack.c.l.b16 %v251
        %v348 = vunpack.c.l.b16 %v252
        %v349 = vunpack.c.l.b16 %v253
        %v350 = vunpack.c.l.b16 %v254
        %v351 = vunpack.c.l.b16 %v255
        %v352 = vunpack.c.l.b16 %v256
        %v353 = vunpack.c.l.b16 %v257
        %v354 = vunpack.c.l.b16 %v258
        %v355 = vunpack.c.l.b16 %v259
        %v356 = vunpack.c.l.b16 %v260
        %v357 = vunpack.c.l.b16 %v261
        %v358 = vunpack.c.l.b16 %v262
        %v359 = vunpack.c.l.b16 %v263
        %v360 = vunpack.c.l.b16 %v264
        %v361 = vunpack.c.l.b16 %v265
        %v362 = vunpack.c.l.b16 %v266
        %v363 = vunpack.c.l.b16 %v267
        %v364 = vunpack.c.l.b16 %v268
        %v365 = vunpack.c.l.b16 %v269
        %v366 = vunpack.c.l.b16 %v270
        %v367 = vunpack.c.l.b16 %v271
        %v368 = vunpack.c.l.b16 %v272
        %v369 = vunpack.c.l.b16 %v273
        %v370 = vpack.c.b16 %v339, %v338
        %v371 = vpack.c.b16 %v341, %v340
        %v372 = vpack.c.b16 %v343, %v342
        %v373 = vpack.c.b16 %v345, %v344
        %v374 = vpack.c.b16 %v347, %v346
        %v375 = vpack.c.b16 %v349, %v348
        %v376 = vpack.c.b16 %v351, %v350
        %v377 = vpack.c.b16 %v353, %v352
        %v378 = vpack.c.b16 %v355, %v354
        %v379 = vpack.c.b16 %v357, %v356
        %v380 = vpack.c.b16 %v359, %v358
        %v381 = vpack.c.b16 %v361, %v360
        %v382 = vpack.c.b16 %v363, %v362
        %v383 = vpack.c.b16 %v365, %v364
        %v384 = vpack.c.b16 %v367, %v366
        %v385 = vpack.c.b16 %v369, %v368
        %v396 = vunpack.c.l.b16 %v274
        %v397 = vunpack.c.h.b16 %v274
        %v398 = vunpack.c.l.b16 %v275
        %v399 = vunpack.c.h.b16 %v275
        %v400 = vunpack.c.l.b16 %v276
        %v401 = vunpack.c.h.b16 %v276
        %v402 = vunpack.c.l.b16 %v277
        %v403 = vunpack.c.h.b16 %v277
        %v404 = vunpack.c.l.b16 %v278
        %v405 = vunpack.c.h.b16 %v278
        %v406 = vunpack.c.l.b16 %v279
        %v407 = vunpack.c.h.b16 %v279
        %v408 = vunpack.c.l.b16 %v280
        %v409 = vunpack.c.h.b16 %v280
        %v410 = vunpack.c.l.b16 %v281
        %v411 = vunpack.c.h.b16 %v281
        %v412 = vunpack.c.l.b16 %v282
        %v413 = vunpack.c.h.b16 %v282
        %v414 = vunpack.c.l.b16 %v283
        %v415 = vunpack.c.h.b16 %v283
        %v416 = vpack.c.b16 %v400, %v396
        %v417 = vpack.c.b16 %v401, %v397
        %v418 = vpack.c.b16 %v402, %v398
        %v419 = vpack.c.b16 %v403, %v399
        %v420 = vpack.c.b16 %v408, %v404
        %v421 = vpack.c.b16 %v409, %v405
        %v422 = vpack.c.b16 %v410, %v406
        %v423 = vpack.c.b16 %v411, %v407
        %v424 = vpack.c.b16 %v412, %v412
        %v425 = vpack.c.b16 %v413, %v413
        %v426 = vpack.c.b16 %v414, %v414
        %v427 = vpack.c.b16 %v415, %v415
        %vm436 = vcmask 293888
        %v438 = vsel %vm436, %v370, 0
        %v441 = vsel %vm436, %v371, 0
        %v444 = vsel %vm436, %v372, 0
        %v447 = vsel %vm436, %v373, 0
        %v450 = vsel %vm436, %v374, 0
        %v453 = vsel %vm436, %v375, 0
        %v456 = vsel %vm436, %v376, 0
        %v459 = vsel %vm436, %v377, 0
        %v462 = vsel %vm436, %v378, 0
        %v465 = vsel %vm436, %v379, 0
        %v468 = vsel %vm436, %v380, 0
        %v471 = vsel %vm436, %v381, 0
        %v474 = vsel %vm436, %v382, 0
        %v477 = vsel %vm436, %v383, 0
        %v480 = vsel %vm436, %v384, 0
        %v483 = vsel %vm436, %v385, 0
        %vm485 = vcmask 1041408
        %v487 = vsel %vm485, %v424, 0
        %v490 = vsel %vm485, %v425, 0
        %v493 = vsel %vm485, %v426, 0
        %v496 = vsel %vm485, %v427, 0
        %498 = vmatprep.subr.bf16.mxu0 %v417
        %499 = vmatpush1.bf16.msra.mxu0 %v416
        %500 = vmatprep.subr.bf16.mxu0 %v421
        %501 = vmatpush1.bf16.msra.mxu0 %v420
        %502 = vmatprep.subr.bf16.mxu0 %v490
        %503 = vmatpush1.bf16.msra.mxu0 %v487
        %504 = vmatprep.subr.bf16.mxu0 0
        %505 = vmatpush1.bf16.msra.mxu0 0
        %506 = vmatprep.subr.bf16.mxu0 0
        %507 = vmatpush1.bf16.msra.mxu0 0
        %508 = vmatprep.subr.bf16.mxu0 0
        %509 = vmatpush1.bf16.msra.mxu0 0
        %510 = vmatprep.subr.bf16.mxu0 0
        %511 = vmatpush1.bf16.msra.mxu0 0
        %512 = vmatprep.subr.bf16.mxu0 0
        %513 = vmatpush1.bf16.msra.mxu0 0
        %514 = vmatprep.subr.bf16.mxu0 0
        %515 = vmatpush1.bf16.msra.mxu0 0
        %516 = vmatprep.subr.bf16.mxu0 0
        %517 = vmatpush1.bf16.msra.mxu0 0
        %518 = vmatprep.subr.bf16.mxu0 0
        %519 = vmatpush1.bf16.msra.mxu0 0
        %520 = vmatprep.subr.bf16.mxu0 0
        %521 = vmatpush1.bf16.msra.mxu0 0
        %522 = vmatprep.subr.bf16.mxu0 0
        %523 = vmatpush1.bf16.msra.mxu0 0
        %524 = vmatprep.subr.bf16.mxu0 0
        %525 = vmatpush1.bf16.msra.mxu0 0
        %526 = vmatprep.subr.bf16.mxu0 0
        %527 = vmatpush1.bf16.msra.mxu0 0
        %528 = vmatprep.subr.bf16.mxu0 0
        %529 = vmatpush1.bf16.msra.mxu0 0
        %530 = vmatprep.mubr.bf16.mxu0 0
        %531 = vmatmul.mubr.bf16.gmra.mrb[0].mxu0 %v438
        %v532 = vpop.f32.mrb[0].mxu0
        %v533 = vadd.f32 %v289, %v532
        %v534 = vpop.f32.mrb[0].mxu0
        %v535 = vadd.f32 %v293, %v534
        %v536 = vpop.f32.mrb[0].mxu0
        %v537 = vadd.f32 %v289, %v536
        %v538 = vpop.f32.mrb[0].mxu0
        %v539 = vadd.f32 %v293, %v538
        %540 = vmatprep.mubr.bf16.mxu0 0
        %541 = vmatmul.mubr.bf16.gmra.mrb[0].mxu0 %v441
        %v542 = vpop.f32.mrb[0].mxu0
        %v543 = vadd.f32 %v289, %v542
        %v544 = vpop.f32.mrb[0].mxu0
        %v545 = vadd.f32 %v293, %v544
        %v546 = vpop.f32.mrb[0].mxu0
        %v547 = vadd.f32 %v289, %v546
        %v548 = vpop.f32.mrb[0].mxu0
        %v549 = vadd.f32 %v293, %v548
        %550 = vmatprep.mubr.bf16.mxu0 0
        %551 = vmatmul.mubr.bf16.gmra.mrb[0].mxu0 %v444
        %v552 = vpop.f32.mrb[0].mxu0
        %v553 = vadd.f32 %v289, %v552
        %v554 = vpop.f32.mrb[0].mxu0
        %v555 = vadd.f32 %v293, %v554
        %v556 = vpop.f32.mrb[0].mxu0
        %v557 = vadd.f32 %v289, %v556
        %v558 = vpop.f32.mrb[0].mxu0
        %v559 = vadd.f32 %v293, %v558
        %560 = vmatprep.mubr.bf16.mxu0 0
        %561 = vmatmul.mubr.bf16.gmra.mrb[0].mxu0 %v447
        %v562 = vpop.f32.mrb[0].mxu0
        %v563 = vadd.f32 %v289, %v562
        %v564 = vpop.f32.mrb[0].mxu0
        %v565 = vadd.f32 %v293, %v564
        %v566 = vpop.f32.mrb[0].mxu0
        %v567 = vadd.f32 %v289, %v566
        %v568 = vpop.f32.mrb[0].mxu0
        %v569 = vadd.f32 %v293, %v568
        %570 = vmatprep.mubr.bf16.mxu0 0
        %571 = vmatmul.mubr.bf16.gmra.mrb[0].mxu0 %v450
        %v572 = vpop.f32.mrb[0].mxu0
        %v573 = vadd.f32 %v289, %v572
        %v574 = vpop.f32.mrb[0].mxu0
        %v575 = vadd.f32 %v293, %v574
        %v576 = vpop.f32.mrb[0].mxu0
        %v577 = vadd.f32 %v289, %v576
        %v578 = vpop.f32.mrb[0].mxu0
        %v579 = vadd.f32 %v293, %v578
        %580 = vmatprep.mubr.bf16.mxu0 0
        %581 = vmatmul.mubr.bf16.gmra.mrb[0].mxu0 %v453
        %v582 = vpop.f32.mrb[0].mxu0
        %v583 = vadd.f32 %v289, %v582
        %v584 = vpop.f32.mrb[0].mxu0
        %v585 = vadd.f32 %v293, %v584
        %v586 = vpop.f32.mrb[0].mxu0
        %v587 = vadd.f32 %v289, %v586
        %v588 = vpop.f32.mrb[0].mxu0
        %v589 = vadd.f32 %v293, %v588
        %590 = vmatprep.mubr.bf16.mxu0 0
        %591 = vmatmul.mubr.bf16.gmra.mrb[0].mxu0 %v456
        %v592 = vpop.f32.mrb[0].mxu0
        %v593 = vadd.f32 %v289, %v592
        %v594 = vpop.f32.mrb[0].mxu0
        %v595 = vadd.f32 %v293, %v594
        %v596 = vpop.f32.mrb[0].mxu0
        %v597 = vadd.f32 %v289, %v596
        %v598 = vpop.f32.mrb[0].mxu0
        %v599 = vadd.f32 %v293, %v598
        %600 = vmatprep.mubr.bf16.mxu0 0
        %601 = vmatmul.mubr.bf16.gmra.mrb[0].mxu0 %v459
        %v602 = vpop.f32.mrb[0].mxu0
        %v603 = vadd.f32 %v289, %v602
        %v604 = vpop.f32.mrb[0].mxu0
        %v605 = vadd.f32 %v293, %v604
        %v606 = vpop.f32.mrb[0].mxu0
        %v607 = vadd.f32 %v289, %v606
        %v608 = vpop.f32.mrb[0].mxu0
        %v609 = vadd.f32 %v293, %v608
        %610 = vmatprep.mubr.bf16.mxu0 0
        %611 = vmatmul.mubr.bf16.gmra.mrb[0].mxu0 %v462
        %v612 = vpop.f32.mrb[0].mxu0
        %v613 = vadd.f32 %v289, %v612
        %v614 = vpop.f32.mrb[0].mxu0
        %v615 = vadd.f32 %v293, %v614
        %v616 = vpop.f32.mrb[0].mxu0
        %v617 = vadd.f32 %v289, %v616
        %v618 = vpop.f32.mrb[0].mxu0
        %v619 = vadd.f32 %v293, %v618
        %620 = vmatprep.mubr.bf16.mxu0 0
        %621 = vmatmul.mubr.bf16.gmra.mrb[0].mxu0 %v465
        %v622 = vpop.f32.mrb[0].mxu0
        %v623 = vadd.f32 %v289, %v622
        %v624 = vpop.f32.mrb[0].mxu0
        %v625 = vadd.f32 %v293, %v624
        %v626 = vpop.f32.mrb[0].mxu0
        %v627 = vadd.f32 %v289, %v626
        %v628 = vpop.f32.mrb[0].mxu0
        %v629 = vadd.f32 %v293, %v628
        %630 = vmatprep.mubr.bf16.mxu0 0
        %631 = vmatmul.mubr.bf16.gmra.mrb[0].mxu0 %v468
        %v632 = vpop.f32.mrb[0].mxu0
        %v633 = vadd.f32 %v289, %v632
        %v634 = vpop.f32.mrb[0].mxu0
        %v635 = vadd.f32 %v293, %v634
        %v636 = vpop.f32.mrb[0].mxu0
        %v637 = vadd.f32 %v289, %v636
        %v638 = vpop.f32.mrb[0].mxu0
        %v639 = vadd.f32 %v293, %v638
        %640 = vmatprep.mubr.bf16.mxu0 0
        %641 = vmatmul.mubr.bf16.gmra.mrb[0].mxu0 %v471
        %v642 = vpop.f32.mrb[0].mxu0
        %v643 = vadd.f32 %v289, %v642
        %v644 = vpop.f32.mrb[0].mxu0
        %v645 = vadd.f32 %v293, %v644
        %v646 = vpop.f32.mrb[0].mxu0
        %v647 = vadd.f32 %v289, %v646
        %v648 = vpop.f32.mrb[0].mxu0
        %v649 = vadd.f32 %v293, %v648
        %650 = vmatprep.mubr.bf16.mxu0 0
        %651 = vmatmul.mubr.bf16.gmra.mrb[0].mxu0 %v474
        %v652 = vpop.f32.mrb[0].mxu0
        %v653 = vadd.f32 %v289, %v652
        %v654 = vpop.f32.mrb[0].mxu0
        %v655 = vadd.f32 %v293, %v654
        %v656 = vpop.f32.mrb[0].mxu0
        %v657 = vadd.f32 %v289, %v656
        %v658 = vpop.f32.mrb[0].mxu0
        %v659 = vadd.f32 %v293, %v658
        %660 = vmatprep.mubr.bf16.mxu0 0
        %661 = vmatmul.mubr.bf16.gmra.mrb[0].mxu0 %v477
        %v662 = vpop.f32.mrb[0].mxu0
        %v663 = vadd.f32 %v289, %v662
        %v664 = vpop.f32.mrb[0].mxu0
        %v665 = vadd.f32 %v293, %v664
        %v666 = vpop.f32.mrb[0].mxu0
        %v667 = vadd.f32 %v289, %v666
        %v668 = vpop.f32.mrb[0].mxu0
        %v669 = vadd.f32 %v293, %v668
        %670 = vmatprep.mubr.bf16.mxu0 0
        %671 = vmatmul.mubr.bf16.gmra.mrb[0].mxu0 %v480
        %v672 = vpop.f32.mrb[0].mxu0
        %v673 = vadd.f32 %v289, %v672
        %v674 = vpop.f32.mrb[0].mxu0
        %v675 = vadd.f32 %v293, %v674
        %v676 = vpop.f32.mrb[0].mxu0
        %v677 = vadd.f32 %v289, %v676
        %v678 = vpop.f32.mrb[0].mxu0
        %v679 = vadd.f32 %v293, %v678
        %680 = vmatprep.mubr.bf16.mxu0 0
        %681 = vmatmul.mubr.bf16.gmra.mrb[0].mxu0 %v483
        %v682 = vpop.f32.mrb[0].mxu0
        %v683 = vadd.f32 %v289, %v682
        %v684 = vpop.f32.mrb[0].mxu0
        %v685 = vadd.f32 %v293, %v684
        %v686 = vpop.f32.mrb[0].mxu0
        %v687 = vadd.f32 %v289, %v686
        %v688 = vpop.f32.mrb[0].mxu0
        %v689 = vadd.f32 %v293, %v688
        %690 = vdwg.mxu0
        %691 = vmatprep.subr.bf16.mxu0 %v419
        %692 = vmatpush1.bf16.msra.mxu0 %v418
        %693 = vmatprep.subr.bf16.mxu0 %v423
        %694 = vmatpush1.bf16.msra.mxu0 %v422
        %695 = vmatprep.subr.bf16.mxu0 %v496
        %696 = vmatpush1.bf16.msra.mxu0 %v493
        %697 = vmatprep.subr.bf16.mxu0 0
        %698 = vmatpush1.bf16.msra.mxu0 0
        %699 = vmatprep.subr.bf16.mxu0 0
        %700 = vmatpush1.bf16.msra.mxu0 0
        %701 = vmatprep.subr.bf16.mxu0 0
        %702 = vmatpush1.bf16.msra.mxu0 0
        %703 = vmatprep.subr.bf16.mxu0 0
        %704 = vmatpush1.bf16.msra.mxu0 0
        %705 = vmatprep.subr.bf16.mxu0 0
        %706 = vmatpush1.bf16.msra.mxu0 0
        %707 = vmatprep.subr.bf16.mxu0 0
        %708 = vmatpush1.bf16.msra.mxu0 0
        %709 = vmatprep.subr.bf16.mxu0 0
        %710 = vmatpush1.bf16.msra.mxu0 0
        %711 = vmatprep.subr.bf16.mxu0 0
        %712 = vmatpush1.bf16.msra.mxu0 0
        %713 = vmatprep.subr.bf16.mxu0 0
        %714 = vmatpush1.bf16.msra.mxu0 0
        %715 = vmatprep.subr.bf16.mxu0 0
        %716 = vmatpush1.bf16.msra.mxu0 0
        %717 = vmatprep.subr.bf16.mxu0 0
        %718 = vmatpush1.bf16.msra.mxu0 0
        %719 = vmatprep.subr.bf16.mxu0 0
        %720 = vmatpush1.bf16.msra.mxu0 0
        %721 = vmatprep.subr.bf16.mxu0 0
        %722 = vmatpush1.bf16.msra.mxu0 0
        %723 = vmatprep.mubr.bf16.mxu0 0
        %724 = vmatmul.mubr.bf16.gmra.mrb[0].mxu0 %v438
        %v725 = vpop.f32.mrb[0].mxu0
        %v726 = vadd.f32 %v297, %v725
        %v727 = vpop.f32.mrb[0].mxu0
        %v728 = vadd.f32 %v301, %v727
        %v729 = vpop.f32.mrb[0].mxu0
        %v730 = vadd.f32 %v297, %v729
        %v731 = vpop.f32.mrb[0].mxu0
        %v732 = vadd.f32 %v301, %v731
        %733 = vmatprep.mubr.bf16.mxu0 0
        %734 = vmatmul.mubr.bf16.gmra.mrb[0].mxu0 %v441
        %v735 = vpop.f32.mrb[0].mxu0
        %v736 = vadd.f32 %v297, %v735
        %v737 = vpop.f32.mrb[0].mxu0
        %v738 = vadd.f32 %v301, %v737
        %v739 = vpop.f32.mrb[0].mxu0
        %v740 = vadd.f32 %v297, %v739
        %v741 = vpop.f32.mrb[0].mxu0
        %v742 = vadd.f32 %v301, %v741
        %743 = vmatprep.mubr.bf16.mxu0 0
        %744 = vmatmul.mubr.bf16.gmra.mrb[0].mxu0 %v444
        %v745 = vpop.f32.mrb[0].mxu0
        %v746 = vadd.f32 %v297, %v745
        %v747 = vpop.f32.mrb[0].mxu0
        %v748 = vadd.f32 %v301, %v747
        %v749 = vpop.f32.mrb[0].mxu0
        %v750 = vadd.f32 %v297, %v749
        %v751 = vpop.f32.mrb[0].mxu0
        %v752 = vadd.f32 %v301, %v751
        %753 = vmatprep.mubr.bf16.mxu0 0
        %754 = vmatmul.mubr.bf16.gmra.mrb[0].mxu0 %v447
        %v755 = vpop.f32.mrb[0].mxu0
        %v756 = vadd.f32 %v297, %v755
        %v757 = vpop.f32.mrb[0].mxu0
        %v758 = vadd.f32 %v301, %v757
        %v759 = vpop.f32.mrb[0].mxu0
        %v760 = vadd.f32 %v297, %v759
        %v761 = vpop.f32.mrb[0].mxu0
        %v762 = vadd.f32 %v301, %v761
        %763 = vmatprep.mubr.bf16.mxu0 0
        %764 = vmatmul.mubr.bf16.gmra.mrb[0].mxu0 %v450
        %v765 = vpop.f32.mrb[0].mxu0
        %v766 = vadd.f32 %v297, %v765
        %v767 = vpop.f32.mrb[0].mxu0
        %v768 = vadd.f32 %v301, %v767
        %v769 = vpop.f32.mrb[0].mxu0
        %v770 = vadd.f32 %v297, %v769
        %v771 = vpop.f32.mrb[0].mxu0
        %v772 = vadd.f32 %v301, %v771
        %773 = vmatprep.mubr.bf16.mxu0 0
        %774 = vmatmul.mubr.bf16.gmra.mrb[0].mxu0 %v453
        %v775 = vpop.f32.mrb[0].mxu0
        %v776 = vadd.f32 %v297, %v775
        %v777 = vpop.f32.mrb[0].mxu0
        %v778 = vadd.f32 %v301, %v777
        %v779 = vpop.f32.mrb[0].mxu0
        %v780 = vadd.f32 %v297, %v779
        %v781 = vpop.f32.mrb[0].mxu0
        %v782 = vadd.f32 %v301, %v781
        %783 = vmatprep.mubr.bf16.mxu0 0
        %784 = vmatmul.mubr.bf16.gmra.mrb[0].mxu0 %v456
        %v785 = vpop.f32.mrb[0].mxu0
        %v786 = vadd.f32 %v297, %v785
        %v787 = vpop.f32.mrb[0].mxu0
        %v788 = vadd.f32 %v301, %v787
        %v789 = vpop.f32.mrb[0].mxu0
        %v790 = vadd.f32 %v297, %v789
        %v791 = vpop.f32.mrb[0].mxu0
        %v792 = vadd.f32 %v301, %v791
        %793 = vmatprep.mubr.bf16.mxu0 0
        %794 = vmatmul.mubr.bf16.gmra.mrb[0].mxu0 %v459
        %v795 = vpop.f32.mrb[0].mxu0
        %v796 = vadd.f32 %v297, %v795
        %v797 = vpop.f32.mrb[0].mxu0
        %v798 = vadd.f32 %v301, %v797
        %v799 = vpop.f32.mrb[0].mxu0
        %v800 = vadd.f32 %v297, %v799
        %v801 = vpop.f32.mrb[0].mxu0
        %v802 = vadd.f32 %v301, %v801
        %803 = vmatprep.mubr.bf16.mxu0 0
        %804 = vmatmul.mubr.bf16.gmra.mrb[0].mxu0 %v462
        %v805 = vpop.f32.mrb[0].mxu0
        %v806 = vadd.f32 %v297, %v805
        %v807 = vpop.f32.mrb[0].mxu0
        %v808 = vadd.f32 %v301, %v807
        %v809 = vpop.f32.mrb[0].mxu0
        %v810 = vadd.f32 %v297, %v809
        %v811 = vpop.f32.mrb[0].mxu0
        %v812 = vadd.f32 %v301, %v811
        %813 = vmatprep.mubr.bf16.mxu0 0
        %814 = vmatmul.mubr.bf16.gmra.mrb[0].mxu0 %v465
        %v815 = vpop.f32.mrb[0].mxu0
        %v816 = vadd.f32 %v297, %v815
        %v817 = vpop.f32.mrb[0].mxu0
        %v818 = vadd.f32 %v301, %v817
        %v819 = vpop.f32.mrb[0].mxu0
        %v820 = vadd.f32 %v297, %v819
        %v821 = vpop.f32.mrb[0].mxu0
        %v822 = vadd.f32 %v301, %v821
        %823 = vmatprep.mubr.bf16.mxu0 0
        %824 = vmatmul.mubr.bf16.gmra.mrb[0].mxu0 %v468
        %v825 = vpop.f32.mrb[0].mxu0
        %v826 = vadd.f32 %v297, %v825
        %v827 = vpop.f32.mrb[0].mxu0
        %v828 = vadd.f32 %v301, %v827
        %v829 = vpop.f32.mrb[0].mxu0
        %v830 = vadd.f32 %v297, %v829
        %v831 = vpop.f32.mrb[0].mxu0
        %v832 = vadd.f32 %v301, %v831
        %833 = vmatprep.mubr.bf16.mxu0 0
        %834 = vmatmul.mubr.bf16.gmra.mrb[0].mxu0 %v471
        %v835 = vpop.f32.mrb[0].mxu0
        %v836 = vadd.f32 %v297, %v835
        %v837 = vpop.f32.mrb[0].mxu0
        %v838 = vadd.f32 %v301, %v837
        %v839 = vpop.f32.mrb[0].mxu0
        %v840 = vadd.f32 %v297, %v839
        %v841 = vpop.f32.mrb[0].mxu0
        %v842 = vadd.f32 %v301, %v841
        %843 = vmatprep.mubr.bf16.mxu0 0
        %844 = vmatmul.mubr.bf16.gmra.mrb[0].mxu0 %v474
        %v845 = vpop.f32.mrb[0].mxu0
        %v846 = vadd.f32 %v297, %v845
        %v847 = vpop.f32.mrb[0].mxu0
        %v848 = vadd.f32 %v301, %v847
        %v849 = vpop.f32.mrb[0].mxu0
        %v850 = vadd.f32 %v297, %v849
        %v851 = vpop.f32.mrb[0].mxu0
        %v852 = vadd.f32 %v301, %v851
        %853 = vmatprep.mubr.bf16.mxu0 0
        %854 = vmatmul.mubr.bf16.gmra.mrb[0].mxu0 %v477
        %v855 = vpop.f32.mrb[0].mxu0
        %v856 = vadd.f32 %v297, %v855
        %v857 = vpop.f32.mrb[0].mxu0
        %v858 = vadd.f32 %v301, %v857
        %v859 = vpop.f32.mrb[0].mxu0
        %v860 = vadd.f32 %v297, %v859
        %v861 = vpop.f32.mrb[0].mxu0
        %v862 = vadd.f32 %v301, %v861
        %863 = vmatprep.mubr.bf16.mxu0 0
        %864 = vmatmul.mubr.bf16.gmra.mrb[0].mxu0 %v480
        %v865 = vpop.f32.mrb[0].mxu0
        %v866 = vadd.f32 %v297, %v865
        %v867 = vpop.f32.mrb[0].mxu0
        %v868 = vadd.f32 %v301, %v867
        %v869 = vpop.f32.mrb[0].mxu0
        %v870 = vadd.f32 %v297, %v869
        %v871 = vpop.f32.mrb[0].mxu0
        %v872 = vadd.f32 %v301, %v871
        %873 = vmatprep.mubr.bf16.mxu0 0
        %874 = vmatmul.mubr.bf16.gmra.mrb[0].mxu0 %v483
        %v875 = vpop.f32.mrb[0].mxu0
        %v876 = vadd.f32 %v297, %v875
        %v877 = vpop.f32.mrb[0].mxu0
        %v878 = vadd.f32 %v301, %v877
        %v879 = vpop.f32.mrb[0].mxu0
        %v880 = vadd.f32 %v297, %v879
        %v881 = vpop.f32.mrb[0].mxu0
        %v882 = vadd.f32 %v301, %v881
        %883 = vdwg.mxu0
        %v884 = vmax.f32 %v533, 0.0
        %v885 = vmax.f32 %v535, 0.0
        %v886 = vmax.f32 %v726, 0.0
        %v887 = vmax.f32 %v728, 0.0
        %v888 = vmax.f32 %v537, 0.0
        %v889 = vmax.f32 %v539, 0.0
        %v890 = vmax.f32 %v730, 0.0
        %v891 = vmax.f32 %v732, 0.0
        %v892 = vmax.f32 %v543, 0.0
        %v893 = vmax.f32 %v545, 0.0
        %v894 = vmax.f32 %v736, 0.0
        %v895 = vmax.f32 %v738, 0.0
        %v896 = vmax.f32 %v547, 0.0
        %v897 = vmax.f32 %v549, 0.0
        %v898 = vmax.f32 %v740, 0.0
        %v899 = vmax.f32 %v742, 0.0
        %v900 = vmax.f32 %v553, 0.0
        %v901 = vmax.f32 %v555, 0.0
        %v902 = vmax.f32 %v746, 0.0
        %v903 = vmax.f32 %v748, 0.0
        %v904 = vmax.f32 %v557, 0.0
        %v905 = vmax.f32 %v559, 0.0
        %v906 = vmax.f32 %v750, 0.0
        %v907 = vmax.f32 %v752, 0.0
        %v908 = vmax.f32 %v563, 0.0
        %v909 = vmax.f32 %v565, 0.0
        %v910 = vmax.f32 %v756, 0.0
        %v911 = vmax.f32 %v758, 0.0
        %v912 = vmax.f32 %v567, 0.0
        %v913 = vmax.f32 %v569, 0.0
        %v914 = vmax.f32 %v760, 0.0
        %v915 = vmax.f32 %v762, 0.0
        %v916 = vmax.f32 %v573, 0.0
        %v917 = vmax.f32 %v575, 0.0
        %v918 = vmax.f32 %v766, 0.0
        %v919 = vmax.f32 %v768, 0.0
        %v920 = vmax.f32 %v577, 0.0
        %v921 = vmax.f32 %v579, 0.0
        %v922 = vmax.f32 %v770, 0.0
        %v923 = vmax.f32 %v772, 0.0
        %v924 = vmax.f32 %v583, 0.0
        %v925 = vmax.f32 %v585, 0.0
        %v926 = vmax.f32 %v776, 0.0
        %v927 = vmax.f32 %v778, 0.0
        %v928 = vmax.f32 %v587, 0.0
        %v929 = vmax.f32 %v589, 0.0
        %v930 = vmax.f32 %v780, 0.0
        %v931 = vmax.f32 %v782, 0.0
        %v932 = vmax.f32 %v593, 0.0
        %v933 = vmax.f32 %v595, 0.0
        %v934 = vmax.f32 %v786, 0.0
        %v935 = vmax.f32 %v788, 0.0
        %v936 = vmax.f32 %v597, 0.0
        %v937 = vmax.f32 %v599, 0.0
        %v938 = vmax.f32 %v790, 0.0
        %v939 = vmax.f32 %v792, 0.0
        %v940 = vmax.f32 %v603, 0.0
        %v941 = vmax.f32 %v605, 0.0
        %v942 = vmax.f32 %v796, 0.0
        %v943 = vmax.f32 %v798, 0.0
        %v944 = vmax.f32 %v607, 0.0
        %v945 = vmax.f32 %v609, 0.0
        %v946 = vmax.f32 %v800, 0.0
        %v947 = vmax.f32 %v802, 0.0
        %v948 = vmax.f32 %v613, 0.0
        %v949 = vmax.f32 %v615, 0.0
        %v950 = vmax.f32 %v806, 0.0
        %v951 = vmax.f32 %v808, 0.0
        %v952 = vmax.f32 %v617, 0.0
        %v953 = vmax.f32 %v619, 0.0
        %v954 = vmax.f32 %v810, 0.0
        %v955 = vmax.f32 %v812, 0.0
        %v956 = vmax.f32 %v623, 0.0
        %v957 = vmax.f32 %v625, 0.0
        %v958 = vmax.f32 %v816, 0.0
        %v959 = vmax.f32 %v818, 0.0
        %v960 = vmax.f32 %v627, 0.0
        %v961 = vmax.f32 %v629, 0.0
        %v962 = vmax.f32 %v820, 0.0
        %v963 = vmax.f32 %v822, 0.0
        %v964 = vmax.f32 %v633, 0.0
        %v965 = vmax.f32 %v635, 0.0
        %v966 = vmax.f32 %v826, 0.0
        %v967 = vmax.f32 %v828, 0.0
        %v968 = vmax.f32 %v637, 0.0
        %v969 = vmax.f32 %v639, 0.0
        %v970 = vmax.f32 %v830, 0.0
        %v971 = vmax.f32 %v832, 0.0
        %v972 = vmax.f32 %v643, 0.0
        %v973 = vmax.f32 %v645, 0.0
        %v974 = vmax.f32 %v836, 0.0
        %v975 = vmax.f32 %v838, 0.0
        %v976 = vmax.f32 %v647, 0.0
        %v977 = vmax.f32 %v649, 0.0
        %v978 = vmax.f32 %v840, 0.0
        %v979 = vmax.f32 %v842, 0.0
        %v980 = vmax.f32 %v653, 0.0
        %v981 = vmax.f32 %v655, 0.0
        %v982 = vmax.f32 %v846, 0.0
        %v983 = vmax.f32 %v848, 0.0
        %v984 = vmax.f32 %v657, 0.0
        %v985 = vmax.f32 %v659, 0.0
        %v986 = vmax.f32 %v850, 0.0
        %v987 = vmax.f32 %v852, 0.0
        %v988 = vmax.f32 %v663, 0.0
        %v989 = vmax.f32 %v665, 0.0
        %v990 = vmax.f32 %v856, 0.0
        %v991 = vmax.f32 %v858, 0.0
        %v992 = vmax.f32 %v667, 0.0
        %v993 = vmax.f32 %v669, 0.0
        %v994 = vmax.f32 %v860, 0.0
        %v995 = vmax.f32 %v862, 0.0
        %v996 = vmax.f32 %v673, 0.0
        %v997 = vmax.f32 %v675, 0.0
        %v998 = vmax.f32 %v866, 0.0
        %v999 = vmax.f32 %v868, 0.0
        %v1000 = vmax.f32 %v677, 0.0
        %v1001 = vmax.f32 %v679, 0.0
        %v1002 = vmax.f32 %v870, 0.0
        %v1003 = vmax.f32 %v872, 0.0
        %v1004 = vmax.f32 %v683, 0.0
        %v1005 = vmax.f32 %v685, 0.0
        %v1006 = vmax.f32 %v876, 0.0
        %v1007 = vmax.f32 %v878, 0.0
        %v1008 = vmax.f32 %v687, 0.0
        %v1009 = vmax.f32 %v689, 0.0
        %v1010 = vmax.f32 %v880, 0.0
        %v1011 = vmax.f32 %v882, 0.0
        %v1012 = vpack.c.bf16 %v888, %v884
        %v1013 = vpack.c.bf16 %v889, %v885
        %v1014 = vpack.c.bf16 %v890, %v886
        %v1015 = vpack.c.bf16 %v891, %v887
        %v1016 = vpack.c.bf16 %v896, %v892
        %v1017 = vpack.c.bf16 %v897, %v893
        %v1018 = vpack.c.bf16 %v898, %v894
        %v1019 = vpack.c.bf16 %v899, %v895
        %v1020 = vpack.c.bf16 %v904, %v900
        %v1021 = vpack.c.bf16 %v905, %v901
        %v1022 = vpack.c.bf16 %v906, %v902
        %v1023 = vpack.c.bf16 %v907, %v903
        %v1024 = vpack.c.bf16 %v912, %v908
        %v1025 = vpack.c.bf16 %v913, %v909
        %v1026 = vpack.c.bf16 %v914, %v910
        %v1027 = vpack.c.bf16 %v915, %v911
        %v1028 = vpack.c.bf16 %v920, %v916
        %v1029 = vpack.c.bf16 %v921, %v917
        %v1030 = vpack.c.bf16 %v922, %v918
        %v1031 = vpack.c.bf16 %v923, %v919
        %v1032 = vpack.c.bf16 %v928, %v924
        %v1033 = vpack.c.bf16 %v929, %v925
        %v1034 = vpack.c.bf16 %v930, %v926
        %v1035 = vpack.c.bf16 %v931, %v927
        %v1036 = vpack.c.bf16 %v936, %v932
        %v1037 = vpack.c.bf16 %v937, %v933
        %v1038 = vpack.c.bf16 %v938, %v934
        %v1039 = vpack.c.bf16 %v939, %v935
        %v1040 = vpack.c.bf16 %v944, %v940
        %v1041 = vpack.c.bf16 %v945, %v941
        %v1042 = vpack.c.bf16 %v946, %v942
        %v1043 = vpack.c.bf16 %v947, %v943
        %v1044 = vpack.c.bf16 %v952, %v948
        %v1045 = vpack.c.bf16 %v953, %v949
        %v1046 = vpack.c.bf16 %v954, %v950
        %v1047 = vpack.c.bf16 %v955, %v951
        %v1048 = vpack.c.bf16 %v960, %v956
        %v1049 = vpack.c.bf16 %v961, %v957
        %v1050 = vpack.c.bf16 %v962, %v958
        %v1051 = vpack.c.bf16 %v963, %v959
        %v1052 = vpack.c.bf16 %v968, %v964
        %v1053 = vpack.c.bf16 %v969, %v965
        %v1054 = vpack.c.bf16 %v970, %v966
        %v1055 = vpack.c.bf16 %v971, %v967
        %v1056 = vpack.c.bf16 %v976, %v972
        %v1057 = vpack.c.bf16 %v977, %v973
        %v1058 = vpack.c.bf16 %v978, %v974
        %v1059 = vpack.c.bf16 %v979, %v975
        %v1060 = vpack.c.bf16 %v984, %v980
        %v1061 = vpack.c.bf16 %v985, %v981
        %v1062 = vpack.c.bf16 %v986, %v982
        %v1063 = vpack.c.bf16 %v987, %v983
        %v1064 = vpack.c.bf16 %v992, %v988
        %v1065 = vpack.c.bf16 %v993, %v989
        %v1066 = vpack.c.bf16 %v994, %v990
        %v1067 = vpack.c.bf16 %v995, %v991
        %v1068 = vpack.c.bf16 %v1000, %v996
        %v1069 = vpack.c.bf16 %v1001, %v997
        %v1070 = vpack.c.bf16 %v1002, %v998
        %v1071 = vpack.c.bf16 %v1003, %v999
        %v1072 = vpack.c.bf16 %v1008, %v1004
        %v1073 = vpack.c.bf16 %v1009, %v1005
        %v1074 = vpack.c.bf16 %v1010, %v1006
        %v1075 = vpack.c.bf16 %v1011, %v1007
        %1076 = vst [vmem:[#allocation2] sm:$0xff] %v1012
        %1077 = vst [vmem:[#allocation2 + $0x8] sm:$0xff] %v1013
        %1078 = vst [vmem:[#allocation2 + $0x10] sm:$0xff] %v1014
        %1079 = vst [vmem:[#allocation2 + $0x18] sm:$0xff] %v1015
        %1080 = vst [vmem:[#allocation2 + $0x20] sm:$0xff] %v1016
        %1081 = vst [vmem:[#allocation2 + $0x28] sm:$0xff] %v1017
        %1082 = vst [vmem:[#allocation2 + $0x30] sm:$0xff] %v1018
        %1083 = vst [vmem:[#allocation2 + $0x38] sm:$0xff] %v1019
        %1084 = vst [vmem:[#allocation2 + $0x40] sm:$0xff] %v1020
        %1085 = vst [vmem:[#allocation2 + $0x48] sm:$0xff] %v1021
        %1086 = vst [vmem:[#allocation2 + $0x50] sm:$0xff] %v1022
        %1087 = vst [vmem:[#allocation2 + $0x58] sm:$0xff] %v1023
        %1088 = vst [vmem:[#allocation2 + $0x60] sm:$0xff] %v1024
        %1089 = vst [vmem:[#allocation2 + $0x68] sm:$0xff] %v1025
        %1090 = vst [vmem:[#allocation2 + $0x70] sm:$0xff] %v1026
        %1091 = vst [vmem:[#allocation2 + $0x78] sm:$0xff] %v1027
        %1092 = vst [vmem:[#allocation2 + $0x80] sm:$0xff] %v1028
        %1093 = vst [vmem:[#allocation2 + $0x88] sm:$0xff] %v1029
        %1094 = vst [vmem:[#allocation2 + $0x90] sm:$0xff] %v1030
        %1095 = vst [vmem:[#allocation2 + $0x98] sm:$0xff] %v1031
        %1096 = vst [vmem:[#allocation2 + $0xa0] sm:$0xff] %v1032
        %1097 = vst [vmem:[#allocation2 + $0xa8] sm:$0xff] %v1033
        %1098 = vst [vmem:[#allocation2 + $0xb0] sm:$0xff] %v1034
        %1099 = vst [vmem:[#allocation2 + $0xb8] sm:$0xff] %v1035
        %1100 = vst [vmem:[#allocation2 + $0xc0] sm:$0xff] %v1036
        %1101 = vst [vmem:[#allocation2 + $0xc8] sm:$0xff] %v1037
        %1102 = vst [vmem:[#allocation2 + $0xd0] sm:$0xff] %v1038
        %1103 = vst [vmem:[#allocation2 + $0xd8] sm:$0xff] %v1039
        %1104 = vst [vmem:[#allocation2 + $0xe0] sm:$0xff] %v1040
        %1105 = vst [vmem:[#allocation2 + $0xe8] sm:$0xff] %v1041
        %1106 = vst [vmem:[#allocation2 + $0xf0] sm:$0xff] %v1042
        %1107 = vst [vmem:[#allocation2 + $0xf8] sm:$0xff] %v1043
        %1108 = vst [vmem:[#allocation2 + $0x100] sm:$0xff] %v1044
        %1109 = vst [vmem:[#allocation2 + $0x108] sm:$0xff] %v1045
        %1110 = vst [vmem:[#allocation2 + $0x110] sm:$0xff] %v1046
        %1111 = vst [vmem:[#allocation2 + $0x118] sm:$0xff] %v1047
        %1112 = vst [vmem:[#allocation2 + $0x120] sm:$0xff] %v1048
        %1113 = vst [vmem:[#allocation2 + $0x128] sm:$0xff] %v1049
        %1114 = vst [vmem:[#allocation2 + $0x130] sm:$0xff] %v1050
        %1115 = vst [vmem:[#allocation2 + $0x138] sm:$0xff] %v1051
        %1116 = vst [vmem:[#allocation2 + $0x140] sm:$0xff] %v1052
        %1117 = vst [vmem:[#allocation2 + $0x148] sm:$0xff] %v1053
        %1118 = vst [vmem:[#allocation2 + $0x150] sm:$0xff] %v1054
        %1119 = vst [vmem:[#allocation2 + $0x158] sm:$0xff] %v1055
        %1120 = vst [vmem:[#allocation2 + $0x160] sm:$0xff] %v1056
        %1121 = vst [vmem:[#allocation2 + $0x168] sm:$0xff] %v1057
        %1122 = vst [vmem:[#allocation2 + $0x170] sm:$0xff] %v1058
        %1123 = vst [vmem:[#allocation2 + $0x178] sm:$0xff] %v1059
        %1124 = vst [vmem:[#allocation2 + $0x180] sm:$0xff] %v1060
        %1125 = vst [vmem:[#allocation2 + $0x188] sm:$0xff] %v1061
        %1126 = vst [vmem:[#allocation2 + $0x190] sm:$0xff] %v1062
        %1127 = vst [vmem:[#allocation2 + $0x198] sm:$0xff] %v1063
        %1128 = vst [vmem:[#allocation2 + $0x1a0] sm:$0xff] %v1064
        %1129 = vst [vmem:[#allocation2 + $0x1a8] sm:$0xff] %v1065
        %1130 = vst [vmem:[#allocation2 + $0x1b0] sm:$0xff] %v1066
        %1131 = vst [vmem:[#allocation2 + $0x1b8] sm:$0xff] %v1067
        %1132 = vst [vmem:[#allocation2 + $0x1c0] sm:$0xff] %v1068
        %1133 = vst [vmem:[#allocation2 + $0x1c8] sm:$0xff] %v1069
        %1134 = vst [vmem:[#allocation2 + $0x1d0] sm:$0xff] %v1070
        %1135 = vst [vmem:[#allocation2 + $0x1d8] sm:$0xff] %v1071
        %1136 = vst [vmem:[#allocation2 + $0x1e0] sm:$0xff] %v1072
        %1137 = vst [vmem:[#allocation2 + $0x1e8] sm:$0xff] %v1073
        %1138 = vst [vmem:[#allocation2 + $0x1f0] sm:$0xff] %v1074
        %1139 = vst [vmem:[#allocation2 + $0x1f8] sm:$0xff] %v1075
        %v1140 = vld [vmem:[#allocation2] sm:$0xff]
        %v1141 = vld [vmem:[#allocation2 + $0x8] sm:$0xff]
        %v1142 = vld [vmem:[#allocation2 + $0x10] sm:$0xff]
        %v1143 = vld [vmem:[#allocation2 + $0x18] sm:$0xff]
        %v1144 = vld [vmem:[#allocation2 + $0x20] sm:$0xff]
        %v1145 = vld [vmem:[#allocation2 + $0x28] sm:$0xff]
        %v1146 = vld [vmem:[#allocation2 + $0x30] sm:$0xff]
        %v1147 = vld [vmem:[#allocation2 + $0x38] sm:$0xff]
        %v1148 = vld [vmem:[#allocation2 + $0x40] sm:$0xff]
        %v1149 = vld [vmem:[#allocation2 + $0x48] sm:$0xff]
        %v1150 = vld [vmem:[#allocation2 + $0x50] sm:$0xff]
        %v1151 = vld [vmem:[#allocation2 + $0x58] sm:$0xff]
        %v1152 = vld [vmem:[#allocation2 + $0x60] sm:$0xff]
        %v1153 = vld [vmem:[#allocation2 + $0x68] sm:$0xff]
        %v1154 = vld [vmem:[#allocation2 + $0x70] sm:$0xff]
        %v1155 = vld [vmem:[#allocation2 + $0x78] sm:$0xff]
        %v1156 = vld [vmem:[#allocation2 + $0x80] sm:$0xff]
        %v1157 = vld [vmem:[#allocation2 + $0x88] sm:$0xff]
        %v1158 = vld [vmem:[#allocation2 + $0x90] sm:$0xff]
        %v1159 = vld [vmem:[#allocation2 + $0x98] sm:$0xff]
        %v1160 = vld [vmem:[#allocation2 + $0xa0] sm:$0xff]
        %v1161 = vld [vmem:[#allocation2 + $0xa8] sm:$0xff]
        %v1162 = vld [vmem:[#allocation2 + $0xb0] sm:$0xff]
        %v1163 = vld [vmem:[#allocation2 + $0xb8] sm:$0xff]
        %v1164 = vld [vmem:[#allocation2 + $0xc0] sm:$0xff]
        %v1165 = vld [vmem:[#allocation2 + $0xc8] sm:$0xff]
        %v1166 = vld [vmem:[#allocation2 + $0xd0] sm:$0xff]
        %v1167 = vld [vmem:[#allocation2 + $0xd8] sm:$0xff]
        %v1168 = vld [vmem:[#allocation2 + $0xe0] sm:$0xff]
        %v1169 = vld [vmem:[#allocation2 + $0xe8] sm:$0xff]
        %v1170 = vld [vmem:[#allocation2 + $0xf0] sm:$0xff]
        %v1171 = vld [vmem:[#allocation2 + $0xf8] sm:$0xff]
        %v1172 = vld [vmem:[#allocation2 + $0x100] sm:$0xff]
        %v1173 = vld [vmem:[#allocation2 + $0x108] sm:$0xff]
        %v1174 = vld [vmem:[#allocation2 + $0x110] sm:$0xff]
        %v1175 = vld [vmem:[#allocation2 + $0x118] sm:$0xff]
        %v1176 = vld [vmem:[#allocation2 + $0x120] sm:$0xff]
        %v1177 = vld [vmem:[#allocation2 + $0x128] sm:$0xff]
        %v1178 = vld [vmem:[#allocation2 + $0x130] sm:$0xff]
        %v1179 = vld [vmem:[#allocation2 + $0x138] sm:$0xff]
        %v1180 = vld [vmem:[#allocation2 + $0x140] sm:$0xff]
        %v1181 = vld [vmem:[#allocation2 + $0x148] sm:$0xff]
        %v1182 = vld [vmem:[#allocation2 + $0x150] sm:$0xff]
        %v1183 = vld [vmem:[#allocation2 + $0x158] sm:$0xff]
        %v1184 = vld [vmem:[#allocation2 + $0x160] sm:$0xff]
        %v1185 = vld [vmem:[#allocation2 + $0x168] sm:$0xff]
        %v1186 = vld [vmem:[#allocation2 + $0x170] sm:$0xff]
        %v1187 = vld [vmem:[#allocation2 + $0x178] sm:$0xff]
        %v1188 = vld [vmem:[#allocation2 + $0x180] sm:$0xff]
        %v1189 = vld [vmem:[#allocation2 + $0x188] sm:$0xff]
        %v1190 = vld [vmem:[#allocation2 + $0x190] sm:$0xff]
        %v1191 = vld [vmem:[#allocation2 + $0x198] sm:$0xff]
        %v1192 = vld [vmem:[#allocation2 + $0x1a0] sm:$0xff]
        %v1193 = vld [vmem:[#allocation2 + $0x1a8] sm:$0xff]
        %v1194 = vld [vmem:[#allocation2 + $0x1b0] sm:$0xff]
        %v1195 = vld [vmem:[#allocation2 + $0x1b8] sm:$0xff]
        %v1196 = vld [vmem:[#allocation2 + $0x1c0] sm:$0xff]
        %v1197 = vld [vmem:[#allocation2 + $0x1c8] sm:$0xff]
        %v1198 = vld [vmem:[#allocation2 + $0x1d0] sm:$0xff]
        %v1199 = vld [vmem:[#allocation2 + $0x1d8] sm:$0xff]
        %v1200 = vld [vmem:[#allocation2 + $0x1e0] sm:$0xff]
        %v1201 = vld [vmem:[#allocation2 + $0x1e8] sm:$0xff]
        %v1202 = vld [vmem:[#allocation2 + $0x1f0] sm:$0xff]
        %v1203 = vld [vmem:[#allocation2 + $0x1f8] sm:$0xff]
        %v1204 = vld [vmem:[#allocation3] sm:$0xff]
        %v1205 = vld [vmem:[#allocation3 + $0x8] sm:$0xff]
        %v1206 = vld [vmem:[#allocation3 + $0x10] sm:$0xff]
        %v1207 = vld [vmem:[#allocation3 + $0x18] sm:$0xff]
        %v1208 = vld [vmem:[#allocation3 + $0x20] sm:$0xff]
        %v1209 = vld [vmem:[#allocation3 + $0x28] sm:$0xff]
        %v1210 = vld [vmem:[#allocation3 + $0x30] sm:$0xff]
        %v1211 = vld [vmem:[#allocation3 + $0x38] sm:$0xff]
        %v1212 = vld [vmem:[#allocation3 + $0x40] sm:$0xff]
        %v1213 = vld [vmem:[#allocation3 + $0x48] sm:$0xff]
        %v1214 = vld [vmem:[#allocation3 + $0x50] sm:$0xff]
        %v1215 = vld [vmem:[#allocation3 + $0x58] sm:$0xff]
        %v1216 = vld [vmem:[#allocation3 + $0x60] sm:$0xff]
        %v1217 = vld [vmem:[#allocation3 + $0x68] sm:$0xff]
        %v1218 = vld [vmem:[#allocation3 + $0x70] sm:$0xff]
        %v1219 = vld [vmem:[#allocation3 + $0x78] sm:$0xff]
        %v1220 = vld [vmem:[#allocation3 + $0x80] sm:$0xff]
        %v1221 = vld [vmem:[#allocation3 + $0x88] sm:$0xff]
        %v1222 = vld [vmem:[#allocation3 + $0x90] sm:$0xff]
        %v1223 = vld [vmem:[#allocation3 + $0x98] sm:$0xff]
        %v1224 = vld [vmem:[#allocation3 + $0xa0] sm:$0xff]
        %v1225 = vld [vmem:[#allocation3 + $0xa8] sm:$0xff]
        %v1226 = vld [vmem:[#allocation3 + $0xb0] sm:$0xff]
        %v1227 = vld [vmem:[#allocation3 + $0xb8] sm:$0xff]
        %v1228 = vld [vmem:[#allocation3 + $0xc0] sm:$0xff]
        %v1229 = vld [vmem:[#allocation3 + $0xc8] sm:$0xff]
        %v1230 = vld [vmem:[#allocation3 + $0xd0] sm:$0xff]
        %v1231 = vld [vmem:[#allocation3 + $0xd8] sm:$0xff]
        %v1232 = vld [vmem:[#allocation3 + $0xe0] sm:$0xff]
        %v1233 = vld [vmem:[#allocation3 + $0xe8] sm:$0xff]
        %v1234 = vld [vmem:[#allocation3 + $0xf0] sm:$0xff]
        %v1235 = vld [vmem:[#allocation3 + $0xf8] sm:$0xff]
        %v1236 = vld [vmem:[#allocation3 + $0x100] sm:$0xff]
        %v1237 = vld [vmem:[#allocation3 + $0x108] sm:$0xff]
        %v1238 = vld [vmem:[#allocation3 + $0x110] sm:$0xff]
        %v1239 = vld [vmem:[#allocation3 + $0x118] sm:$0xff]
        %v1240 = vld [vmem:[#allocation3 + $0x120] sm:$0xff]
        %v1241 = vld [vmem:[#allocation3 + $0x128] sm:$0xff]
        %v1242 = vld [vmem:[#allocation3 + $0x130] sm:$0xff]
        %v1243 = vld [vmem:[#allocation3 + $0x138] sm:$0xff]
        %v1244 = vld [vmem:[#allocation3 + $0x140] sm:$0xff]
        %v1245 = vld [vmem:[#allocation3 + $0x148] sm:$0xff]
        %v1246 = vld [vmem:[#allocation3 + $0x150] sm:$0xff]
        %v1247 = vld [vmem:[#allocation3 + $0x158] sm:$0xff]
        %v1248 = vld [vmem:[#allocation3 + $0x160] sm:$0xff]
        %v1249 = vld [vmem:[#allocation3 + $0x168] sm:$0xff]
        %v1250 = vld [vmem:[#allocation3 + $0x170] sm:$0xff]
        %v1251 = vld [vmem:[#allocation3 + $0x178] sm:$0xff]
        %v1252 = vld [vmem:[#allocation3 + $0x180] sm:$0xff]
        %v1253 = vld [vmem:[#allocation3 + $0x188] sm:$0xff]
        %v1254 = vld [vmem:[#allocation3 + $0x190] sm:$0xff]
        %v1255 = vld [vmem:[#allocation3 + $0x198] sm:$0xff]
        %v1256 = vld [vmem:[#allocation3 + $0x1a0] sm:$0xff]
        %v1257 = vld [vmem:[#allocation3 + $0x1a8] sm:$0xff]
        %v1258 = vld [vmem:[#allocation3 + $0x1b0] sm:$0xff]
        %v1259 = vld [vmem:[#allocation3 + $0x1b8] sm:$0xff]
        %v1260 = vld [vmem:[#allocation3 + $0x1c0] sm:$0xff]
        %v1261 = vld [vmem:[#allocation3 + $0x1c8] sm:$0xff]
        %v1262 = vld [vmem:[#allocation3 + $0x1d0] sm:$0xff]
        %v1263 = vld [vmem:[#allocation3 + $0x1d8] sm:$0xff]
        %v1264 = vld [vmem:[#allocation3 + $0x1e0] sm:$0xff]
        %v1265 = vld [vmem:[#allocation3 + $0x1e8] sm:$0xff]
        %v1266 = vld [vmem:[#allocation3 + $0x1f0] sm:$0xff]
        %v1267 = vld [vmem:[#allocation3 + $0x1f8] sm:$0xff]
        %v1268 = vld [vmem:[#allocation3 + $0x200] sm:$0xff]
        %v1269 = vld [vmem:[#allocation3 + $0x208] sm:$0xff]
        %v1270 = vld [vmem:[#allocation3 + $0x210] sm:$0xff]
        %v1271 = vld [vmem:[#allocation3 + $0x218] sm:$0xff]
        %v1272 = vld [vmem:[#allocation3 + $0x220] sm:$0xff]
        %v1273 = vld [vmem:[#allocation3 + $0x228] sm:$0xff]
        %v1274 = vld [vmem:[#allocation3 + $0x230] sm:$0xff]
        %v1275 = vld [vmem:[#allocation3 + $0x238] sm:$0xff]
        %v1276 = vld [vmem:[#allocation3 + $0x240] sm:$0xff]
        %v1277 = vld [vmem:[#allocation3 + $0x248] sm:$0xff]
        %v1278 = vld [vmem:[#allocation3 + $0x250] sm:$0xff]
        %v1279 = vld [vmem:[#allocation3 + $0x258] sm:$0xff]
        %v1280 = vld [vmem:[#allocation3 + $0x260] sm:$0xff]
        %v1281 = vld [vmem:[#allocation3 + $0x268] sm:$0xff]
        %v1282 = vld [vmem:[#allocation3 + $0x270] sm:$0xff]
        %v1283 = vld [vmem:[#allocation3 + $0x278] sm:$0xff]
        %v1284 = vld [vmem:[#allocation3 + $0x280] sm:$0xff]
        %v1285 = vld [vmem:[#allocation3 + $0x288] sm:$0xff]
        %v1286 = vld [vmem:[#allocation3 + $0x290] sm:$0xff]
        %v1287 = vld [vmem:[#allocation3 + $0x298] sm:$0xff]
        %v1288 = vld [vmem:[#allocation3 + $0x2a0] sm:$0xff]
        %v1289 = vld [vmem:[#allocation3 + $0x2a8] sm:$0xff]
        %v1290 = vld [vmem:[#allocation3 + $0x2b0] sm:$0xff]
        %v1291 = vld [vmem:[#allocation3 + $0x2b8] sm:$0xff]
        %v1292 = vld [vmem:[#allocation3 + $0x2c0] sm:$0xff]
        %v1293 = vld [vmem:[#allocation3 + $0x2c8] sm:$0xff]
        %v1294 = vld [vmem:[#allocation3 + $0x2d0] sm:$0xff]
        %v1295 = vld [vmem:[#allocation3 + $0x2d8] sm:$0xff]
        %v1296 = vld [vmem:[#allocation3 + $0x2e0] sm:$0xff]
        %v1297 = vld [vmem:[#allocation3 + $0x2e8] sm:$0xff]
        %v1298 = vld [vmem:[#allocation3 + $0x2f0] sm:$0xff]
        %v1299 = vld [vmem:[#allocation3 + $0x2f8] sm:$0xff]
        %v1300 = vld [vmem:[#allocation3 + $0x300] sm:$0xff]
        %v1301 = vld [vmem:[#allocation3 + $0x308] sm:$0xff]
        %v1302 = vld [vmem:[#allocation3 + $0x310] sm:$0xff]
        %v1303 = vld [vmem:[#allocation3 + $0x318] sm:$0xff]
        %v1304 = vld [vmem:[#allocation3 + $0x320] sm:$0xff]
        %v1305 = vld [vmem:[#allocation3 + $0x328] sm:$0xff]
        %v1306 = vld [vmem:[#allocation3 + $0x330] sm:$0xff]
        %v1307 = vld [vmem:[#allocation3 + $0x338] sm:$0xff]
        %v1308 = vld [vmem:[#allocation3 + $0x340] sm:$0xff]
        %v1309 = vld [vmem:[#allocation3 + $0x348] sm:$0xff]
        %v1310 = vld [vmem:[#allocation3 + $0x350] sm:$0xff]
        %v1311 = vld [vmem:[#allocation3 + $0x358] sm:$0xff]
        %v1312 = vld [vmem:[#allocation3 + $0x360] sm:$0xff]
        %v1313 = vld [vmem:[#allocation3 + $0x368] sm:$0xff]
        %v1314 = vld [vmem:[#allocation3 + $0x370] sm:$0xff]
        %v1315 = vld [vmem:[#allocation3 + $0x378] sm:$0xff]
        %v1316 = vld [vmem:[#allocation3 + $0x380] sm:$0xff]
        %v1317 = vld [vmem:[#allocation3 + $0x388] sm:$0xff]
        %v1318 = vld [vmem:[#allocation3 + $0x390] sm:$0xff]
        %v1319 = vld [vmem:[#allocation3 + $0x398] sm:$0xff]
        %v1320 = vld [vmem:[#allocation3 + $0x3a0] sm:$0xff]
        %v1321 = vld [vmem:[#allocation3 + $0x3a8] sm:$0xff]
        %v1322 = vld [vmem:[#allocation3 + $0x3b0] sm:$0xff]
        %v1323 = vld [vmem:[#allocation3 + $0x3b8] sm:$0xff]
        %v1324 = vld [vmem:[#allocation3 + $0x3c0] sm:$0xff]
        %v1325 = vld [vmem:[#allocation3 + $0x3c8] sm:$0xff]
        %v1326 = vld [vmem:[#allocation3 + $0x3d0] sm:$0xff]
        %v1327 = vld [vmem:[#allocation3 + $0x3d8] sm:$0xff]
        %v1328 = vld [vmem:[#allocation3 + $0x3e0] sm:$0xff]
        %v1329 = vld [vmem:[#allocation3 + $0x3e8] sm:$0xff]
        %v1330 = vld [vmem:[#allocation3 + $0x3f0] sm:$0xff]
        %v1331 = vld [vmem:[#allocation3 + $0x3f8] sm:$0xff]
        %v1332 = vld [vmem:[%s4] sm:$0xf]
        %v1334 = vlaneseq
        %v1335 = vshrl.u32 %v1334, 7
        %v1336 = vsub.s32 0, %v1335
        %v1337 = vrot.slane %v1332, %v1336
        %v1338 = vlaneseq
        %v1339 = vshrl.u32 %v1338, 7
        %v1340 = vsub.s32 1, %v1339
        %v1341 = vrot.slane %v1332, %v1340
        %v1342 = vlaneseq
        %v1343 = vshrl.u32 %v1342, 7
        %v1344 = vsub.s32 2, %v1343
        %v1345 = vrot.slane %v1332, %v1344
        %v1346 = vlaneseq
        %v1347 = vshrl.u32 %v1346, 7
        %v1348 = vsub.s32 3, %v1347
        %v1349 = vrot.slane %v1332, %v1348
        %v1482 = vunpack.c.l.b16 %v1204
        %v1483 = vunpack.c.h.b16 %v1204
        %v1484 = vunpack.c.l.b16 %v1205
        %v1485 = vunpack.c.h.b16 %v1205
        %v1486 = vunpack.c.l.b16 %v1206
        %v1487 = vunpack.c.h.b16 %v1206
        %v1488 = vunpack.c.l.b16 %v1207
        %v1489 = vunpack.c.h.b16 %v1207
        %v1490 = vunpack.c.l.b16 %v1208
        %v1491 = vunpack.c.h.b16 %v1208
        %v1492 = vunpack.c.l.b16 %v1209
        %v1493 = vunpack.c.h.b16 %v1209
        %v1494 = vunpack.c.l.b16 %v1210
        %v1495 = vunpack.c.h.b16 %v1210
        %v1496 = vunpack.c.l.b16 %v1211
        %v1497 = vunpack.c.h.b16 %v1211
        %v1498 = vunpack.c.l.b16 %v1212
        %v1499 = vunpack.c.h.b16 %v1212
        %v1500 = vunpack.c.l.b16 %v1213
        %v1501 = vunpack.c.h.b16 %v1213
        %v1502 = vunpack.c.l.b16 %v1214
        %v1503 = vunpack.c.h.b16 %v1214
        %v1504 = vunpack.c.l.b16 %v1215
        %v1505 = vunpack.c.h.b16 %v1215
        %v1506 = vunpack.c.l.b16 %v1216
        %v1507 = vunpack.c.h.b16 %v1216
        %v1508 = vunpack.c.l.b16 %v1217
        %v1509 = vunpack.c.h.b16 %v1217
        %v1510 = vunpack.c.l.b16 %v1218
        %v1511 = vunpack.c.h.b16 %v1218
        %v1512 = vunpack.c.l.b16 %v1219
        %v1513 = vunpack.c.h.b16 %v1219
        %v1514 = vunpack.c.l.b16 %v1220
        %v1515 = vunpack.c.h.b16 %v1220
        %v1516 = vunpack.c.l.b16 %v1221
        %v1517 = vunpack.c.h.b16 %v1221
        %v1518 = vunpack.c.l.b16 %v1222
        %v1519 = vunpack.c.h.b16 %v1222
        %v1520 = vunpack.c.l.b16 %v1223
        %v1521 = vunpack.c.h.b16 %v1223
        %v1522 = vunpack.c.l.b16 %v1224
        %v1523 = vunpack.c.h.b16 %v1224
        %v1524 = vunpack.c.l.b16 %v1225
        %v1525 = vunpack.c.h.b16 %v1225
        %v1526 = vunpack.c.l.b16 %v1226
        %v1527 = vunpack.c.h.b16 %v1226
        %v1528 = vunpack.c.l.b16 %v1227
        %v1529 = vunpack.c.h.b16 %v1227
        %v1530 = vunpack.c.l.b16 %v1228
        %v1531 = vunpack.c.h.b16 %v1228
        %v1532 = vunpack.c.l.b16 %v1229
        %v1533 = vunpack.c.h.b16 %v1229
        %v1534 = vunpack.c.l.b16 %v1230
        %v1535 = vunpack.c.h.b16 %v1230
        %v1536 = vunpack.c.l.b16 %v1231
        %v1537 = vunpack.c.h.b16 %v1231
        %v1538 = vunpack.c.l.b16 %v1232
        %v1539 = vunpack.c.h.b16 %v1232
        %v1540 = vunpack.c.l.b16 %v1233
        %v1541 = vunpack.c.h.b16 %v1233
        %v1542 = vunpack.c.l.b16 %v1234
        %v1543 = vunpack.c.h.b16 %v1234
        %v1544 = vunpack.c.l.b16 %v1235
        %v1545 = vunpack.c.h.b16 %v1235
        %v1546 = vunpack.c.l.b16 %v1236
        %v1547 = vunpack.c.h.b16 %v1236
        %v1548 = vunpack.c.l.b16 %v1237
        %v1549 = vunpack.c.h.b16 %v1237
        %v1550 = vunpack.c.l.b16 %v1238
        %v1551 = vunpack.c.h.b16 %v1238
        %v1552 = vunpack.c.l.b16 %v1239
        %v1553 = vunpack.c.h.b16 %v1239
        %v1554 = vunpack.c.l.b16 %v1240
        %v1555 = vunpack.c.h.b16 %v1240
        %v1556 = vunpack.c.l.b16 %v1241
        %v1557 = vunpack.c.h.b16 %v1241
        %v1558 = vunpack.c.l.b16 %v1242
        %v1559 = vunpack.c.h.b16 %v1242
        %v1560 = vunpack.c.l.b16 %v1243
        %v1561 = vunpack.c.h.b16 %v1243
        %v1562 = vunpack.c.l.b16 %v1244
        %v1563 = vunpack.c.h.b16 %v1244
        %v1564 = vunpack.c.l.b16 %v1245
        %v1565 = vunpack.c.h.b16 %v1245
        %v1566 = vunpack.c.l.b16 %v1246
        %v1567 = vunpack.c.h.b16 %v1246
        %v1568 = vunpack.c.l.b16 %v1247
        %v1569 = vunpack.c.h.b16 %v1247
        %v1570 = vunpack.c.l.b16 %v1248
        %v1571 = vunpack.c.h.b16 %v1248
        %v1572 = vunpack.c.l.b16 %v1249
        %v1573 = vunpack.c.h.b16 %v1249
        %v1574 = vunpack.c.l.b16 %v1250
        %v1575 = vunpack.c.h.b16 %v1250
        %v1576 = vunpack.c.l.b16 %v1251
        %v1577 = vunpack.c.h.b16 %v1251
        %v1578 = vunpack.c.l.b16 %v1252
        %v1579 = vunpack.c.h.b16 %v1252
        %v1580 = vunpack.c.l.b16 %v1253
        %v1581 = vunpack.c.h.b16 %v1253
        %v1582 = vunpack.c.l.b16 %v1254
        %v1583 = vunpack.c.h.b16 %v1254
        %v1584 = vunpack.c.l.b16 %v1255
        %v1585 = vunpack.c.h.b16 %v1255
        %v1586 = vunpack.c.l.b16 %v1256
        %v1587 = vunpack.c.h.b16 %v1256
        %v1588 = vunpack.c.l.b16 %v1257
        %v1589 = vunpack.c.h.b16 %v1257
        %v1590 = vunpack.c.l.b16 %v1258
        %v1591 = vunpack.c.h.b16 %v1258
        %v1592 = vunpack.c.l.b16 %v1259
        %v1593 = vunpack.c.h.b16 %v1259
        %v1594 = vunpack.c.l.b16 %v1260
        %v1595 = vunpack.c.h.b16 %v1260
        %v1596 = vunpack.c.l.b16 %v1261
        %v1597 = vunpack.c.h.b16 %v1261
        %v1598 = vunpack.c.l.b16 %v1262
        %v1599 = vunpack.c.h.b16 %v1262
        %v1600 = vunpack.c.l.b16 %v1263
        %v1601 = vunpack.c.h.b16 %v1263
        %v1602 = vunpack.c.l.b16 %v1264
        %v1603 = vunpack.c.h.b16 %v1264
        %v1604 = vunpack.c.l.b16 %v1265
        %v1605 = vunpack.c.h.b16 %v1265
        %v1606 = vunpack.c.l.b16 %v1266
        %v1607 = vunpack.c.h.b16 %v1266
        %v1608 = vunpack.c.l.b16 %v1267
        %v1609 = vunpack.c.h.b16 %v1267
        %v1610 = vunpack.c.l.b16 %v1268
        %v1611 = vunpack.c.h.b16 %v1268
        %v1612 = vunpack.c.l.b16 %v1269
        %v1613 = vunpack.c.h.b16 %v1269
        %v1614 = vunpack.c.l.b16 %v1270
        %v1615 = vunpack.c.h.b16 %v1270
        %v1616 = vunpack.c.l.b16 %v1271
        %v1617 = vunpack.c.h.b16 %v1271
        %v1618 = vunpack.c.l.b16 %v1272
        %v1619 = vunpack.c.h.b16 %v1272
        %v1620 = vunpack.c.l.b16 %v1273
        %v1621 = vunpack.c.h.b16 %v1273
        %v1622 = vunpack.c.l.b16 %v1274
        %v1623 = vunpack.c.h.b16 %v1274
        %v1624 = vunpack.c.l.b16 %v1275
        %v1625 = vunpack.c.h.b16 %v1275
        %v1626 = vunpack.c.l.b16 %v1276
        %v1627 = vunpack.c.h.b16 %v1276
        %v1628 = vunpack.c.l.b16 %v1277
        %v1629 = vunpack.c.h.b16 %v1277
        %v1630 = vunpack.c.l.b16 %v1278
        %v1631 = vunpack.c.h.b16 %v1278
        %v1632 = vunpack.c.l.b16 %v1279
        %v1633 = vunpack.c.h.b16 %v1279
        %v1634 = vunpack.c.l.b16 %v1280
        %v1635 = vunpack.c.h.b16 %v1280
        %v1636 = vunpack.c.l.b16 %v1281
        %v1637 = vunpack.c.h.b16 %v1281
        %v1638 = vunpack.c.l.b16 %v1282
        %v1639 = vunpack.c.h.b16 %v1282
        %v1640 = vunpack.c.l.b16 %v1283
        %v1641 = vunpack.c.h.b16 %v1283
        %v1642 = vunpack.c.l.b16 %v1284
        %v1643 = vunpack.c.h.b16 %v1284
        %v1644 = vunpack.c.l.b16 %v1285
        %v1645 = vunpack.c.h.b16 %v1285
        %v1646 = vunpack.c.l.b16 %v1286
        %v1647 = vunpack.c.h.b16 %v1286
        %v1648 = vunpack.c.l.b16 %v1287
        %v1649 = vunpack.c.h.b16 %v1287
        %v1650 = vunpack.c.l.b16 %v1288
        %v1651 = vunpack.c.h.b16 %v1288
        %v1652 = vunpack.c.l.b16 %v1289
        %v1653 = vunpack.c.h.b16 %v1289
        %v1654 = vunpack.c.l.b16 %v1290
        %v1655 = vunpack.c.h.b16 %v1290
        %v1656 = vunpack.c.l.b16 %v1291
        %v1657 = vunpack.c.h.b16 %v1291
        %v1658 = vunpack.c.l.b16 %v1292
        %v1659 = vunpack.c.h.b16 %v1292
        %v1660 = vunpack.c.l.b16 %v1293
        %v1661 = vunpack.c.h.b16 %v1293
        %v1662 = vunpack.c.l.b16 %v1294
        %v1663 = vunpack.c.h.b16 %v1294
        %v1664 = vunpack.c.l.b16 %v1295
        %v1665 = vunpack.c.h.b16 %v1295
        %v1666 = vunpack.c.l.b16 %v1296
        %v1667 = vunpack.c.h.b16 %v1296
        %v1668 = vunpack.c.l.b16 %v1297
        %v1669 = vunpack.c.h.b16 %v1297
        %v1670 = vunpack.c.l.b16 %v1298
        %v1671 = vunpack.c.h.b16 %v1298
        %v1672 = vunpack.c.l.b16 %v1299
        %v1673 = vunpack.c.h.b16 %v1299
        %v1674 = vunpack.c.l.b16 %v1300
        %v1675 = vunpack.c.h.b16 %v1300
        %v1676 = vunpack.c.l.b16 %v1301
        %v1677 = vunpack.c.h.b16 %v1301
        %v1678 = vunpack.c.l.b16 %v1302
        %v1679 = vunpack.c.h.b16 %v1302
        %v1680 = vunpack.c.l.b16 %v1303
        %v1681 = vunpack.c.h.b16 %v1303
        %v1682 = vunpack.c.l.b16 %v1304
        %v1683 = vunpack.c.h.b16 %v1304
        %v1684 = vunpack.c.l.b16 %v1305
        %v1685 = vunpack.c.h.b16 %v1305
        %v1686 = vunpack.c.l.b16 %v1306
        %v1687 = vunpack.c.h.b16 %v1306
        %v1688 = vunpack.c.l.b16 %v1307
        %v1689 = vunpack.c.h.b16 %v1307
        %v1690 = vunpack.c.l.b16 %v1308
        %v1691 = vunpack.c.h.b16 %v1308
        %v1692 = vunpack.c.l.b16 %v1309
        %v1693 = vunpack.c.h.b16 %v1309
        %v1694 = vunpack.c.l.b16 %v1310
        %v1695 = vunpack.c.h.b16 %v1310
        %v1696 = vunpack.c.l.b16 %v1311
        %v1697 = vunpack.c.h.b16 %v1311
        %v1698 = vunpack.c.l.b16 %v1312
        %v1699 = vunpack.c.h.b16 %v1312
        %v1700 = vunpack.c.l.b16 %v1313
        %v1701 = vunpack.c.h.b16 %v1313
        %v1702 = vunpack.c.l.b16 %v1314
        %v1703 = vunpack.c.h.b16 %v1314
        %v1704 = vunpack.c.l.b16 %v1315
        %v1705 = vunpack.c.h.b16 %v1315
        %v1706 = vunpack.c.l.b16 %v1316
        %v1707 = vunpack.c.h.b16 %v1316
        %v1708 = vunpack.c.l.b16 %v1317
        %v1709 = vunpack.c.h.b16 %v1317
        %v1710 = vunpack.c.l.b16 %v1318
        %v1711 = vunpack.c.h.b16 %v1318
        %v1712 = vunpack.c.l.b16 %v1319
        %v1713 = vunpack.c.h.b16 %v1319
        %v1714 = vunpack.c.l.b16 %v1320
        %v1715 = vunpack.c.h.b16 %v1320
        %v1716 = vunpack.c.l.b16 %v1321
        %v1717 = vunpack.c.h.b16 %v1321
        %v1718 = vunpack.c.l.b16 %v1322
        %v1719 = vunpack.c.h.b16 %v1322
        %v1720 = vunpack.c.l.b16 %v1323
        %v1721 = vunpack.c.h.b16 %v1323
        %v1722 = vunpack.c.l.b16 %v1324
        %v1723 = vunpack.c.h.b16 %v1324
        %v1724 = vunpack.c.l.b16 %v1325
        %v1725 = vunpack.c.h.b16 %v1325
        %v1726 = vunpack.c.l.b16 %v1326
        %v1727 = vunpack.c.h.b16 %v1326
        %v1728 = vunpack.c.l.b16 %v1327
        %v1729 = vunpack.c.h.b16 %v1327
        %v1730 = vunpack.c.l.b16 %v1328
        %v1731 = vunpack.c.h.b16 %v1328
        %v1732 = vunpack.c.l.b16 %v1329
        %v1733 = vunpack.c.h.b16 %v1329
        %v1734 = vunpack.c.l.b16 %v1330
        %v1735 = vunpack.c.h.b16 %v1330
        %v1736 = vunpack.c.l.b16 %v1331
        %v1737 = vunpack.c.h.b16 %v1331
        %v1738 = vpack.c.b16 %v1486, %v1482
        %v1739 = vpack.c.b16 %v1487, %v1483
        %v1740 = vpack.c.b16 %v1488, %v1484
        %v1741 = vpack.c.b16 %v1489, %v1485
        %v1742 = vpack.c.b16 %v1494, %v1490
        %v1743 = vpack.c.b16 %v1495, %v1491
        %v1744 = vpack.c.b16 %v1496, %v1492
        %v1745 = vpack.c.b16 %v1497, %v1493
        %v1746 = vpack.c.b16 %v1502, %v1498
        %v1747 = vpack.c.b16 %v1503, %v1499
        %v1748 = vpack.c.b16 %v1504, %v1500
        %v1749 = vpack.c.b16 %v1505, %v1501
        %v1750 = vpack.c.b16 %v1510, %v1506
        %v1751 = vpack.c.b16 %v1511, %v1507
        %v1752 = vpack.c.b16 %v1512, %v1508
        %v1753 = vpack.c.b16 %v1513, %v1509
        %v1754 = vpack.c.b16 %v1518, %v1514
        %v1755 = vpack.c.b16 %v1519, %v1515
        %v1756 = vpack.c.b16 %v1520, %v1516
        %v1757 = vpack.c.b16 %v1521, %v1517
        %v1758 = vpack.c.b16 %v1526, %v1522
        %v1759 = vpack.c.b16 %v1527, %v1523
        %v1760 = vpack.c.b16 %v1528, %v1524
        %v1761 = vpack.c.b16 %v1529, %v1525
        %v1762 = vpack.c.b16 %v1534, %v1530
        %v1763 = vpack.c.b16 %v1535, %v1531
        %v1764 = vpack.c.b16 %v1536, %v1532
        %v1765 = vpack.c.b16 %v1537, %v1533
        %v1766 = vpack.c.b16 %v1542, %v1538
        %v1767 = vpack.c.b16 %v1543, %v1539
        %v1768 = vpack.c.b16 %v1544, %v1540
        %v1769 = vpack.c.b16 %v1545, %v1541
        %v1770 = vpack.c.b16 %v1550, %v1546
        %v1771 = vpack.c.b16 %v1551, %v1547
        %v1772 = vpack.c.b16 %v1552, %v1548
        %v1773 = vpack.c.b16 %v1553, %v1549
        %v1774 = vpack.c.b16 %v1558, %v1554
        %v1775 = vpack.c.b16 %v1559, %v1555
        %v1776 = vpack.c.b16 %v1560, %v1556
        %v1777 = vpack.c.b16 %v1561, %v1557
        %v1778 = vpack.c.b16 %v1566, %v1562
        %v1779 = vpack.c.b16 %v1567, %v1563
        %v1780 = vpack.c.b16 %v1568, %v1564
        %v1781 = vpack.c.b16 %v1569, %v1565
        %v1782 = vpack.c.b16 %v1574, %v1570
        %v1783 = vpack.c.b16 %v1575, %v1571
        %v1784 = vpack.c.b16 %v1576, %v1572
        %v1785 = vpack.c.b16 %v1577, %v1573
        %v1786 = vpack.c.b16 %v1582, %v1578
        %v1787 = vpack.c.b16 %v1583, %v1579
        %v1788 = vpack.c.b16 %v1584, %v1580
        %v1789 = vpack.c.b16 %v1585, %v1581
        %v1790 = vpack.c.b16 %v1590, %v1586
        %v1791 = vpack.c.b16 %v1591, %v1587
        %v1792 = vpack.c.b16 %v1592, %v1588
        %v1793 = vpack.c.b16 %v1593, %v1589
        %v1794 = vpack.c.b16 %v1598, %v1594
        %v1795 = vpack.c.b16 %v1599, %v1595
        %v1796 = vpack.c.b16 %v1600, %v1596
        %v1797 = vpack.c.b16 %v1601, %v1597
        %v1798 = vpack.c.b16 %v1606, %v1602
        %v1799 = vpack.c.b16 %v1607, %v1603
        %v1800 = vpack.c.b16 %v1608, %v1604
        %v1801 = vpack.c.b16 %v1609, %v1605
        %v1802 = vpack.c.b16 %v1614, %v1610
        %v1803 = vpack.c.b16 %v1615, %v1611
        %v1804 = vpack.c.b16 %v1616, %v1612
        %v1805 = vpack.c.b16 %v1617, %v1613
        %v1806 = vpack.c.b16 %v1622, %v1618
        %v1807 = vpack.c.b16 %v1623, %v1619
        %v1808 = vpack.c.b16 %v1624, %v1620
        %v1809 = vpack.c.b16 %v1625, %v1621
        %v1810 = vpack.c.b16 %v1630, %v1626
        %v1811 = vpack.c.b16 %v1631, %v1627
        %v1812 = vpack.c.b16 %v1632, %v1628
        %v1813 = vpack.c.b16 %v1633, %v1629
        %v1814 = vpack.c.b16 %v1638, %v1634
        %v1815 = vpack.c.b16 %v1639, %v1635
        %v1816 = vpack.c.b16 %v1640, %v1636
        %v1817 = vpack.c.b16 %v1641, %v1637
        %v1818 = vpack.c.b16 %v1646, %v1642
        %v1819 = vpack.c.b16 %v1647, %v1643
        %v1820 = vpack.c.b16 %v1648, %v1644
        %v1821 = vpack.c.b16 %v1649, %v1645
        %v1822 = vpack.c.b16 %v1654, %v1650
        %v1823 = vpack.c.b16 %v1655, %v1651
        %v1824 = vpack.c.b16 %v1656, %v1652
        %v1825 = vpack.c.b16 %v1657, %v1653
        %v1826 = vpack.c.b16 %v1662, %v1658
        %v1827 = vpack.c.b16 %v1663, %v1659
        %v1828 = vpack.c.b16 %v1664, %v1660
        %v1829 = vpack.c.b16 %v1665, %v1661
        %v1830 = vpack.c.b16 %v1670, %v1666
        %v1831 = vpack.c.b16 %v1671, %v1667
        %v1832 = vpack.c.b16 %v1672, %v1668
        %v1833 = vpack.c.b16 %v1673, %v1669
        %v1834 = vpack.c.b16 %v1678, %v1674
        %v1835 = vpack.c.b16 %v1679, %v1675
        %v1836 = vpack.c.b16 %v1680, %v1676
        %v1837 = vpack.c.b16 %v1681, %v1677
        %v1838 = vpack.c.b16 %v1686, %v1682
        %v1839 = vpack.c.b16 %v1687, %v1683
        %v1840 = vpack.c.b16 %v1688, %v1684
        %v1841 = vpack.c.b16 %v1689, %v1685
        %v1842 = vpack.c.b16 %v1694, %v1690
        %v1843 = vpack.c.b16 %v1695, %v1691
        %v1844 = vpack.c.b16 %v1696, %v1692
        %v1845 = vpack.c.b16 %v1697, %v1693
        %v1846 = vpack.c.b16 %v1702, %v1698
        %v1847 = vpack.c.b16 %v1703, %v1699
        %v1848 = vpack.c.b16 %v1704, %v1700
        %v1849 = vpack.c.b16 %v1705, %v1701
        %v1850 = vpack.c.b16 %v1710, %v1706
        %v1851 = vpack.c.b16 %v1711, %v1707
        %v1852 = vpack.c.b16 %v1712, %v1708
        %v1853 = vpack.c.b16 %v1713, %v1709
        %v1854 = vpack.c.b16 %v1718, %v1714
        %v1855 = vpack.c.b16 %v1719, %v1715
        %v1856 = vpack.c.b16 %v1720, %v1716
        %v1857 = vpack.c.b16 %v1721, %v1717
        %v1858 = vpack.c.b16 %v1726, %v1722
        %v1859 = vpack.c.b16 %v1727, %v1723
        %v1860 = vpack.c.b16 %v1728, %v1724
        %v1861 = vpack.c.b16 %v1729, %v1725
        %v1862 = vpack.c.b16 %v1734, %v1730
        %v1863 = vpack.c.b16 %v1735, %v1731
        %v1864 = vpack.c.b16 %v1736, %v1732
        %v1865 = vpack.c.b16 %v1737, %v1733
        %1994 = vmatprep.subr.bf16.mxu0 %v1739
        %1995 = vmatpush1.bf16.msra.mxu0 %v1738
        %1996 = vmatprep.subr.bf16.mxu0 %v1743
        %1997 = vmatpush1.bf16.msra.mxu0 %v1742
        %1998 = vmatprep.subr.bf16.mxu0 %v1747
        %1999 = vmatpush1.bf16.msra.mxu0 %v1746
        %2000 = vmatprep.subr.bf16.mxu0 %v1751
        %2001 = vmatpush1.bf16.msra.mxu0 %v1750
        %2002 = vmatprep.subr.bf16.mxu0 %v1755
        %2003 = vmatpush1.bf16.msra.mxu0 %v1754
        %2004 = vmatprep.subr.bf16.mxu0 %v1759
        %2005 = vmatpush1.bf16.msra.mxu0 %v1758
        %2006 = vmatprep.subr.bf16.mxu0 %v1763
        %2007 = vmatpush1.bf16.msra.mxu0 %v1762
        %2008 = vmatprep.subr.bf16.mxu0 %v1767
        %2009 = vmatpush1.bf16.msra.mxu0 %v1766
        %2010 = vmatprep.subr.bf16.mxu0 %v1771
        %2011 = vmatpush1.bf16.msra.mxu0 %v1770
        %2012 = vmatprep.subr.bf16.mxu0 %v1775
        %2013 = vmatpush1.bf16.msra.mxu0 %v1774
        %2014 = vmatprep.subr.bf16.mxu0 %v1779
        %2015 = vmatpush1.bf16.msra.mxu0 %v1778
        %2016 = vmatprep.subr.bf16.mxu0 %v1783
        %2017 = vmatpush1.bf16.msra.mxu0 %v1782
        %2018 = vmatprep.subr.bf16.mxu0 %v1787
        %2019 = vmatpush1.bf16.msra.mxu0 %v1786
        %2020 = vmatprep.subr.bf16.mxu0 %v1791
        %2021 = vmatpush1.bf16.msra.mxu0 %v1790
        %2022 = vmatprep.subr.bf16.mxu0 %v1795
        %2023 = vmatpush1.bf16.msra.mxu0 %v1794
        %2024 = vmatprep.subr.bf16.mxu0 %v1799
        %2025 = vmatpush1.bf16.msra.mxu0 %v1798
        %2026 = vmatprep.mubr.bf16.mxu0 %v1141
        %2027 = vmatmul.mubr.bf16.gmra.mrb[0].mxu0 %v1140
        %v2028 = vpop.f32.mrb[0].mxu0
        %v2029 = vadd.f32 %v1337, %v2028
        %v2030 = vpop.f32.mrb[0].mxu0
        %v2031 = vadd.f32 %v1341, %v2030
        %v2032 = vpop.f32.mrb[0].mxu0
        %v2033 = vadd.f32 %v1337, %v2032
        %v2034 = vpop.f32.mrb[0].mxu0
        %v2035 = vadd.f32 %v1341, %v2034
        %2036 = vmatprep.mubr.bf16.mxu0 %v1145
        %2037 = vmatmul.mubr.bf16.gmra.mrb[0].mxu0 %v1144
        %v2038 = vpop.f32.mrb[0].mxu0
        %v2039 = vadd.f32 %v1337, %v2038
        %v2040 = vpop.f32.mrb[0].mxu0
        %v2041 = vadd.f32 %v1341, %v2040
        %v2042 = vpop.f32.mrb[0].mxu0
        %v2043 = vadd.f32 %v1337, %v2042
        %v2044 = vpop.f32.mrb[0].mxu0
        %v2045 = vadd.f32 %v1341, %v2044
        %2046 = vmatprep.mubr.bf16.mxu0 %v1149
        %2047 = vmatmul.mubr.bf16.gmra.mrb[0].mxu0 %v1148
        %v2048 = vpop.f32.mrb[0].mxu0
        %v2049 = vadd.f32 %v1337, %v2048
        %v2050 = vpop.f32.mrb[0].mxu0
        %v2051 = vadd.f32 %v1341, %v2050
        %v2052 = vpop.f32.mrb[0].mxu0
        %v2053 = vadd.f32 %v1337, %v2052
        %v2054 = vpop.f32.mrb[0].mxu0
        %v2055 = vadd.f32 %v1341, %v2054
        %2056 = vmatprep.mubr.bf16.mxu0 %v1153
        %2057 = vmatmul.mubr.bf16.gmra.mrb[0].mxu0 %v1152
        %v2058 = vpop.f32.mrb[0].mxu0
        %v2059 = vadd.f32 %v1337, %v2058
        %v2060 = vpop.f32.mrb[0].mxu0
        %v2061 = vadd.f32 %v1341, %v2060
        %v2062 = vpop.f32.mrb[0].mxu0
        %v2063 = vadd.f32 %v1337, %v2062
        %v2064 = vpop.f32.mrb[0].mxu0
        %v2065 = vadd.f32 %v1341, %v2064
        %2066 = vmatprep.mubr.bf16.mxu0 %v1157
        %2067 = vmatmul.mubr.bf16.gmra.mrb[0].mxu0 %v1156
        %v2068 = vpop.f32.mrb[0].mxu0
        %v2069 = vadd.f32 %v1337, %v2068
        %v2070 = vpop.f32.mrb[0].mxu0
        %v2071 = vadd.f32 %v1341, %v2070
        %v2072 = vpop.f32.mrb[0].mxu0
        %v2073 = vadd.f32 %v1337, %v2072
        %v2074 = vpop.f32.mrb[0].mxu0
        %v2075 = vadd.f32 %v1341, %v2074
        %2076 = vmatprep.mubr.bf16.mxu0 %v1161
        %2077 = vmatmul.mubr.bf16.gmra.mrb[0].mxu0 %v1160
        %v2078 = vpop.f32.mrb[0].mxu0
        %v2079 = vadd.f32 %v1337, %v2078
        %v2080 = vpop.f32.mrb[0].mxu0
        %v2081 = vadd.f32 %v1341, %v2080
        %v2082 = vpop.f32.mrb[0].mxu0
        %v2083 = vadd.f32 %v1337, %v2082
        %v2084 = vpop.f32.mrb[0].mxu0
        %v2085 = vadd.f32 %v1341, %v2084
        %2086 = vmatprep.mubr.bf16.mxu0 %v1165
        %2087 = vmatmul.mubr.bf16.gmra.mrb[0].mxu0 %v1164
        %v2088 = vpop.f32.mrb[0].mxu0
        %v2089 = vadd.f32 %v1337, %v2088
        %v2090 = vpop.f32.mrb[0].mxu0
        %v2091 = vadd.f32 %v1341, %v2090
        %v2092 = vpop.f32.mrb[0].mxu0
        %v2093 = vadd.f32 %v1337, %v2092
        %v2094 = vpop.f32.mrb[0].mxu0
        %v2095 = vadd.f32 %v1341, %v2094
        %2096 = vmatprep.mubr.bf16.mxu0 %v1169
        %2097 = vmatmul.mubr.bf16.gmra.mrb[0].mxu0 %v1168
        %v2098 = vpop.f32.mrb[0].mxu0
        %v2099 = vadd.f32 %v1337, %v2098
        %v2100 = vpop.f32.mrb[0].mxu0
        %v2101 = vadd.f32 %v1341, %v2100
        %v2102 = vpop.f32.mrb[0].mxu0
        %v2103 = vadd.f32 %v1337, %v2102
        %v2104 = vpop.f32.mrb[0].mxu0
        %v2105 = vadd.f32 %v1341, %v2104
        %2106 = vmatprep.mubr.bf16.mxu0 %v1173
        %2107 = vmatmul.mubr.bf16.gmra.mrb[0].mxu0 %v1172
        %v2108 = vpop.f32.mrb[0].mxu0
        %v2109 = vadd.f32 %v1337, %v2108
        %v2110 = vpop.f32.mrb[0].mxu0
        %v2111 = vadd.f32 %v1341, %v2110
        %v2112 = vpop.f32.mrb[0].mxu0
        %v2113 = vadd.f32 %v1337, %v2112
        %v2114 = vpop.f32.mrb[0].mxu0
        %v2115 = vadd.f32 %v1341, %v2114
        %2116 = vmatprep.mubr.bf16.mxu0 %v1177
        %2117 = vmatmul.mubr.bf16.gmra.mrb[0].mxu0 %v1176
        %v2118 = vpop.f32.mrb[0].mxu0
        %v2119 = vadd.f32 %v1337, %v2118
        %v2120 = vpop.f32.mrb[0].mxu0
        %v2121 = vadd.f32 %v1341, %v2120
        %v2122 = vpop.f32.mrb[0].mxu0
        %v2123 = vadd.f32 %v1337, %v2122
        %v2124 = vpop.f32.mrb[0].mxu0
        %v2125 = vadd.f32 %v1341, %v2124
        %2126 = vmatprep.mubr.bf16.mxu0 %v1181
        %2127 = vmatmul.mubr.bf16.gmra.mrb[0].mxu0 %v1180
        %v2128 = vpop.f32.mrb[0].mxu0
        %v2129 = vadd.f32 %v1337, %v2128
        %v2130 = vpop.f32.mrb[0].mxu0
        %v2131 = vadd.f32 %v1341, %v2130
        %v2132 = vpop.f32.mrb[0].mxu0
        %v2133 = vadd.f32 %v1337, %v2132
        %v2134 = vpop.f32.mrb[0].mxu0
        %v2135 = vadd.f32 %v1341, %v2134
        %2136 = vmatprep.mubr.bf16.mxu0 %v1185
        %2137 = vmatmul.mubr.bf16.gmra.mrb[0].mxu0 %v1184
        %v2138 = vpop.f32.mrb[0].mxu0
        %v2139 = vadd.f32 %v1337, %v2138
        %v2140 = vpop.f32.mrb[0].mxu0
        %v2141 = vadd.f32 %v1341, %v2140
        %v2142 = vpop.f32.mrb[0].mxu0
        %v2143 = vadd.f32 %v1337, %v2142
        %v2144 = vpop.f32.mrb[0].mxu0
        %v2145 = vadd.f32 %v1341, %v2144
        %2146 = vmatprep.mubr.bf16.mxu0 %v1189
        %2147 = vmatmul.mubr.bf16.gmra.mrb[0].mxu0 %v1188
        %v2148 = vpop.f32.mrb[0].mxu0
        %v2149 = vadd.f32 %v1337, %v2148
        %v2150 = vpop.f32.mrb[0].mxu0
        %v2151 = vadd.f32 %v1341, %v2150
        %v2152 = vpop.f32.mrb[0].mxu0
        %v2153 = vadd.f32 %v1337, %v2152
        %v2154 = vpop.f32.mrb[0].mxu0
        %v2155 = vadd.f32 %v1341, %v2154
        %2156 = vmatprep.mubr.bf16.mxu0 %v1193
        %2157 = vmatmul.mubr.bf16.gmra.mrb[0].mxu0 %v1192
        %v2158 = vpop.f32.mrb[0].mxu0
        %v2159 = vadd.f32 %v1337, %v2158
        %v2160 = vpop.f32.mrb[0].mxu0
        %v2161 = vadd.f32 %v1341, %v2160
        %v2162 = vpop.f32.mrb[0].mxu0
        %v2163 = vadd.f32 %v1337, %v2162
        %v2164 = vpop.f32.mrb[0].mxu0
        %v2165 = vadd.f32 %v1341, %v2164
        %2166 = vmatprep.mubr.bf16.mxu0 %v1197
        %2167 = vmatmul.mubr.bf16.gmra.mrb[0].mxu0 %v1196
        %v2168 = vpop.f32.mrb[0].mxu0
        %v2169 = vadd.f32 %v1337, %v2168
        %v2170 = vpop.f32.mrb[0].mxu0
        %v2171 = vadd.f32 %v1341, %v2170
        %v2172 = vpop.f32.mrb[0].mxu0
        %v2173 = vadd.f32 %v1337, %v2172
        %v2174 = vpop.f32.mrb[0].mxu0
        %v2175 = vadd.f32 %v1341, %v2174
        %2176 = vmatprep.mubr.bf16.mxu0 %v1201
        %2177 = vmatmul.mubr.bf16.gmra.mrb[0].mxu0 %v1200
        %v2178 = vpop.f32.mrb[0].mxu0
        %v2179 = vadd.f32 %v1337, %v2178
        %v2180 = vpop.f32.mrb[0].mxu0
        %v2181 = vadd.f32 %v1341, %v2180
        %v2182 = vpop.f32.mrb[0].mxu0
        %v2183 = vadd.f32 %v1337, %v2182
        %v2184 = vpop.f32.mrb[0].mxu0
        %v2185 = vadd.f32 %v1341, %v2184
        %2186 = vdwg.mxu0
        %2187 = vmatprep.subr.bf16.mxu0 %v1803
        %2188 = vmatpush1.bf16.msra.mxu0 %v1802
        %2189 = vmatprep.subr.bf16.mxu0 %v1807
        %2190 = vmatpush1.bf16.msra.mxu0 %v1806
        %2191 = vmatprep.subr.bf16.mxu0 %v1811
        %2192 = vmatpush1.bf16.msra.mxu0 %v1810
        %2193 = vmatprep.subr.bf16.mxu0 %v1815
        %2194 = vmatpush1.bf16.msra.mxu0 %v1814
        %2195 = vmatprep.subr.bf16.mxu0 %v1819
        %2196 = vmatpush1.bf16.msra.mxu0 %v1818
        %2197 = vmatprep.subr.bf16.mxu0 %v1823
        %2198 = vmatpush1.bf16.msra.mxu0 %v1822
        %2199 = vmatprep.subr.bf16.mxu0 %v1827
        %2200 = vmatpush1.bf16.msra.mxu0 %v1826
        %2201 = vmatprep.subr.bf16.mxu0 %v1831
        %2202 = vmatpush1.bf16.msra.mxu0 %v1830
        %2203 = vmatprep.subr.bf16.mxu0 %v1835
        %2204 = vmatpush1.bf16.msra.mxu0 %v1834
        %2205 = vmatprep.subr.bf16.mxu0 %v1839
        %2206 = vmatpush1.bf16.msra.mxu0 %v1838
        %2207 = vmatprep.subr.bf16.mxu0 %v1843
        %2208 = vmatpush1.bf16.msra.mxu0 %v1842
        %2209 = vmatprep.subr.bf16.mxu0 %v1847
        %2210 = vmatpush1.bf16.msra.mxu0 %v1846
        %2211 = vmatprep.subr.bf16.mxu0 %v1851
        %2212 = vmatpush1.bf16.msra.mxu0 %v1850
        %2213 = vmatprep.subr.bf16.mxu0 %v1855
        %2214 = vmatpush1.bf16.msra.mxu0 %v1854
        %2215 = vmatprep.subr.bf16.mxu0 %v1859
        %2216 = vmatpush1.bf16.msra.mxu0 %v1858
        %2217 = vmatprep.subr.bf16.mxu0 %v1863
        %2218 = vmatpush1.bf16.msra.mxu0 %v1862
        %2219 = vmatprep.mubr.bf16.mxu0 %v1143
        %2220 = vmatmul.mubr.bf16.gmra.mrb[0].mxu0 %v1142
        %v2221 = vpop.f32.mrb[0].mxu0
        %v2222 = vadd.f32 %v2029, %v2221
        %v2223 = vpop.f32.mrb[0].mxu0
        %v2224 = vadd.f32 %v2031, %v2223
        %v2225 = vpop.f32.mrb[0].mxu0
        %v2226 = vadd.f32 %v2033, %v2225
        %v2227 = vpop.f32.mrb[0].mxu0
        %v2228 = vadd.f32 %v2035, %v2227
        %2229 = vmatprep.mubr.bf16.mxu0 %v1147
        %2230 = vmatmul.mubr.bf16.gmra.mrb[0].mxu0 %v1146
        %v2231 = vpop.f32.mrb[0].mxu0
        %v2232 = vadd.f32 %v2039, %v2231
        %v2233 = vpop.f32.mrb[0].mxu0
        %v2234 = vadd.f32 %v2041, %v2233
        %v2235 = vpop.f32.mrb[0].mxu0
        %v2236 = vadd.f32 %v2043, %v2235
        %v2237 = vpop.f32.mrb[0].mxu0
        %v2238 = vadd.f32 %v2045, %v2237
        %2239 = vmatprep.mubr.bf16.mxu0 %v1151
        %2240 = vmatmul.mubr.bf16.gmra.mrb[0].mxu0 %v1150
        %v2241 = vpop.f32.mrb[0].mxu0
        %v2242 = vadd.f32 %v2049, %v2241
        %v2243 = vpop.f32.mrb[0].mxu0
        %v2244 = vadd.f32 %v2051, %v2243
        %v2245 = vpop.f32.mrb[0].mxu0
        %v2246 = vadd.f32 %v2053, %v2245
        %v2247 = vpop.f32.mrb[0].mxu0
        %v2248 = vadd.f32 %v2055, %v2247
        %2249 = vmatprep.mubr.bf16.mxu0 %v1155
        %2250 = vmatmul.mubr.bf16.gmra.mrb[0].mxu0 %v1154
        %v2251 = vpop.f32.mrb[0].mxu0
        %v2252 = vadd.f32 %v2059, %v2251
        %v2253 = vpop.f32.mrb[0].mxu0
        %v2254 = vadd.f32 %v2061, %v2253
        %v2255 = vpop.f32.mrb[0].mxu0
        %v2256 = vadd.f32 %v2063, %v2255
        %v2257 = vpop.f32.mrb[0].mxu0
        %v2258 = vadd.f32 %v2065, %v2257
        %2259 = vmatprep.mubr.bf16.mxu0 %v1159
        %2260 = vmatmul.mubr.bf16.gmra.mrb[0].mxu0 %v1158
        %v2261 = vpop.f32.mrb[0].mxu0
        %v2262 = vadd.f32 %v2069, %v2261
        %v2263 = vpop.f32.mrb[0].mxu0
        %v2264 = vadd.f32 %v2071, %v2263
        %v2265 = vpop.f32.mrb[0].mxu0
        %v2266 = vadd.f32 %v2073, %v2265
        %v2267 = vpop.f32.mrb[0].mxu0
        %v2268 = vadd.f32 %v2075, %v2267
        %2269 = vmatprep.mubr.bf16.mxu0 %v1163
        %2270 = vmatmul.mubr.bf16.gmra.mrb[0].mxu0 %v1162
        %v2271 = vpop.f32.mrb[0].mxu0
        %v2272 = vadd.f32 %v2079, %v2271
        %v2273 = vpop.f32.mrb[0].mxu0
        %v2274 = vadd.f32 %v2081, %v2273
        %v2275 = vpop.f32.mrb[0].mxu0
        %v2276 = vadd.f32 %v2083, %v2275
        %v2277 = vpop.f32.mrb[0].mxu0
        %v2278 = vadd.f32 %v2085, %v2277
        %2279 = vmatprep.mubr.bf16.mxu0 %v1167
        %2280 = vmatmul.mubr.bf16.gmra.mrb[0].mxu0 %v1166
        %v2281 = vpop.f32.mrb[0].mxu0
        %v2282 = vadd.f32 %v2089, %v2281
        %v2283 = vpop.f32.mrb[0].mxu0
        %v2284 = vadd.f32 %v2091, %v2283
        %v2285 = vpop.f32.mrb[0].mxu0
        %v2286 = vadd.f32 %v2093, %v2285
        %v2287 = vpop.f32.mrb[0].mxu0
        %v2288 = vadd.f32 %v2095, %v2287
        %2289 = vmatprep.mubr.bf16.mxu0 %v1171
        %2290 = vmatmul.mubr.bf16.gmra.mrb[0].mxu0 %v1170
        %v2291 = vpop.f32.mrb[0].mxu0
        %v2292 = vadd.f32 %v2099, %v2291
        %v2293 = vpop.f32.mrb[0].mxu0
        %v2294 = vadd.f32 %v2101, %v2293
        %v2295 = vpop.f32.mrb[0].mxu0
        %v2296 = vadd.f32 %v2103, %v2295
        %v2297 = vpop.f32.mrb[0].mxu0
        %v2298 = vadd.f32 %v2105, %v2297
        %2299 = vmatprep.mubr.bf16.mxu0 %v1175
        %2300 = vmatmul.mubr.bf16.gmra.mrb[0].mxu0 %v1174
        %v2301 = vpop.f32.mrb[0].mxu0
        %v2302 = vadd.f32 %v2109, %v2301
        %v2303 = vpop.f32.mrb[0].mxu0
        %v2304 = vadd.f32 %v2111, %v2303
        %v2305 = vpop.f32.mrb[0].mxu0
        %v2306 = vadd.f32 %v2113, %v2305
        %v2307 = vpop.f32.mrb[0].mxu0
        %v2308 = vadd.f32 %v2115, %v2307
        %2309 = vmatprep.mubr.bf16.mxu0 %v1179
        %2310 = vmatmul.mubr.bf16.gmra.mrb[0].mxu0 %v1178
        %v2311 = vpop.f32.mrb[0].mxu0
        %v2312 = vadd.f32 %v2119, %v2311
        %v2313 = vpop.f32.mrb[0].mxu0
        %v2314 = vadd.f32 %v2121, %v2313
        %v2315 = vpop.f32.mrb[0].mxu0
        %v2316 = vadd.f32 %v2123, %v2315
        %v2317 = vpop.f32.mrb[0].mxu0
        %v2318 = vadd.f32 %v2125, %v2317
        %2319 = vmatprep.mubr.bf16.mxu0 %v1183
        %2320 = vmatmul.mubr.bf16.gmra.mrb[0].mxu0 %v1182
        %v2321 = vpop.f32.mrb[0].mxu0
        %v2322 = vadd.f32 %v2129, %v2321
        %v2323 = vpop.f32.mrb[0].mxu0
        %v2324 = vadd.f32 %v2131, %v2323
        %v2325 = vpop.f32.mrb[0].mxu0
        %v2326 = vadd.f32 %v2133, %v2325
        %v2327 = vpop.f32.mrb[0].mxu0
        %v2328 = vadd.f32 %v2135, %v2327
        %2329 = vmatprep.mubr.bf16.mxu0 %v1187
        %2330 = vmatmul.mubr.bf16.gmra.mrb[0].mxu0 %v1186
        %v2331 = vpop.f32.mrb[0].mxu0
        %v2332 = vadd.f32 %v2139, %v2331
        %v2333 = vpop.f32.mrb[0].mxu0
        %v2334 = vadd.f32 %v2141, %v2333
        %v2335 = vpop.f32.mrb[0].mxu0
        %v2336 = vadd.f32 %v2143, %v2335
        %v2337 = vpop.f32.mrb[0].mxu0
        %v2338 = vadd.f32 %v2145, %v2337
        %2339 = vmatprep.mubr.bf16.mxu0 %v1191
        %2340 = vmatmul.mubr.bf16.gmra.mrb[0].mxu0 %v1190
        %v2341 = vpop.f32.mrb[0].mxu0
        %v2342 = vadd.f32 %v2149, %v2341
        %v2343 = vpop.f32.mrb[0].mxu0
        %v2344 = vadd.f32 %v2151, %v2343
        %v2345 = vpop.f32.mrb[0].mxu0
        %v2346 = vadd.f32 %v2153, %v2345
        %v2347 = vpop.f32.mrb[0].mxu0
        %v2348 = vadd.f32 %v2155, %v2347
        %2349 = vmatprep.mubr.bf16.mxu0 %v1195
        %2350 = vmatmul.mubr.bf16.gmra.mrb[0].mxu0 %v1194
        %v2351 = vpop.f32.mrb[0].mxu0
        %v2352 = vadd.f32 %v2159, %v2351
        %v2353 = vpop.f32.mrb[0].mxu0
        %v2354 = vadd.f32 %v2161, %v2353
        %v2355 = vpop.f32.mrb[0].mxu0
        %v2356 = vadd.f32 %v2163, %v2355
        %v2357 = vpop.f32.mrb[0].mxu0
        %v2358 = vadd.f32 %v2165, %v2357
        %2359 = vmatprep.mubr.bf16.mxu0 %v1199
        %2360 = vmatmul.mubr.bf16.gmra.mrb[0].mxu0 %v1198
        %v2361 = vpop.f32.mrb[0].mxu0
        %v2362 = vadd.f32 %v2169, %v2361
        %v2363 = vpop.f32.mrb[0].mxu0
        %v2364 = vadd.f32 %v2171, %v2363
        %v2365 = vpop.f32.mrb[0].mxu0
        %v2366 = vadd.f32 %v2173, %v2365
        %v2367 = vpop.f32.mrb[0].mxu0
        %v2368 = vadd.f32 %v2175, %v2367
        %2369 = vmatprep.mubr.bf16.mxu0 %v1203
        %2370 = vmatmul.mubr.bf16.gmra.mrb[0].mxu0 %v1202
        %v2371 = vpop.f32.mrb[0].mxu0
        %v2372 = vadd.f32 %v2179, %v2371
        %v2373 = vpop.f32.mrb[0].mxu0
        %v2374 = vadd.f32 %v2181, %v2373
        %v2375 = vpop.f32.mrb[0].mxu0
        %v2376 = vadd.f32 %v2183, %v2375
        %v2377 = vpop.f32.mrb[0].mxu0
        %v2378 = vadd.f32 %v2185, %v2377
        %2379 = vdwg.mxu0
        %2380 = vmatprep.subr.bf16.mxu0 %v1741
        %2381 = vmatpush1.bf16.msra.mxu0 %v1740
        %2382 = vmatprep.subr.bf16.mxu0 %v1745
        %2383 = vmatpush1.bf16.msra.mxu0 %v1744
        %2384 = vmatprep.subr.bf16.mxu0 %v1749
        %2385 = vmatpush1.bf16.msra.mxu0 %v1748
        %2386 = vmatprep.subr.bf16.mxu0 %v1753
        %2387 = vmatpush1.bf16.msra.mxu0 %v1752
        %2388 = vmatprep.subr.bf16.mxu0 %v1757
        %2389 = vmatpush1.bf16.msra.mxu0 %v1756
        %2390 = vmatprep.subr.bf16.mxu0 %v1761
        %2391 = vmatpush1.bf16.msra.mxu0 %v1760
        %2392 = vmatprep.subr.bf16.mxu0 %v1765
        %2393 = vmatpush1.bf16.msra.mxu0 %v1764
        %2394 = vmatprep.subr.bf16.mxu0 %v1769
        %2395 = vmatpush1.bf16.msra.mxu0 %v1768
        %2396 = vmatprep.subr.bf16.mxu0 %v1773
        %2397 = vmatpush1.bf16.msra.mxu0 %v1772
        %2398 = vmatprep.subr.bf16.mxu0 %v1777
        %2399 = vmatpush1.bf16.msra.mxu0 %v1776
        %2400 = vmatprep.subr.bf16.mxu0 %v1781
        %2401 = vmatpush1.bf16.msra.mxu0 %v1780
        %2402 = vmatprep.subr.bf16.mxu0 %v1785
        %2403 = vmatpush1.bf16.msra.mxu0 %v1784
        %2404 = vmatprep.subr.bf16.mxu0 %v1789
        %2405 = vmatpush1.bf16.msra.mxu0 %v1788
        %2406 = vmatprep.subr.bf16.mxu0 %v1793
        %2407 = vmatpush1.bf16.msra.mxu0 %v1792
        %2408 = vmatprep.subr.bf16.mxu0 %v1797
        %2409 = vmatpush1.bf16.msra.mxu0 %v1796
        %2410 = vmatprep.subr.bf16.mxu0 %v1801
        %2411 = vmatpush1.bf16.msra.mxu0 %v1800
        %2412 = vmatprep.mubr.bf16.mxu0 %v1141
        %2413 = vmatmul.mubr.bf16.gmra.mrb[0].mxu0 %v1140
        %v2414 = vpop.f32.mrb[0].mxu0
        %v2415 = vadd.f32 %v1345, %v2414
        %v2416 = vpop.f32.mrb[0].mxu0
        %v2417 = vadd.f32 %v1349, %v2416
        %v2418 = vpop.f32.mrb[0].mxu0
        %v2419 = vadd.f32 %v1345, %v2418
        %v2420 = vpop.f32.mrb[0].mxu0
        %v2421 = vadd.f32 %v1349, %v2420
        %2422 = vmatprep.mubr.bf16.mxu0 %v1145
        %2423 = vmatmul.mubr.bf16.gmra.mrb[0].mxu0 %v1144
        %v2424 = vpop.f32.mrb[0].mxu0
        %v2425 = vadd.f32 %v1345, %v2424
        %v2426 = vpop.f32.mrb[0].mxu0
        %v2427 = vadd.f32 %v1349, %v2426
        %v2428 = vpop.f32.mrb[0].mxu0
        %v2429 = vadd.f32 %v1345, %v2428
        %v2430 = vpop.f32.mrb[0].mxu0
        %v2431 = vadd.f32 %v1349, %v2430
        %2432 = vmatprep.mubr.bf16.mxu0 %v1149
        %2433 = vmatmul.mubr.bf16.gmra.mrb[0].mxu0 %v1148
        %v2434 = vpop.f32.mrb[0].mxu0
        %v2435 = vadd.f32 %v1345, %v2434
        %v2436 = vpop.f32.mrb[0].mxu0
        %v2437 = vadd.f32 %v1349, %v2436
        %v2438 = vpop.f32.mrb[0].mxu0
        %v2439 = vadd.f32 %v1345, %v2438
        %v2440 = vpop.f32.mrb[0].mxu0
        %v2441 = vadd.f32 %v1349, %v2440
        %2442 = vmatprep.mubr.bf16.mxu0 %v1153
        %2443 = vmatmul.mubr.bf16.gmra.mrb[0].mxu0 %v1152
        %v2444 = vpop.f32.mrb[0].mxu0
        %v2445 = vadd.f32 %v1345, %v2444
        %v2446 = vpop.f32.mrb[0].mxu0
        %v2447 = vadd.f32 %v1349, %v2446
        %v2448 = vpop.f32.mrb[0].mxu0
        %v2449 = vadd.f32 %v1345, %v2448
        %v2450 = vpop.f32.mrb[0].mxu0
        %v2451 = vadd.f32 %v1349, %v2450
        %2452 = vmatprep.mubr.bf16.mxu0 %v1157
        %2453 = vmatmul.mubr.bf16.gmra.mrb[0].mxu0 %v1156
        %v2454 = vpop.f32.mrb[0].mxu0
        %v2455 = vadd.f32 %v1345, %v2454
        %v2456 = vpop.f32.mrb[0].mxu0
        %v2457 = vadd.f32 %v1349, %v2456
        %v2458 = vpop.f32.mrb[0].mxu0
        %v2459 = vadd.f32 %v1345, %v2458
        %v2460 = vpop.f32.mrb[0].mxu0
        %v2461 = vadd.f32 %v1349, %v2460
        %2462 = vmatprep.mubr.bf16.mxu0 %v1161
        %2463 = vmatmul.mubr.bf16.gmra.mrb[0].mxu0 %v1160
        %v2464 = vpop.f32.mrb[0].mxu0
        %v2465 = vadd.f32 %v1345, %v2464
        %v2466 = vpop.f32.mrb[0].mxu0
        %v2467 = vadd.f32 %v1349, %v2466
        %v2468 = vpop.f32.mrb[0].mxu0
        %v2469 = vadd.f32 %v1345, %v2468
        %v2470 = vpop.f32.mrb[0].mxu0
        %v2471 = vadd.f32 %v1349, %v2470
        %2472 = vmatprep.mubr.bf16.mxu0 %v1165
        %2473 = vmatmul.mubr.bf16.gmra.mrb[0].mxu0 %v1164
        %v2474 = vpop.f32.mrb[0].mxu0
        %v2475 = vadd.f32 %v1345, %v2474
        %v2476 = vpop.f32.mrb[0].mxu0
        %v2477 = vadd.f32 %v1349, %v2476
        %v2478 = vpop.f32.mrb[0].mxu0
        %v2479 = vadd.f32 %v1345, %v2478
        %v2480 = vpop.f32.mrb[0].mxu0
        %v2481 = vadd.f32 %v1349, %v2480
        %2482 = vmatprep.mubr.bf16.mxu0 %v1169
        %2483 = vmatmul.mubr.bf16.gmra.mrb[0].mxu0 %v1168
        %v2484 = vpop.f32.mrb[0].mxu0
        %v2485 = vadd.f32 %v1345, %v2484
        %v2486 = vpop.f32.mrb[0].mxu0
        %v2487 = vadd.f32 %v1349, %v2486
        %v2488 = vpop.f32.mrb[0].mxu0
        %v2489 = vadd.f32 %v1345, %v2488
        %v2490 = vpop.f32.mrb[0].mxu0
        %v2491 = vadd.f32 %v1349, %v2490
        %2492 = vmatprep.mubr.bf16.mxu0 %v1173
        %2493 = vmatmul.mubr.bf16.gmra.mrb[0].mxu0 %v1172
        %v2494 = vpop.f32.mrb[0].mxu0
        %v2495 = vadd.f32 %v1345, %v2494
        %v2496 = vpop.f32.mrb[0].mxu0
        %v2497 = vadd.f32 %v1349, %v2496
        %v2498 = vpop.f32.mrb[0].mxu0
        %v2499 = vadd.f32 %v1345, %v2498
        %v2500 = vpop.f32.mrb[0].mxu0
        %v2501 = vadd.f32 %v1349, %v2500
        %2502 = vmatprep.mubr.bf16.mxu0 %v1177
        %2503 = vmatmul.mubr.bf16.gmra.mrb[0].mxu0 %v1176
        %v2504 = vpop.f32.mrb[0].mxu0
        %v2505 = vadd.f32 %v1345, %v2504
        %v2506 = vpop.f32.mrb[0].mxu0
        %v2507 = vadd.f32 %v1349, %v2506
        %v2508 = vpop.f32.mrb[0].mxu0
        %v2509 = vadd.f32 %v1345, %v2508
        %v2510 = vpop.f32.mrb[0].mxu0
        %v2511 = vadd.f32 %v1349, %v2510
        %2512 = vmatprep.mubr.bf16.mxu0 %v1181
        %2513 = vmatmul.mubr.bf16.gmra.mrb[0].mxu0 %v1180
        %v2514 = vpop.f32.mrb[0].mxu0
        %v2515 = vadd.f32 %v1345, %v2514
        %v2516 = vpop.f32.mrb[0].mxu0
        %v2517 = vadd.f32 %v1349, %v2516
        %v2518 = vpop.f32.mrb[0].mxu0
        %v2519 = vadd.f32 %v1345, %v2518
        %v2520 = vpop.f32.mrb[0].mxu0
        %v2521 = vadd.f32 %v1349, %v2520
        %2522 = vmatprep.mubr.bf16.mxu0 %v1185
        %2523 = vmatmul.mubr.bf16.gmra.mrb[0].mxu0 %v1184
        %v2524 = vpop.f32.mrb[0].mxu0
        %v2525 = vadd.f32 %v1345, %v2524
        %v2526 = vpop.f32.mrb[0].mxu0
        %v2527 = vadd.f32 %v1349, %v2526
        %v2528 = vpop.f32.mrb[0].mxu0
        %v2529 = vadd.f32 %v1345, %v2528
        %v2530 = vpop.f32.mrb[0].mxu0
        %v2531 = vadd.f32 %v1349, %v2530
        %2532 = vmatprep.mubr.bf16.mxu0 %v1189
        %2533 = vmatmul.mubr.bf16.gmra.mrb[0].mxu0 %v1188
        %v2534 = vpop.f32.mrb[0].mxu0
        %v2535 = vadd.f32 %v1345, %v2534
        %v2536 = vpop.f32.mrb[0].mxu0
        %v2537 = vadd.f32 %v1349, %v2536
        %v2538 = vpop.f32.mrb[0].mxu0
        %v2539 = vadd.f32 %v1345, %v2538
        %v2540 = vpop.f32.mrb[0].mxu0
        %v2541 = vadd.f32 %v1349, %v2540
        %2542 = vmatprep.mubr.bf16.mxu0 %v1193
        %2543 = vmatmul.mubr.bf16.gmra.mrb[0].mxu0 %v1192
        %v2544 = vpop.f32.mrb[0].mxu0
        %v2545 = vadd.f32 %v1345, %v2544
        %v2546 = vpop.f32.mrb[0].mxu0
        %v2547 = vadd.f32 %v1349, %v2546
        %v2548 = vpop.f32.mrb[0].mxu0
        %v2549 = vadd.f32 %v1345, %v2548
        %v2550 = vpop.f32.mrb[0].mxu0
        %v2551 = vadd.f32 %v1349, %v2550
        %2552 = vmatprep.mubr.bf16.mxu0 %v1197
        %2553 = vmatmul.mubr.bf16.gmra.mrb[0].mxu0 %v1196
        %v2554 = vpop.f32.mrb[0].mxu0
        %v2555 = vadd.f32 %v1345, %v2554
        %v2556 = vpop.f32.mrb[0].mxu0
        %v2557 = vadd.f32 %v1349, %v2556
        %v2558 = vpop.f32.mrb[0].mxu0
        %v2559 = vadd.f32 %v1345, %v2558
        %v2560 = vpop.f32.mrb[0].mxu0
        %v2561 = vadd.f32 %v1349, %v2560
        %2562 = vmatprep.mubr.bf16.mxu0 %v1201
        %2563 = vmatmul.mubr.bf16.gmra.mrb[0].mxu0 %v1200
        %v2564 = vpop.f32.mrb[0].mxu0
        %v2565 = vadd.f32 %v1345, %v2564
        %v2566 = vpop.f32.mrb[0].mxu0
        %v2567 = vadd.f32 %v1349, %v2566
        %v2568 = vpop.f32.mrb[0].mxu0
        %v2569 = vadd.f32 %v1345, %v2568
        %v2570 = vpop.f32.mrb[0].mxu0
        %v2571 = vadd.f32 %v1349, %v2570
        %2572 = vdwg.mxu0
        %2573 = vmatprep.subr.bf16.mxu0 %v1805
        %2574 = vmatpush1.bf16.msra.mxu0 %v1804
        %2575 = vmatprep.subr.bf16.mxu0 %v1809
        %2576 = vmatpush1.bf16.msra.mxu0 %v1808
        %2577 = vmatprep.subr.bf16.mxu0 %v1813
        %2578 = vmatpush1.bf16.msra.mxu0 %v1812
        %2579 = vmatprep.subr.bf16.mxu0 %v1817
        %2580 = vmatpush1.bf16.msra.mxu0 %v1816
        %2581 = vmatprep.subr.bf16.mxu0 %v1821
        %2582 = vmatpush1.bf16.msra.mxu0 %v1820
        %2583 = vmatprep.subr.bf16.mxu0 %v1825
        %2584 = vmatpush1.bf16.msra.mxu0 %v1824
        %2585 = vmatprep.subr.bf16.mxu0 %v1829
        %2586 = vmatpush1.bf16.msra.mxu0 %v1828
        %2587 = vmatprep.subr.bf16.mxu0 %v1833
        %2588 = vmatpush1.bf16.msra.mxu0 %v1832
        %2589 = vmatprep.subr.bf16.mxu0 %v1837
        %2590 = vmatpush1.bf16.msra.mxu0 %v1836
        %2591 = vmatprep.subr.bf16.mxu0 %v1841
        %2592 = vmatpush1.bf16.msra.mxu0 %v1840
        %2593 = vmatprep.subr.bf16.mxu0 %v1845
        %2594 = vmatpush1.bf16.msra.mxu0 %v1844
        %2595 = vmatprep.subr.bf16.mxu0 %v1849
        %2596 = vmatpush1.bf16.msra.mxu0 %v1848
        %2597 = vmatprep.subr.bf16.mxu0 %v1853
        %2598 = vmatpush1.bf16.msra.mxu0 %v1852
        %2599 = vmatprep.subr.bf16.mxu0 %v1857
        %2600 = vmatpush1.bf16.msra.mxu0 %v1856
        %2601 = vmatprep.subr.bf16.mxu0 %v1861
        %2602 = vmatpush1.bf16.msra.mxu0 %v1860
        %2603 = vmatprep.subr.bf16.mxu0 %v1865
        %2604 = vmatpush1.bf16.msra.mxu0 %v1864
        %2605 = vmatprep.mubr.bf16.mxu0 %v1143
        %2606 = vmatmul.mubr.bf16.gmra.mrb[0].mxu0 %v1142
        %v2607 = vpop.f32.mrb[0].mxu0
        %v2608 = vadd.f32 %v2415, %v2607
        %v2609 = vpop.f32.mrb[0].mxu0
        %v2610 = vadd.f32 %v2417, %v2609
        %v2611 = vpop.f32.mrb[0].mxu0
        %v2612 = vadd.f32 %v2419, %v2611
        %v2613 = vpop.f32.mrb[0].mxu0
        %v2614 = vadd.f32 %v2421, %v2613
        %2615 = vmatprep.mubr.bf16.mxu0 %v1147
        %2616 = vmatmul.mubr.bf16.gmra.mrb[0].mxu0 %v1146
        %v2617 = vpop.f32.mrb[0].mxu0
        %v2618 = vadd.f32 %v2425, %v2617
        %v2619 = vpop.f32.mrb[0].mxu0
        %v2620 = vadd.f32 %v2427, %v2619
        %v2621 = vpop.f32.mrb[0].mxu0
        %v2622 = vadd.f32 %v2429, %v2621
        %v2623 = vpop.f32.mrb[0].mxu0
        %v2624 = vadd.f32 %v2431, %v2623
        %2625 = vmatprep.mubr.bf16.mxu0 %v1151
        %2626 = vmatmul.mubr.bf16.gmra.mrb[0].mxu0 %v1150
        %v2627 = vpop.f32.mrb[0].mxu0
        %v2628 = vadd.f32 %v2435, %v2627
        %v2629 = vpop.f32.mrb[0].mxu0
        %v2630 = vadd.f32 %v2437, %v2629
        %v2631 = vpop.f32.mrb[0].mxu0
        %v2632 = vadd.f32 %v2439, %v2631
        %v2633 = vpop.f32.mrb[0].mxu0
        %v2634 = vadd.f32 %v2441, %v2633
        %2635 = vmatprep.mubr.bf16.mxu0 %v1155
        %2636 = vmatmul.mubr.bf16.gmra.mrb[0].mxu0 %v1154
        %v2637 = vpop.f32.mrb[0].mxu0
        %v2638 = vadd.f32 %v2445, %v2637
        %v2639 = vpop.f32.mrb[0].mxu0
        %v2640 = vadd.f32 %v2447, %v2639
        %v2641 = vpop.f32.mrb[0].mxu0
        %v2642 = vadd.f32 %v2449, %v2641
        %v2643 = vpop.f32.mrb[0].mxu0
        %v2644 = vadd.f32 %v2451, %v2643
        %2645 = vmatprep.mubr.bf16.mxu0 %v1159
        %2646 = vmatmul.mubr.bf16.gmra.mrb[0].mxu0 %v1158
        %v2647 = vpop.f32.mrb[0].mxu0
        %v2648 = vadd.f32 %v2455, %v2647
        %v2649 = vpop.f32.mrb[0].mxu0
        %v2650 = vadd.f32 %v2457, %v2649
        %v2651 = vpop.f32.mrb[0].mxu0
        %v2652 = vadd.f32 %v2459, %v2651
        %v2653 = vpop.f32.mrb[0].mxu0
        %v2654 = vadd.f32 %v2461, %v2653
        %2655 = vmatprep.mubr.bf16.mxu0 %v1163
        %2656 = vmatmul.mubr.bf16.gmra.mrb[0].mxu0 %v1162
        %v2657 = vpop.f32.mrb[0].mxu0
        %v2658 = vadd.f32 %v2465, %v2657
        %v2659 = vpop.f32.mrb[0].mxu0
        %v2660 = vadd.f32 %v2467, %v2659
        %v2661 = vpop.f32.mrb[0].mxu0
        %v2662 = vadd.f32 %v2469, %v2661
        %v2663 = vpop.f32.mrb[0].mxu0
        %v2664 = vadd.f32 %v2471, %v2663
        %2665 = vmatprep.mubr.bf16.mxu0 %v1167
        %2666 = vmatmul.mubr.bf16.gmra.mrb[0].mxu0 %v1166
        %v2667 = vpop.f32.mrb[0].mxu0
        %v2668 = vadd.f32 %v2475, %v2667
        %v2669 = vpop.f32.mrb[0].mxu0
        %v2670 = vadd.f32 %v2477, %v2669
        %v2671 = vpop.f32.mrb[0].mxu0
        %v2672 = vadd.f32 %v2479, %v2671
        %v2673 = vpop.f32.mrb[0].mxu0
        %v2674 = vadd.f32 %v2481, %v2673
        %2675 = vmatprep.mubr.bf16.mxu0 %v1171
        %2676 = vmatmul.mubr.bf16.gmra.mrb[0].mxu0 %v1170
        %v2677 = vpop.f32.mrb[0].mxu0
        %v2678 = vadd.f32 %v2485, %v2677
        %v2679 = vpop.f32.mrb[0].mxu0
        %v2680 = vadd.f32 %v2487, %v2679
        %v2681 = vpop.f32.mrb[0].mxu0
        %v2682 = vadd.f32 %v2489, %v2681
        %v2683 = vpop.f32.mrb[0].mxu0
        %v2684 = vadd.f32 %v2491, %v2683
        %2685 = vmatprep.mubr.bf16.mxu0 %v1175
        %2686 = vmatmul.mubr.bf16.gmra.mrb[0].mxu0 %v1174
        %v2687 = vpop.f32.mrb[0].mxu0
        %v2688 = vadd.f32 %v2495, %v2687
        %v2689 = vpop.f32.mrb[0].mxu0
        %v2690 = vadd.f32 %v2497, %v2689
        %v2691 = vpop.f32.mrb[0].mxu0
        %v2692 = vadd.f32 %v2499, %v2691
        %v2693 = vpop.f32.mrb[0].mxu0
        %v2694 = vadd.f32 %v2501, %v2693
        %2695 = vmatprep.mubr.bf16.mxu0 %v1179
        %2696 = vmatmul.mubr.bf16.gmra.mrb[0].mxu0 %v1178
        %v2697 = vpop.f32.mrb[0].mxu0
        %v2698 = vadd.f32 %v2505, %v2697
        %v2699 = vpop.f32.mrb[0].mxu0
        %v2700 = vadd.f32 %v2507, %v2699
        %v2701 = vpop.f32.mrb[0].mxu0
        %v2702 = vadd.f32 %v2509, %v2701
        %v2703 = vpop.f32.mrb[0].mxu0
        %v2704 = vadd.f32 %v2511, %v2703
        %2705 = vmatprep.mubr.bf16.mxu0 %v1183
        %2706 = vmatmul.mubr.bf16.gmra.mrb[0].mxu0 %v1182
        %v2707 = vpop.f32.mrb[0].mxu0
        %v2708 = vadd.f32 %v2515, %v2707
        %v2709 = vpop.f32.mrb[0].mxu0
        %v2710 = vadd.f32 %v2517, %v2709
        %v2711 = vpop.f32.mrb[0].mxu0
        %v2712 = vadd.f32 %v2519, %v2711
        %v2713 = vpop.f32.mrb[0].mxu0
        %v2714 = vadd.f32 %v2521, %v2713
        %2715 = vmatprep.mubr.bf16.mxu0 %v1187
        %2716 = vmatmul.mubr.bf16.gmra.mrb[0].mxu0 %v1186
        %v2717 = vpop.f32.mrb[0].mxu0
        %v2718 = vadd.f32 %v2525, %v2717
        %v2719 = vpop.f32.mrb[0].mxu0
        %v2720 = vadd.f32 %v2527, %v2719
        %v2721 = vpop.f32.mrb[0].mxu0
        %v2722 = vadd.f32 %v2529, %v2721
        %v2723 = vpop.f32.mrb[0].mxu0
        %v2724 = vadd.f32 %v2531, %v2723
        %2725 = vmatprep.mubr.bf16.mxu0 %v1191
        %2726 = vmatmul.mubr.bf16.gmra.mrb[0].mxu0 %v1190
        %v2727 = vpop.f32.mrb[0].mxu0
        %v2728 = vadd.f32 %v2535, %v2727
        %v2729 = vpop.f32.mrb[0].mxu0
        %v2730 = vadd.f32 %v2537, %v2729
        %v2731 = vpop.f32.mrb[0].mxu0
        %v2732 = vadd.f32 %v2539, %v2731
        %v2733 = vpop.f32.mrb[0].mxu0
        %v2734 = vadd.f32 %v2541, %v2733
        %2735 = vmatprep.mubr.bf16.mxu0 %v1195
        %2736 = vmatmul.mubr.bf16.gmra.mrb[0].mxu0 %v1194
        %v2737 = vpop.f32.mrb[0].mxu0
        %v2738 = vadd.f32 %v2545, %v2737
        %v2739 = vpop.f32.mrb[0].mxu0
        %v2740 = vadd.f32 %v2547, %v2739
        %v2741 = vpop.f32.mrb[0].mxu0
        %v2742 = vadd.f32 %v2549, %v2741
        %v2743 = vpop.f32.mrb[0].mxu0
        %v2744 = vadd.f32 %v2551, %v2743
        %2745 = vmatprep.mubr.bf16.mxu0 %v1199
        %2746 = vmatmul.mubr.bf16.gmra.mrb[0].mxu0 %v1198
        %v2747 = vpop.f32.mrb[0].mxu0
        %v2748 = vadd.f32 %v2555, %v2747
        %v2749 = vpop.f32.mrb[0].mxu0
        %v2750 = vadd.f32 %v2557, %v2749
        %v2751 = vpop.f32.mrb[0].mxu0
        %v2752 = vadd.f32 %v2559, %v2751
        %v2753 = vpop.f32.mrb[0].mxu0
        %v2754 = vadd.f32 %v2561, %v2753
        %2755 = vmatprep.mubr.bf16.mxu0 %v1203
        %2756 = vmatmul.mubr.bf16.gmra.mrb[0].mxu0 %v1202
        %v2757 = vpop.f32.mrb[0].mxu0
        %v2758 = vadd.f32 %v2565, %v2757
        %v2759 = vpop.f32.mrb[0].mxu0
        %v2760 = vadd.f32 %v2567, %v2759
        %v2761 = vpop.f32.mrb[0].mxu0
        %v2762 = vadd.f32 %v2569, %v2761
        %v2763 = vpop.f32.mrb[0].mxu0
        %v2764 = vadd.f32 %v2571, %v2763
        %2765 = vdwg.mxu0
        %v2766 = vmax.f32 %v2222, 0.0
        %v2767 = vmax.f32 %v2224, 0.0
        %v2768 = vmax.f32 %v2608, 0.0
        %v2769 = vmax.f32 %v2610, 0.0
        %v2770 = vmax.f32 %v2226, 0.0
        %v2771 = vmax.f32 %v2228, 0.0
        %v2772 = vmax.f32 %v2612, 0.0
        %v2773 = vmax.f32 %v2614, 0.0
        %v2774 = vmax.f32 %v2232, 0.0
        %v2775 = vmax.f32 %v2234, 0.0
        %v2776 = vmax.f32 %v2618, 0.0
        %v2777 = vmax.f32 %v2620, 0.0
        %v2778 = vmax.f32 %v2236, 0.0
        %v2779 = vmax.f32 %v2238, 0.0
        %v2780 = vmax.f32 %v2622, 0.0
        %v2781 = vmax.f32 %v2624, 0.0
        %v2782 = vmax.f32 %v2242, 0.0
        %v2783 = vmax.f32 %v2244, 0.0
        %v2784 = vmax.f32 %v2628, 0.0
        %v2785 = vmax.f32 %v2630, 0.0
        %v2786 = vmax.f32 %v2246, 0.0
        %v2787 = vmax.f32 %v2248, 0.0
        %v2788 = vmax.f32 %v2632, 0.0
        %v2789 = vmax.f32 %v2634, 0.0
        %v2790 = vmax.f32 %v2252, 0.0
        %v2791 = vmax.f32 %v2254, 0.0
        %v2792 = vmax.f32 %v2638, 0.0
        %v2793 = vmax.f32 %v2640, 0.0
        %v2794 = vmax.f32 %v2256, 0.0
        %v2795 = vmax.f32 %v2258, 0.0
        %v2796 = vmax.f32 %v2642, 0.0
        %v2797 = vmax.f32 %v2644, 0.0
        %v2798 = vmax.f32 %v2262, 0.0
        %v2799 = vmax.f32 %v2264, 0.0
        %v2800 = vmax.f32 %v2648, 0.0
        %v2801 = vmax.f32 %v2650, 0.0
        %v2802 = vmax.f32 %v2266, 0.0
        %v2803 = vmax.f32 %v2268, 0.0
        %v2804 = vmax.f32 %v2652, 0.0
        %v2805 = vmax.f32 %v2654, 0.0
        %v2806 = vmax.f32 %v2272, 0.0
        %v2807 = vmax.f32 %v2274, 0.0
        %v2808 = vmax.f32 %v2658, 0.0
        %v2809 = vmax.f32 %v2660, 0.0
        %v2810 = vmax.f32 %v2276, 0.0
        %v2811 = vmax.f32 %v2278, 0.0
        %v2812 = vmax.f32 %v2662, 0.0
        %v2813 = vmax.f32 %v2664, 0.0
        %v2814 = vmax.f32 %v2282, 0.0
        %v2815 = vmax.f32 %v2284, 0.0
        %v2816 = vmax.f32 %v2668, 0.0
        %v2817 = vmax.f32 %v2670, 0.0
        %v2818 = vmax.f32 %v2286, 0.0
        %v2819 = vmax.f32 %v2288, 0.0
        %v2820 = vmax.f32 %v2672, 0.0
        %v2821 = vmax.f32 %v2674, 0.0
        %v2822 = vmax.f32 %v2292, 0.0
        %v2823 = vmax.f32 %v2294, 0.0
        %v2824 = vmax.f32 %v2678, 0.0
        %v2825 = vmax.f32 %v2680, 0.0
        %v2826 = vmax.f32 %v2296, 0.0
        %v2827 = vmax.f32 %v2298, 0.0
        %v2828 = vmax.f32 %v2682, 0.0
        %v2829 = vmax.f32 %v2684, 0.0
        %v2830 = vmax.f32 %v2302, 0.0
        %v2831 = vmax.f32 %v2304, 0.0
        %v2832 = vmax.f32 %v2688, 0.0
        %v2833 = vmax.f32 %v2690, 0.0
        %v2834 = vmax.f32 %v2306, 0.0
        %v2835 = vmax.f32 %v2308, 0.0
        %v2836 = vmax.f32 %v2692, 0.0
        %v2837 = vmax.f32 %v2694, 0.0
        %v2838 = vmax.f32 %v2312, 0.0
        %v2839 = vmax.f32 %v2314, 0.0
        %v2840 = vmax.f32 %v2698, 0.0
        %v2841 = vmax.f32 %v2700, 0.0
        %v2842 = vmax.f32 %v2316, 0.0
        %v2843 = vmax.f32 %v2318, 0.0
        %v2844 = vmax.f32 %v2702, 0.0
        %v2845 = vmax.f32 %v2704, 0.0
        %v2846 = vmax.f32 %v2322, 0.0
        %v2847 = vmax.f32 %v2324, 0.0
        %v2848 = vmax.f32 %v2708, 0.0
        %v2849 = vmax.f32 %v2710, 0.0
        %v2850 = vmax.f32 %v2326, 0.0
        %v2851 = vmax.f32 %v2328, 0.0
        %v2852 = vmax.f32 %v2712, 0.0
        %v2853 = vmax.f32 %v2714, 0.0
        %v2854 = vmax.f32 %v2332, 0.0
        %v2855 = vmax.f32 %v2334, 0.0
        %v2856 = vmax.f32 %v2718, 0.0
        %v2857 = vmax.f32 %v2720, 0.0
        %v2858 = vmax.f32 %v2336, 0.0
        %v2859 = vmax.f32 %v2338, 0.0
        %v2860 = vmax.f32 %v2722, 0.0
        %v2861 = vmax.f32 %v2724, 0.0
        %v2862 = vmax.f32 %v2342, 0.0
        %v2863 = vmax.f32 %v2344, 0.0
        %v2864 = vmax.f32 %v2728, 0.0
        %v2865 = vmax.f32 %v2730, 0.0
        %v2866 = vmax.f32 %v2346, 0.0
        %v2867 = vmax.f32 %v2348, 0.0
        %v2868 = vmax.f32 %v2732, 0.0
        %v2869 = vmax.f32 %v2734, 0.0
        %v2870 = vmax.f32 %v2352, 0.0
        %v2871 = vmax.f32 %v2354, 0.0
        %v2872 = vmax.f32 %v2738, 0.0
        %v2873 = vmax.f32 %v2740, 0.0
        %v2874 = vmax.f32 %v2356, 0.0
        %v2875 = vmax.f32 %v2358, 0.0
        %v2876 = vmax.f32 %v2742, 0.0
        %v2877 = vmax.f32 %v2744, 0.0
        %v2878 = vmax.f32 %v2362, 0.0
        %v2879 = vmax.f32 %v2364, 0.0
        %v2880 = vmax.f32 %v2748, 0.0
        %v2881 = vmax.f32 %v2750, 0.0
        %v2882 = vmax.f32 %v2366, 0.0
        %v2883 = vmax.f32 %v2368, 0.0
        %v2884 = vmax.f32 %v2752, 0.0
        %v2885 = vmax.f32 %v2754, 0.0
        %v2886 = vmax.f32 %v2372, 0.0
        %v2887 = vmax.f32 %v2374, 0.0
        %v2888 = vmax.f32 %v2758, 0.0
        %v2889 = vmax.f32 %v2760, 0.0
        %v2890 = vmax.f32 %v2376, 0.0
        %v2891 = vmax.f32 %v2378, 0.0
        %v2892 = vmax.f32 %v2762, 0.0
        %v2893 = vmax.f32 %v2764, 0.0
        %v2894 = vpack.c.bf16 %v2770, %v2766
        %v2895 = vpack.c.bf16 %v2771, %v2767
        %v2896 = vpack.c.bf16 %v2772, %v2768
        %v2897 = vpack.c.bf16 %v2773, %v2769
        %v2898 = vpack.c.bf16 %v2778, %v2774
        %v2899 = vpack.c.bf16 %v2779, %v2775
        %v2900 = vpack.c.bf16 %v2780, %v2776
        %v2901 = vpack.c.bf16 %v2781, %v2777
        %v2902 = vpack.c.bf16 %v2786, %v2782
        %v2903 = vpack.c.bf16 %v2787, %v2783
        %v2904 = vpack.c.bf16 %v2788, %v2784
        %v2905 = vpack.c.bf16 %v2789, %v2785
        %v2906 = vpack.c.bf16 %v2794, %v2790
        %v2907 = vpack.c.bf16 %v2795, %v2791
        %v2908 = vpack.c.bf16 %v2796, %v2792
        %v2909 = vpack.c.bf16 %v2797, %v2793
        %v2910 = vpack.c.bf16 %v2802, %v2798
        %v2911 = vpack.c.bf16 %v2803, %v2799
        %v2912 = vpack.c.bf16 %v2804, %v2800
        %v2913 = vpack.c.bf16 %v2805, %v2801
        %v2914 = vpack.c.bf16 %v2810, %v2806
        %v2915 = vpack.c.bf16 %v2811, %v2807
        %v2916 = vpack.c.bf16 %v2812, %v2808
        %v2917 = vpack.c.bf16 %v2813, %v2809
        %v2918 = vpack.c.bf16 %v2818, %v2814
        %v2919 = vpack.c.bf16 %v2819, %v2815
        %v2920 = vpack.c.bf16 %v2820, %v2816
        %v2921 = vpack.c.bf16 %v2821, %v2817
        %v2922 = vpack.c.bf16 %v2826, %v2822
        %v2923 = vpack.c.bf16 %v2827, %v2823
        %v2924 = vpack.c.bf16 %v2828, %v2824
        %v2925 = vpack.c.bf16 %v2829, %v2825
        %v2926 = vpack.c.bf16 %v2834, %v2830
        %v2927 = vpack.c.bf16 %v2835, %v2831
        %v2928 = vpack.c.bf16 %v2836, %v2832
        %v2929 = vpack.c.bf16 %v2837, %v2833
        %v2930 = vpack.c.bf16 %v2842, %v2838
        %v2931 = vpack.c.bf16 %v2843, %v2839
        %v2932 = vpack.c.bf16 %v2844, %v2840
        %v2933 = vpack.c.bf16 %v2845, %v2841
        %v2934 = vpack.c.bf16 %v2850, %v2846
        %v2935 = vpack.c.bf16 %v2851, %v2847
        %v2936 = vpack.c.bf16 %v2852, %v2848
        %v2937 = vpack.c.bf16 %v2853, %v2849
        %v2938 = vpack.c.bf16 %v2858, %v2854
        %v2939 = vpack.c.bf16 %v2859, %v2855
        %v2940 = vpack.c.bf16 %v2860, %v2856
        %v2941 = vpack.c.bf16 %v2861, %v2857
        %v2942 = vpack.c.bf16 %v2866, %v2862
        %v2943 = vpack.c.bf16 %v2867, %v2863
        %v2944 = vpack.c.bf16 %v2868, %v2864
        %v2945 = vpack.c.bf16 %v2869, %v2865
        %v2946 = vpack.c.bf16 %v2874, %v2870
        %v2947 = vpack.c.bf16 %v2875, %v2871
        %v2948 = vpack.c.bf16 %v2876, %v2872
        %v2949 = vpack.c.bf16 %v2877, %v2873
        %v2950 = vpack.c.bf16 %v2882, %v2878
        %v2951 = vpack.c.bf16 %v2883, %v2879
        %v2952 = vpack.c.bf16 %v2884, %v2880
        %v2953 = vpack.c.bf16 %v2885, %v2881
        %v2954 = vpack.c.bf16 %v2890, %v2886
        %v2955 = vpack.c.bf16 %v2891, %v2887
        %v2956 = vpack.c.bf16 %v2892, %v2888
        %v2957 = vpack.c.bf16 %v2893, %v2889
        %v3022 = vunpack.c.l.b16 %v2894
        %v3023 = vunpack.c.l.b16 %v2895
        %v3024 = vunpack.c.l.b16 %v2896
        %v3025 = vunpack.c.l.b16 %v2897
        %v3026 = vunpack.c.h.b16 %v2894
        %v3027 = vunpack.c.h.b16 %v2895
        %v3028 = vunpack.c.h.b16 %v2896
        %v3029 = vunpack.c.h.b16 %v2897
        %v3030 = vunpack.c.l.b16 %v2898
        %v3031 = vunpack.c.l.b16 %v2899
        %v3032 = vunpack.c.l.b16 %v2900
        %v3033 = vunpack.c.l.b16 %v2901
        %v3034 = vunpack.c.h.b16 %v2898
        %v3035 = vunpack.c.h.b16 %v2899
        %v3036 = vunpack.c.h.b16 %v2900
        %v3037 = vunpack.c.h.b16 %v2901
        %v3038 = vunpack.c.l.b16 %v2902
        %v3039 = vunpack.c.l.b16 %v2903
        %v3040 = vunpack.c.l.b16 %v2904
        %v3041 = vunpack.c.l.b16 %v2905
        %v3042 = vunpack.c.h.b16 %v2902
        %v3043 = vunpack.c.h.b16 %v2903
        %v3044 = vunpack.c.h.b16 %v2904
        %v3045 = vunpack.c.h.b16 %v2905
        %v3046 = vunpack.c.l.b16 %v2906
        %v3047 = vunpack.c.l.b16 %v2907
        %v3048 = vunpack.c.l.b16 %v2908
        %v3049 = vunpack.c.l.b16 %v2909
        %v3050 = vunpack.c.h.b16 %v2906
        %v3051 = vunpack.c.h.b16 %v2907
        %v3052 = vunpack.c.h.b16 %v2908
        %v3053 = vunpack.c.h.b16 %v2909
        %v3054 = vunpack.c.l.b16 %v2910
        %v3055 = vunpack.c.l.b16 %v2911
        %v3056 = vunpack.c.l.b16 %v2912
        %v3057 = vunpack.c.l.b16 %v2913
        %v3058 = vunpack.c.h.b16 %v2910
        %v3059 = vunpack.c.h.b16 %v2911
        %v3060 = vunpack.c.h.b16 %v2912
        %v3061 = vunpack.c.h.b16 %v2913
        %v3062 = vunpack.c.l.b16 %v2914
        %v3063 = vunpack.c.l.b16 %v2915
        %v3064 = vunpack.c.l.b16 %v2916
        %v3065 = vunpack.c.l.b16 %v2917
        %v3066 = vunpack.c.h.b16 %v2914
        %v3067 = vunpack.c.h.b16 %v2915
        %v3068 = vunpack.c.h.b16 %v2916
        %v3069 = vunpack.c.h.b16 %v2917
        %v3070 = vunpack.c.l.b16 %v2918
        %v3071 = vunpack.c.l.b16 %v2919
        %v3072 = vunpack.c.l.b16 %v2920
        %v3073 = vunpack.c.l.b16 %v2921
        %v3074 = vunpack.c.h.b16 %v2918
        %v3075 = vunpack.c.h.b16 %v2919
        %v3076 = vunpack.c.h.b16 %v2920
        %v3077 = vunpack.c.h.b16 %v2921
        %v3078 = vunpack.c.l.b16 %v2922
        %v3079 = vunpack.c.l.b16 %v2923
        %v3080 = vunpack.c.l.b16 %v2924
        %v3081 = vunpack.c.l.b16 %v2925
        %v3082 = vunpack.c.h.b16 %v2922
        %v3083 = vunpack.c.h.b16 %v2923
        %v3084 = vunpack.c.h.b16 %v2924
        %v3085 = vunpack.c.h.b16 %v2925
        %v3086 = vunpack.c.l.b16 %v2926
        %v3087 = vunpack.c.l.b16 %v2927
        %v3088 = vunpack.c.l.b16 %v2928
        %v3089 = vunpack.c.l.b16 %v2929
        %v3090 = vunpack.c.h.b16 %v2926
        %v3091 = vunpack.c.h.b16 %v2927
        %v3092 = vunpack.c.h.b16 %v2928
        %v3093 = vunpack.c.h.b16 %v2929
        %v3094 = vunpack.c.l.b16 %v2930
        %v3095 = vunpack.c.l.b16 %v2931
        %v3096 = vunpack.c.l.b16 %v2932
        %v3097 = vunpack.c.l.b16 %v2933
        %v3098 = vunpack.c.h.b16 %v2930
        %v3099 = vunpack.c.h.b16 %v2931
        %v3100 = vunpack.c.h.b16 %v2932
        %v3101 = vunpack.c.h.b16 %v2933
        %v3102 = vunpack.c.l.b16 %v2934
        %v3103 = vunpack.c.l.b16 %v2935
        %v3104 = vunpack.c.l.b16 %v2936
        %v3105 = vunpack.c.l.b16 %v2937
        %v3106 = vunpack.c.h.b16 %v2934
        %v3107 = vunpack.c.h.b16 %v2935
        %v3108 = vunpack.c.h.b16 %v2936
        %v3109 = vunpack.c.h.b16 %v2937
        %v3110 = vunpack.c.l.b16 %v2938
        %v3111 = vunpack.c.l.b16 %v2939
        %v3112 = vunpack.c.l.b16 %v2940
        %v3113 = vunpack.c.l.b16 %v2941
        %v3114 = vunpack.c.h.b16 %v2938
        %v3115 = vunpack.c.h.b16 %v2939
        %v3116 = vunpack.c.h.b16 %v2940
        %v3117 = vunpack.c.h.b16 %v2941
        %v3118 = vunpack.c.l.b16 %v2942
        %v3119 = vunpack.c.l.b16 %v2943
        %v3120 = vunpack.c.l.b16 %v2944
        %v3121 = vunpack.c.l.b16 %v2945
        %v3122 = vunpack.c.h.b16 %v2942
        %v3123 = vunpack.c.h.b16 %v2943
        %v3124 = vunpack.c.h.b16 %v2944
        %v3125 = vunpack.c.h.b16 %v2945
        %v3126 = vunpack.c.l.b16 %v2946
        %v3127 = vunpack.c.l.b16 %v2947
        %v3128 = vunpack.c.l.b16 %v2948
        %v3129 = vunpack.c.l.b16 %v2949
        %v3130 = vunpack.c.h.b16 %v2946
        %v3131 = vunpack.c.h.b16 %v2947
        %v3132 = vunpack.c.h.b16 %v2948
        %v3133 = vunpack.c.h.b16 %v2949
        %v3134 = vunpack.c.l.b16 %v2950
        %v3135 = vunpack.c.l.b16 %v2951
        %v3136 = vunpack.c.l.b16 %v2952
        %v3137 = vunpack.c.l.b16 %v2953
        %v3138 = vunpack.c.h.b16 %v2950
        %v3139 = vunpack.c.h.b16 %v2951
        %v3140 = vunpack.c.h.b16 %v2952
        %v3141 = vunpack.c.h.b16 %v2953
        %v3142 = vunpack.c.l.b16 %v2954
        %v3143 = vunpack.c.l.b16 %v2955
        %v3144 = vunpack.c.l.b16 %v2956
        %v3145 = vunpack.c.l.b16 %v2957
        %v3146 = vunpack.c.h.b16 %v2954
        %v3147 = vunpack.c.h.b16 %v2955
        %v3148 = vunpack.c.h.b16 %v2956
        %v3149 = vunpack.c.h.b16 %v2957
        %v3150 = vpack.c.b16 %v3023, %v3022
        %v3151 = vpack.c.b16 %v3025, %v3024
        %v3152 = vpack.c.b16 %v3027, %v3026
        %v3153 = vpack.c.b16 %v3029, %v3028
        %v3154 = vpack.c.b16 %v3031, %v3030
        %v3155 = vpack.c.b16 %v3033, %v3032
        %v3156 = vpack.c.b16 %v3035, %v3034
        %v3157 = vpack.c.b16 %v3037, %v3036
        %v3158 = vpack.c.b16 %v3039, %v3038
        %v3159 = vpack.c.b16 %v3041, %v3040
        %v3160 = vpack.c.b16 %v3043, %v3042
        %v3161 = vpack.c.b16 %v3045, %v3044
        %v3162 = vpack.c.b16 %v3047, %v3046
        %v3163 = vpack.c.b16 %v3049, %v3048
        %v3164 = vpack.c.b16 %v3051, %v3050
        %v3165 = vpack.c.b16 %v3053, %v3052
        %v3166 = vpack.c.b16 %v3055, %v3054
        %v3167 = vpack.c.b16 %v3057, %v3056
        %v3168 = vpack.c.b16 %v3059, %v3058
        %v3169 = vpack.c.b16 %v3061, %v3060
        %v3170 = vpack.c.b16 %v3063, %v3062
        %v3171 = vpack.c.b16 %v3065, %v3064
        %v3172 = vpack.c.b16 %v3067, %v3066
        %v3173 = vpack.c.b16 %v3069, %v3068
        %v3174 = vpack.c.b16 %v3071, %v3070
        %v3175 = vpack.c.b16 %v3073, %v3072
        %v3176 = vpack.c.b16 %v3075, %v3074
        %v3177 = vpack.c.b16 %v3077, %v3076
        %v3178 = vpack.c.b16 %v3079, %v3078
        %v3179 = vpack.c.b16 %v3081, %v3080
        %v3180 = vpack.c.b16 %v3083, %v3082
        %v3181 = vpack.c.b16 %v3085, %v3084
        %v3182 = vpack.c.b16 %v3087, %v3086
        %v3183 = vpack.c.b16 %v3089, %v3088
        %v3184 = vpack.c.b16 %v3091, %v3090
        %v3185 = vpack.c.b16 %v3093, %v3092
        %v3186 = vpack.c.b16 %v3095, %v3094
        %v3187 = vpack.c.b16 %v3097, %v3096
        %v3188 = vpack.c.b16 %v3099, %v3098
        %v3189 = vpack.c.b16 %v3101, %v3100
        %v3190 = vpack.c.b16 %v3103, %v3102
        %v3191 = vpack.c.b16 %v3105, %v3104
        %v3192 = vpack.c.b16 %v3107, %v3106
        %v3193 = vpack.c.b16 %v3109, %v3108
        %v3194 = vpack.c.b16 %v3111, %v3110
        %v3195 = vpack.c.b16 %v3113, %v3112
        %v3196 = vpack.c.b16 %v3115, %v3114
        %v3197 = vpack.c.b16 %v3117, %v3116
        %v3198 = vpack.c.b16 %v3119, %v3118
        %v3199 = vpack.c.b16 %v3121, %v3120
        %v3200 = vpack.c.b16 %v3123, %v3122
        %v3201 = vpack.c.b16 %v3125, %v3124
        %v3202 = vpack.c.b16 %v3127, %v3126
        %v3203 = vpack.c.b16 %v3129, %v3128
        %v3204 = vpack.c.b16 %v3131, %v3130
        %v3205 = vpack.c.b16 %v3133, %v3132
        %v3206 = vpack.c.b16 %v3135, %v3134
        %v3207 = vpack.c.b16 %v3137, %v3136
        %v3208 = vpack.c.b16 %v3139, %v3138
        %v3209 = vpack.c.b16 %v3141, %v3140
        %v3210 = vpack.c.b16 %v3143, %v3142
        %v3211 = vpack.c.b16 %v3145, %v3144
        %v3212 = vpack.c.b16 %v3147, %v3146
        %v3213 = vpack.c.b16 %v3149, %v3148
        %3278 = vst [vmem:[%s233] sm:$0xff] %v3150
        %3279 = vst [vmem:[%s233 + $0x8] sm:$0xff] %v3151
        %3280 = vst [vmem:[%s233 + $0x10] sm:$0xff] %v3152
        %3281 = vst [vmem:[%s233 + $0x18] sm:$0xff] %v3153
        %3282 = vst [vmem:[%s233 + $0x20] sm:$0xff] %v3154
        %3283 = vst [vmem:[%s233 + $0x28] sm:$0xff] %v3155
        %3284 = vst [vmem:[%s233 + $0x30] sm:$0xff] %v3156
        %3285 = vst [vmem:[%s233 + $0x38] sm:$0xff] %v3157
        %3286 = vst [vmem:[%s233 + $0x40] sm:$0xff] %v3158
        %3287 = vst [vmem:[%s233 + $0x48] sm:$0xff] %v3159
        %3288 = vst [vmem:[%s233 + $0x50] sm:$0xff] %v3160
        %3289 = vst [vmem:[%s233 + $0x58] sm:$0xff] %v3161
        %3290 = vst [vmem:[%s233 + $0x60] sm:$0xff] %v3162
        %3291 = vst [vmem:[%s233 + $0x68] sm:$0xff] %v3163
        %3292 = vst [vmem:[%s233 + $0x70] sm:$0xff] %v3164
        %3293 = vst [vmem:[%s233 + $0x78] sm:$0xff] %v3165
        %3294 = vst [vmem:[%s233 + $0x80] sm:$0xff] %v3166
        %3295 = vst [vmem:[%s233 + $0x88] sm:$0xff] %v3167
        %3296 = vst [vmem:[%s233 + $0x90] sm:$0xff] %v3168
        %3297 = vst [vmem:[%s233 + $0x98] sm:$0xff] %v3169
        %3298 = vst [vmem:[%s233 + $0xa0] sm:$0xff] %v3170
        %3299 = vst [vmem:[%s233 + $0xa8] sm:$0xff] %v3171
        %3300 = vst [vmem:[%s233 + $0xb0] sm:$0xff] %v3172
        %3301 = vst [vmem:[%s233 + $0xb8] sm:$0xff] %v3173
        %3302 = vst [vmem:[%s233 + $0xc0] sm:$0xff] %v3174
        %3303 = vst [vmem:[%s233 + $0xc8] sm:$0xff] %v3175
        %3304 = vst [vmem:[%s233 + $0xd0] sm:$0xff] %v3176
        %3305 = vst [vmem:[%s233 + $0xd8] sm:$0xff] %v3177
        %3306 = vst [vmem:[%s233 + $0xe0] sm:$0xff] %v3178
        %3307 = vst [vmem:[%s233 + $0xe8] sm:$0xff] %v3179
        %3308 = vst [vmem:[%s233 + $0xf0] sm:$0xff] %v3180
        %3309 = vst [vmem:[%s233 + $0xf8] sm:$0xff] %v3181
        %3310 = vst [vmem:[%s233 + $0x100] sm:$0xff] %v3182
        %3311 = vst [vmem:[%s233 + $0x108] sm:$0xff] %v3183
        %3312 = vst [vmem:[%s233 + $0x110] sm:$0xff] %v3184
        %3313 = vst [vmem:[%s233 + $0x118] sm:$0xff] %v3185
        %3314 = vst [vmem:[%s233 + $0x120] sm:$0xff] %v3186
        %3315 = vst [vmem:[%s233 + $0x128] sm:$0xff] %v3187
        %3316 = vst [vmem:[%s233 + $0x130] sm:$0xff] %v3188
        %3317 = vst [vmem:[%s233 + $0x138] sm:$0xff] %v3189
        %3318 = vst [vmem:[%s233 + $0x140] sm:$0xff] %v3190
        %3319 = vst [vmem:[%s233 + $0x148] sm:$0xff] %v3191
        %3320 = vst [vmem:[%s233 + $0x150] sm:$0xff] %v3192
        %3321 = vst [vmem:[%s233 + $0x158] sm:$0xff] %v3193
        %3322 = vst [vmem:[%s233 + $0x160] sm:$0xff] %v3194
        %3323 = vst [vmem:[%s233 + $0x168] sm:$0xff] %v3195
        %3324 = vst [vmem:[%s233 + $0x170] sm:$0xff] %v3196
        %3325 = vst [vmem:[%s233 + $0x178] sm:$0xff] %v3197
        %3326 = vst [vmem:[%s233 + $0x180] sm:$0xff] %v3198
        %3327 = vst [vmem:[%s233 + $0x188] sm:$0xff] %v3199
        %3328 = vst [vmem:[%s233 + $0x190] sm:$0xff] %v3200
        %3329 = vst [vmem:[%s233 + $0x198] sm:$0xff] %v3201
        %3330 = vst [vmem:[%s233 + $0x1a0] sm:$0xff] %v3202
        %3331 = vst [vmem:[%s233 + $0x1a8] sm:$0xff] %v3203
        %3332 = vst [vmem:[%s233 + $0x1b0] sm:$0xff] %v3204
        %3333 = vst [vmem:[%s233 + $0x1b8] sm:$0xff] %v3205
        %3334 = vst [vmem:[%s233 + $0x1c0] sm:$0xff] %v3206
        %3335 = vst [vmem:[%s233 + $0x1c8] sm:$0xff] %v3207
        %3336 = vst [vmem:[%s233 + $0x1d0] sm:$0xff] %v3208
        %3337 = vst [vmem:[%s233 + $0x1d8] sm:$0xff] %v3209
        %3338 = vst [vmem:[%s233 + $0x1e0] sm:$0xff] %v3210
        %3339 = vst [vmem:[%s233 + $0x1e8] sm:$0xff] %v3211
        %3340 = vst [vmem:[%s233 + $0x1f0] sm:$0xff] %v3212
        %3341 = vst [vmem:[%s233 + $0x1f8] sm:$0xff] %v3213
        %s3342 = sand.u32 %s138, 1
        %s3343 = scalar_lea.sflag [#allocation5], %s3342
        %s3344 = sand.u32 %s138, 1
        %s3345 = smul.addr %s3344, 512
        %s3346 = scalar_lea.vmem [#allocation6], %s3345
        // Predicated region
        $region45: #{tpu_custom_call.1} parent=39 // pred_check
          %p3347 = pneg %p148
        $region46: #{tpu_custom_call.1} parent=39 // pred_check_branch
          %3349 = sbr.rel (%p3347) target = $region48
        $region47: #{tpu_custom_call.1} parent=39 // pred_region
          %s3350 = smul.u32 32, %s20
          %s3352 = ssub.s32 8192, 8192
          %3353 = vsyncadd %s3343, %s3352
          %s3354 = smul.addr %s3350, 4
          %s3355 = smul.addr %s3354, 64
          %s3356 = scalar_lea.hbm %s5, %s3355
          %s3357 = sshll.u32 %s3346, 4
          %s3358 = int_to_ptr.vmem [resolvable:$true] %s3357
          %3363 = dma.vmem_to_hbm [thread:$0]  %s3358, 8192, %s3356, %s3343, 256, 256, 16
        $region48: #{tpu_custom_call.1} parent=39 // pred_fallthru
          _
      $region40: #{tpu_custom_call.1} parent=5 // pred_fallthru
        _
      %p3364 = scmp.le.s32.totalorder 2, %s15
      // Predicated region
      $region49: #{tpu_custom_call.1} parent=5 // pred_check
        %p3365 = pneg %p3364
      $region50: #{tpu_custom_call.1} parent=5 // pred_check_branch
        %3367 = sbr.rel (%p3365) target = $region52
      $region51: #{tpu_custom_call.1} parent=5 // pred_region
        %s3368 = ssub.s32 %s15, 2
        // Predicated region
        $region53: #{tpu_custom_call.1} parent=51 // pred_check
          %p3369 = pneg %p154
        $region54: #{tpu_custom_call.1} parent=51 // pred_check_branch
          %3371 = sbr.rel (%p3369) target = $region56
        $region55: #{tpu_custom_call.1} parent=51 // pred_region
          %s3372 = sand.u32 %s139, 1
          %s3373 = scalar_lea.sflag [#allocation5], %s3372
          %s3374 = sand.u32 %s139, 1
          %s3375 = smul.addr %s3374, 512
          %s3376 = scalar_lea.vmem [#allocation6], %s3375
          %3377 = dma.done %s3373, 8192
        $region56: #{tpu_custom_call.1} parent=51 // pred_fallthru
          _
      $region52: #{tpu_custom_call.1} parent=5 // pred_fallthru
        _
    $region6: #{tpu_custom_call.1} parent=1 // loop_footer
      %s19 = sadd.s32 1, %s15
    $region7: #{tpu_custom_call.1} parent=1 // loop_footer_branch
      %14 = sbr.rel target = $region3
    $region8: #{tpu_custom_call.1} parent=1 // loop_exit
      _
    %3378 = vsyncpa [#allocation4], 1
    %s3379 = scalar_lea.sflag [#allocation4], 1
    %3380 = vsyncpa %s3379, 1
    %3381 = vsyncpa [#allocation5], 1
    %s3382 = scalar_lea.sflag [#allocation5], 1
    %3383 = vsyncpa %s3382, 1

</llo_original>
